<compile_context>
chip_gen: v7x
topology: tpu7x:2x2x1
jax: 0.10.0
libtpu: 0.0.40
codegen_flags: <defaults>
</compile_context>

<pallas_src>
import jax
import jax.numpy as jnp
from jax import lax
from jax.experimental import pallas as pl
from jax.experimental.pallas import tpu as pltpu

NEG_SLOPE_GAT = 0.2   # LeakyReLU inside GATConv attention
BN_EPS = 1e-5
PAD_OUT = 128         # lane-dense classifier output slab


# ---------------------------------------------------------------------------
# Pallas kernel: whole GATNet forward (inference)
# ---------------------------------------------------------------------------
def gatnet_kernel(src_ref, dstc_ref, dstr_ref, x_ref,
                  bnf_sc_ref, bnf_sh_ref, wg_ref,
                  bnc_sc_ref, bnc_sh_ref, wall_ref, bgat_ref,
                  bnfc_sc_ref, bnfc_sh_ref, wl_ref, bl_ref,
                  bnh_sc_ref, bnh_sh_ref, wc_ref, bc_ref,
                  y_ref, attn_ref,
                  proj_s, pg_s):
    f32 = jnp.float32
    E_pad, PROJW = pg_s.shape
    N = proj_s.shape[0]
    L = bgat_ref.shape[0]
    HID = bgat_ref.shape[2]
    H = attn_ref.shape[2]
    C = HID // H

    # --- one-hot dst operators (built once, reused every layer; use the idle MXU) ----
    # scatter (sum over edges with dst == n):  [N, E_pad]
    oh_ne = (dstr_ref[...] == lax.broadcasted_iota(jnp.int32, (N, E_pad), 0)).astype(f32)
    # gather (pick node dst[e] per edge):      [E_pad, N]   (padded edges: dst=N -> all-zero row)
    oh_en = (dstc_ref[...] == lax.broadcasted_iota(jnp.int32, (E_pad, N), 1)).astype(f32)
    # head-expansion matrix rep[h, h*C:(h+1)*C] = 1 : lane repeat H -> H*C via MXU
    hr = lax.broadcasted_iota(jnp.int32, (H, HID), 0)
    hc = lax.broadcasted_iota(jnp.int32, (H, HID), 1)
    rep = ((hc >= hr * C) & (hc < (hr + 1) * C)).astype(f32)

    # --- bn_feat (folded) -> GCNConv(gfn=True): x @ Wg (no propagation) -> ReLU -------
    h = x_ref[...] * bnf_sc_ref[...] + bnf_sh_ref[...]
    h = jnp.maximum(jnp.dot(h.astype(jnp.bfloat16), wg_ref[...],
                            preferred_element_type=f32), 0.0)                 # [N, HID]

    for l in range(L):                                                         # static unroll
        hb = (h * bnc_sc_ref[l] + bnc_sh_ref[l]).astype(jnp.bfloat16)          # folded BN

        # fused projection: [xp | a_src | a_dst] in ONE MXU pass
        proj_s[...] = jnp.dot(hb, wall_ref[l], preferred_element_type=f32)     # [N, PROJW]

        # ---- src-side gather: 8-row chunks, one unmasked (8, PROJW) store per chunk --
        def gather_chunk(i, c):
            base = pl.multiple_of(i * 8, 8)
            rows = [proj_s[pl.ds(src_ref[base + k], 1), :] for k in range(8)]
            pg_s[pl.ds(base, 8), :] = jnp.concatenate(rows, axis=0)
            return c
        lax.fori_loop(0, E_pad // 8, gather_chunk, 0, unroll=True)

        pg = pg_s[...]
        xs = pg[:, :HID]                                          # source features  [E_pad, HID]
        a_src_e = pg[:, HID:HID + H]                              # src score part   [E_pad, H]
        # dst-side gather of a_dst via one-hot matmul (no edge loop)
        a_dst_e = jnp.dot(oh_en, proj_s[:, HID + H:], preferred_element_type=f32)

        a = a_src_e + a_dst_e
        a = jnp.where(a > 0, a, NEG_SLOPE_GAT * a)                # LeakyReLU(0.2)
        p = jnp.exp(a - jnp.max(a))                               # global-max shift (see TODO)

        # ---- fused scatter-add (softmax denom + weighted messages) on the MXU --------
        msg = xs * jnp.dot(p, rep, preferred_element_type=f32)    # [E_pad, HID]
        den = jnp.dot(oh_ne, p, preferred_element_type=f32)       # [N, H]
        agg = jnp.dot(oh_ne, msg, preferred_element_type=f32)     # [N, HID]

        inv_den = pl.reciprocal(den + 1e-16, approx=True)         # EUP slot
        # per-edge attention coefficients (dst gather of 1/den via MXU, no edge loop)
        attn_ref[l] = p * jnp.dot(oh_en, inv_den, preferred_element_type=f32)  # [E_pad, H]

        # node-level normalization + bias + ReLU (concat-heads output)
        out = agg * jnp.dot(inv_den, rep, preferred_element_type=f32)
        h = jnp.maximum(out + bgat_ref[l], 0.0)                   # [N, HID]

    # --- FC block: BN -> Linear -> ReLU ------------------------------------------------
    hb = (h * bnfc_sc_ref[...] + bnfc_sh_ref[...]).astype(jnp.bfloat16)
    h = jnp.maximum(jnp.dot(hb, wl_ref[...], preferred_element_type=f32) + bl_ref[...], 0.0)

    # --- bn_hidden -> (dropout: eval identity) -> lin_class into lane-dense slab -------
    h = h * bnh_sc_ref[...] + bnh_sh_ref[...]
    y_ref[...] = jnp.dot(h, wc_ref[...], preferred_element_type=f32) + bc_ref[...]


# ---------------------------------------------------------------------------
# Wrapper: weight preprocessing (BN fold, fused projections, bf16 cast) + pallas_call
# ---------------------------------------------------------------------------
def gatnet_forward(params, x, edge_index, edge_attr=None):
    del edge_attr  # GATConv without edge_dim ignores edge features
    N = x.shape[0]
    hidden = params['Wg'].shape[1]
    H = params['att_src'][0].shape[0]
    C = hidden // H
    L = len(params['Wcat'])
    PROJW = hidden + 2 * H

    # add_self_loops (GATConv default add_self_loops=True)
    loops = jnp.arange(N, dtype=jnp.int32)
    src = jnp.concatenate([edge_index[0].astype(jnp.int32), loops])
    dst = jnp.concatenate([edge_index[1].astype(jnp.int32), loops])
    E2 = int(src.shape[0])
    E_pad = ((E2 + 7) // 8) * 8
    pad = E_pad - E2
    if pad:
        # padded edges: src=0 (valid gather row), dst=N (no one-hot match -> contributes 0)
        src = jnp.concatenate([src, jnp.zeros((pad,), jnp.int32)])
        dst = jnp.concatenate([dst, jnp.full((pad,), N, jnp.int32)])

    def fold_bn(p):
        g, b, m, v = p
        scale = g / jnp.sqrt(v + BN_EPS)
        shift = b - m * scale
        return scale[None, :].astype(jnp.float32), shift[None, :].astype(jnp.float32)

    bnf_sc, bnf_sh = fold_bn(params['bn_feat'])
    bnc = [fold_bn(p) for p in params['bn_conv']]
    bnc_sc = jnp.stack([s for s, _ in bnc])                     # [L, 1, hidden]
    bnc_sh = jnp.stack([sh for _, sh in bnc])
    bnfc_sc, bnfc_sh = fold_bn(params['bn_fc'])
    bnh_sc, bnh_sh = fold_bn(params['bn_hidden'])

    # fused per-layer projection weights [Wcat | A_src | A_dst], pre-cast to bf16
    Wall = []
    for l in range(L):
        Wc3 = params['Wcat'][l].reshape(hidden, H, C)
        a_s = jnp.einsum('fhc,hc->fh', Wc3, params['att_src'][l])   # [hidden, H]
        a_d = jnp.einsum('fhc,hc->fh', Wc3, params['att_dst'][l])   # [hidden, H]
        Wall.append(jnp.concatenate([params['Wcat'][l], a_s, a_d], axis=1))
    Wall = jnp.stack(Wall).astype(jnp.bfloat16)                     # [L, hidden, PROJW]
    bgat = jnp.stack([params['b_gat'][l][None, :] for l in range(L)]).astype(jnp.float32)

    Wg = params['Wg'].astype(jnp.bfloat16)
    Wl = params['Wl'].astype(jnp.bfloat16)
    bl = params['bl'][None, :].astype(jnp.float32)

    # lane-dense classifier: pad output dim to 128, slice after the call (f32)
    num_classes = params['Wc'].shape[1]
    Wc_pad = jnp.zeros((hidden, PAD_OUT), jnp.float32).at[:, :num_classes].set(params['Wc'])
    bc_pad = jnp.zeros((1, PAD_OUT), jnp.float32).at[:, :num_classes].set(params['bc'])

    smem = pl.BlockSpec(memory_space=pltpu.MemorySpace.SMEM)
    vmem = pl.BlockSpec(memory_space=pltpu.MemorySpace.VMEM)

    inputs = (src, dst[:, None], dst[None, :], x.astype(jnp.float32),
              bnf_sc, bnf_sh, Wg,
              bnc_sc, bnc_sh, Wall, bgat,
              bnfc_sc, bnfc_sh, Wl, bl,
              bnh_sc, bnh_sh, Wc_pad, bc_pad)

    y_pad, attn_all = pl.pallas_call(
        gatnet_kernel,
        out_shape=(jax.ShapeDtypeStruct((N, PAD_OUT), jnp.float32),
                   jax.ShapeDtypeStruct((L, E_pad, H), jnp.float32)),
        in_specs=[smem] + [vmem] * (len(inputs) - 1),
        out_specs=(vmem, vmem),
        scratch_shapes=[
            pltpu.VMEM((N, PROJW), jnp.float32),       # fused projections per node
            pltpu.VMEM((E_pad, PROJW), jnp.float32),   # gathered source rows per edge
        ],
        # v7x-safe scoped limit; raise toward ~96 MiB on v5e/v6e for large graphs.
        compiler_params=pltpu.CompilerParams(vmem_limit_bytes=48 * 1024 * 1024),
    )(*inputs)

    y = y_pad[:, :num_classes]
    attn_list = [attn_all[l, :E2, :] for l in range(L)]
    return y, (edge_index, attn_list)


# ---------------------------------------------------------------------------
# Pure-JAX reference (independent segment-op formulation) for validation
# ---------------------------------------------------------------------------
def reference_forward(params, x, edge_index):
    N = x.shape[0]
    hidden = params['Wg'].shape[1]
    H = params['att_src'][0].shape[0]
    C = hidden // H
    loops = jnp.arange(N, dtype=jnp.int32)
    src = jnp.concatenate([edge_index[0].astype(jnp.int32), loops])
    dst = jnp.concatenate([edge_index[1].astype(jnp.int32), loops])

    def bn(v, p):
        g, b, m, var = p
        return (v - m) / jnp.sqrt(var + BN_EPS) * g + b

    h = bn(x, params['bn_feat'])
    h = jax.nn.relu(h @ params['Wg'])                               # GCNConv(gfn=True)
    attns = []
    for l in range(len(params['Wcat'])):
        hb = bn(h, params['bn_conv'][l])
        xp = (hb @ params['Wcat'][l]).reshape(N, H, C)
        a_s = jnp.sum(xp * params['att_src'][l][None], axis=-1)     # [N, H]
        a_d = jnp.sum(xp * params['att_dst'][l][None], axis=-1)     # [N, H]
        alpha = jax.nn.leaky_relu(a_s[src] + a_d[dst], negative_slope=NEG_SLOPE_GAT)
        m = jax.ops.segment_max(alpha, dst, num_segments=N)
        p = jnp.exp(alpha - m[dst])
        den = jax.ops.segment_sum(p, dst, num_segments=N)
        attn = p / (den[dst] + 1e-16)                               # [E', H]
        attns.append(attn)
        msg = xp[src] * attn[:, :, None]                            # [E', H, C]
        out = jax.ops.segment_sum(msg, dst, num_segments=N).reshape(N, hidden)
        h = jax.nn.relu(out + params['b_gat'][l])
    hb = bn(h, params['bn_fc'])
    h = jax.nn.relu(hb @ params['Wl'] + params['bl'])
    h = bn(h, params['bn_hidden'])
    y = h @ params['Wc'] + params['bc']                             # dropout: eval = identity
    return y, attns


# ---------------------------------------------------------------------------
# Deterministic parameter init (BN weight=1, bias=1e-4 per the module's init)
# ---------------------------------------------------------------------------
def init_params(key, num_features, hidden, num_classes, heads, num_conv_layers=3):
    C = hidden // heads
    keys = iter(jax.random.split(key, 64))

    def nrm(shape, scale=0.1):
        return (scale * jax.random.normal(next(keys), shape)).astype(jnp.float32)

    def bn_params(dim):
        gamma = jnp.ones((dim,), jnp.float32)
        beta = jnp.full((dim,), 1e-4, jnp.float32)
        mean = nrm((dim,), 0.05)
        var = (1.0 + 0.1 * jax.random.uniform(next(keys), (dim,))).astype(jnp.float32)
        return (gamma, beta, mean, var)

    return dict(
        bn_feat=bn_params(num_features),
        Wg=nrm((num_features, hidden)),
        bn_conv=[bn_params(hidden) for _ in range(num_conv_layers)],
        Wcat=[nrm((hidden, hidden)) for _ in range(num_conv_layers)],
        att_src=[nrm((heads, C)) for _ in range(num_conv_layers)],
        att_dst=[nrm((heads, C)) for _ in range(num_conv_layers)],
        b_gat=[nrm((hidden,)) for _ in range(num_conv_layers)],
        bn_fc=bn_params(hidden),
        Wl=nrm((hidden, hidden)),
        bl=nrm((hidden,)),
        bn_hidden=bn_params(hidden),
        Wc=nrm((hidden, num_classes)),
        bc=nrm((num_classes,)),
    )


if __name__ == "__main__":
    num_features, hidden, num_classes, heads = 16, 32, 8, 4
    N, E = 16, 32

    root = jax.random.PRNGKey(0)
    kp, kx, ks, kd = jax.random.split(root, 4)
    params = init_params(kp, num_features, hidden, num_classes, heads)

    x = jax.random.normal(kx, (N, num_features), jnp.float32)
    src = jax.random.randint(ks, (E,), 0, N)
    dst = jax.random.randint(kd, (E,), 0, N)
    edge_index = jnp.stack([src, dst]).astype(jnp.int32)

    y, (ei_out, attn_list) = gatnet_forward(params, x, edge_index)
    y = jax.block_until_ready(y)
    attn = jax.block_until_ready(jnp.stack(attn_list))

    y_ref, attn_ref_list = reference_forward(params, x, edge_index)
    attn_ref = jnp.stack(attn_ref_list)

    assert bool(jnp.allclose(y, y_ref, atol=2e-2, rtol=2e-2)), "node logits mismatch"
    assert bool(jnp.allclose(attn, attn_ref, atol=2e-2, rtol=2e-2)), "attention mismatch"
    assert bool(jnp.all(jnp.isfinite(y))) and bool(jnp.all(jnp.isfinite(attn)))

    print("KERNEL_OK")
</pallas_src>

<mosaic_0001>
module attributes {stable_mosaic.version = 11 : i64} {
  func.func @gatnet_kernel(%arg0: memref<48xi32, #tpu.memory_space<smem>>, %arg1: memref<48x1xi32, #tpu.memory_space<vmem>>, %arg2: memref<1x48xi32, #tpu.memory_space<vmem>>, %arg3: memref<16x16xf32, #tpu.memory_space<vmem>>, %arg4: memref<1x16xf32, #tpu.memory_space<vmem>>, %arg5: memref<1x16xf32, #tpu.memory_space<vmem>>, %arg6: memref<16x32xbf16, #tpu.memory_space<vmem>>, %arg7: memref<3x1x32xf32, #tpu.memory_space<vmem>>, %arg8: memref<3x1x32xf32, #tpu.memory_space<vmem>>, %arg9: memref<3x32x40xbf16, #tpu.memory_space<vmem>>, %arg10: memref<3x1x32xf32, #tpu.memory_space<vmem>>, %arg11: memref<1x32xf32, #tpu.memory_space<vmem>>, %arg12: memref<1x32xf32, #tpu.memory_space<vmem>>, %arg13: memref<32x32xbf16, #tpu.memory_space<vmem>>, %arg14: memref<1x32xf32, #tpu.memory_space<vmem>>, %arg15: memref<1x32xf32, #tpu.memory_space<vmem>>, %arg16: memref<1x32xf32, #tpu.memory_space<vmem>>, %arg17: memref<32x128xf32, #tpu.memory_space<vmem>>, %arg18: memref<1x128xf32, #tpu.memory_space<vmem>>, %arg19: memref<16x128xf32, #tpu.memory_space<vmem>>, %arg20: memref<3x48x4xf32, #tpu.memory_space<vmem>>, %arg21: memref<16x40xf32, #tpu.memory_space<vmem>>, %arg22: memref<48x40xf32, #tpu.memory_space<vmem>>) attributes {dimension_semantics = [], scalar_prefetch = 0 : i64, scratch_operands = 2 : i64, tpu.core_type = #tpu.core_type<tc>} {
    %c0 = arith.constant 0 : index
    %c0_0 = arith.constant 0 : index
    %0 = vector.load %arg2[%c0, %c0_0] : memref<1x48xi32, #tpu.memory_space<vmem>>, vector<1x48xi32>
    %1 = tpu.iota {dimensions = array<i32: 0>} : vector<16x48xi32>
    %2 = vector.broadcast %0 : vector<1x48xi32> to vector<16x48xi32>
    %3 = arith.cmpi eq, %2, %1 : vector<16x48xi32>
    %4 = arith.extui %3 : vector<16x48xi1> to vector<16x48xi32>
    %5 = arith.sitofp %4 : vector<16x48xi32> to vector<16x48xf32>
    %c0_1 = arith.constant 0 : index
    %c0_2 = arith.constant 0 : index
    %6 = vector.load %arg1[%c0_1, %c0_2] : memref<48x1xi32, #tpu.memory_space<vmem>>, vector<48x1xi32>
    %7 = tpu.iota {dimensions = array<i32: 1>} : vector<48x16xi32>
    %8 = vector.broadcast %6 : vector<48x1xi32> to vector<48x16xi32>
    %9 = arith.cmpi eq, %8, %7 : vector<48x16xi32>
    %10 = arith.extui %9 : vector<48x16xi1> to vector<48x16xi32>
    %11 = arith.sitofp %10 : vector<48x16xi32> to vector<48x16xf32>
    %12 = tpu.iota {dimensions = array<i32: 0>} : vector<4x32xi32>
    %13 = tpu.iota {dimensions = array<i32: 1>} : vector<4x32xi32>
    %c8_i32 = arith.constant 8 : i32
    %14 = vector.broadcast %c8_i32 : i32 to vector<4x32xi32>
    %15 = arith.muli %12, %14 : vector<4x32xi32>
    %16 = arith.cmpi sge, %13, %15 : vector<4x32xi32>
    %c1_i32 = arith.constant 1 : i32
    %17 = vector.broadcast %c1_i32 : i32 to vector<4x32xi32>
    %18 = arith.addi %12, %17 : vector<4x32xi32>
    %c8_i32_3 = arith.constant 8 : i32
    %19 = vector.broadcast %c8_i32_3 : i32 to vector<4x32xi32>
    %20 = arith.muli %18, %19 : vector<4x32xi32>
    %21 = arith.cmpi slt, %13, %20 : vector<4x32xi32>
    %22 = arith.andi %16, %21 : vector<4x32xi1>
    %23 = arith.extui %22 : vector<4x32xi1> to vector<4x32xi32>
    %24 = arith.sitofp %23 : vector<4x32xi32> to vector<4x32xf32>
    %c0_4 = arith.constant 0 : index
    %c0_5 = arith.constant 0 : index
    %25 = vector.load %arg3[%c0_4, %c0_5] : memref<16x16xf32, #tpu.memory_space<vmem>>, vector<16x16xf32>
    %c0_6 = arith.constant 0 : index
    %c0_7 = arith.constant 0 : index
    %26 = vector.load %arg4[%c0_6, %c0_7] : memref<1x16xf32, #tpu.memory_space<vmem>>, vector<1x16xf32>
    %27 = vector.broadcast %26 : vector<1x16xf32> to vector<16x16xf32>
    %28 = arith.mulf %25, %27 : vector<16x16xf32>
    %c0_8 = arith.constant 0 : index
    %c0_9 = arith.constant 0 : index
    %29 = vector.load %arg5[%c0_8, %c0_9] : memref<1x16xf32, #tpu.memory_space<vmem>>, vector<1x16xf32>
    %30 = vector.broadcast %29 : vector<1x16xf32> to vector<16x16xf32>
    %31 = arith.addf %28, %30 : vector<16x16xf32>
    %32 = arith.truncf %31 : vector<16x16xf32> to vector<16x16xbf16>
    %c0_10 = arith.constant 0 : index
    %c0_11 = arith.constant 0 : index
    %33 = vector.load %arg6[%c0_10, %c0_11] : memref<16x32xbf16, #tpu.memory_space<vmem>>, vector<16x32xbf16>
    %cst = arith.constant dense<0.000000e+00> : vector<16x32xf32>
    %34 = tpu.matmul %32, %33, %cst {dimension_numbers = #tpu.dot_dimension_numbers<[1], [0], [0], [1], [0, 0, 1, 1], [], []>} : vector<16x16xbf16>, vector<16x32xbf16>, vector<16x32xf32> -> vector<16x32xf32>
    %cst_12 = arith.constant 0.000000e+00 : f32
    %35 = vector.broadcast %cst_12 : f32 to vector<16x32xf32>
    %36 = arith.maximumf %34, %35 : vector<16x32xf32>
    %c0_13 = arith.constant 0 : index
    %c0_14 = arith.constant 0 : index
    %c0_15 = arith.constant 0 : index
    %37 = vector.load %arg7[%c0_13, %c0_14, %c0_15] : memref<3x1x32xf32, #tpu.memory_space<vmem>>, vector<1x1x32xf32>
    %38 = vector.shape_cast %37 : vector<1x1x32xf32> to vector<1x32xf32>
    %39 = vector.broadcast %38 : vector<1x32xf32> to vector<16x32xf32>
    %40 = arith.mulf %36, %39 : vector<16x32xf32>
    %c0_16 = arith.constant 0 : index
    %c0_17 = arith.constant 0 : index
    %c0_18 = arith.constant 0 : index
    %41 = vector.load %arg8[%c0_16, %c0_17, %c0_18] : memref<3x1x32xf32, #tpu.memory_space<vmem>>, vector<1x1x32xf32>
    %42 = vector.shape_cast %41 : vector<1x1x32xf32> to vector<1x32xf32>
    %43 = vector.broadcast %42 : vector<1x32xf32> to vector<16x32xf32>
    %44 = arith.addf %40, %43 : vector<16x32xf32>
    %45 = arith.truncf %44 : vector<16x32xf32> to vector<16x32xbf16>
    %c0_19 = arith.constant 0 : index
    %c0_20 = arith.constant 0 : index
    %c0_21 = arith.constant 0 : index
    %46 = vector.load %arg9[%c0_19, %c0_20, %c0_21] : memref<3x32x40xbf16, #tpu.memory_space<vmem>>, vector<1x32x40xbf16>
    %47 = vector.shape_cast %46 : vector<1x32x40xbf16> to vector<32x40xbf16>
    %cst_22 = arith.constant dense<0.000000e+00> : vector<16x40xf32>
    %48 = tpu.matmul %45, %47, %cst_22 {dimension_numbers = #tpu.dot_dimension_numbers<[1], [0], [0], [1], [0, 0, 1, 1], [], []>} : vector<16x32xbf16>, vector<32x40xbf16>, vector<16x40xf32> -> vector<16x40xf32>
    %c0_23 = arith.constant 0 : index
    %c0_24 = arith.constant 0 : index
    %49 = vector.load %arg21[%c0_23, %c0_24] : memref<16x40xf32, #tpu.memory_space<vmem>>, vector<16x40xf32>
    tpu.vector_store %arg21[%c0_23, %c0_24], %48 {strides = array<i32>} : memref<16x40xf32, #tpu.memory_space<vmem>>, vector<16x40xf32>,
    %c0_i32 = arith.constant 0 : i32
    %c8_i32_25 = arith.constant 8 : i32
    %50 = arith.muli %c0_i32, %c8_i32_25 : i32
    %51 = tpu.assume_multiple %50, 8 : i32
    %c0_i32_26 = arith.constant 0 : i32
    %52 = arith.addi %51, %c0_i32_26 : i32
    %53 = arith.index_cast %52 : i32 to index
    %54 = memref.load %arg0[%53] : memref<48xi32, #tpu.memory_space<smem>>
    %55 = arith.index_cast %54 : i32 to index
    %c0_27 = arith.constant 0 : index
    %56 = vector.load %arg21[%55, %c0_27] : memref<16x40xf32, #tpu.memory_space<vmem>>, vector<1x40xf32>
    %c1_i32_28 = arith.constant 1 : i32
    %57 = arith.addi %51, %c1_i32_28 : i32
    %58 = arith.index_cast %57 : i32 to index
    %59 = memref.load %arg0[%58] : memref<48xi32, #tpu.memory_space<smem>>
    %60 = arith.index_cast %59 : i32 to index
    %c0_29 = arith.constant 0 : index
    %61 = vector.load %arg21[%60, %c0_29] : memref<16x40xf32, #tpu.memory_space<vmem>>, vector<1x40xf32>
    %c2_i32 = arith.constant 2 : i32
    %62 = arith.addi %51, %c2_i32 : i32
    %63 = arith.index_cast %62 : i32 to index
    %64 = memref.load %arg0[%63] : memref<48xi32, #tpu.memory_space<smem>>
    %65 = arith.index_cast %64 : i32 to index
    %c0_30 = arith.constant 0 : index
    %66 = vector.load %arg21[%65, %c0_30] : memref<16x40xf32, #tpu.memory_space<vmem>>, vector<1x40xf32>
    %c3_i32 = arith.constant 3 : i32
    %67 = arith.addi %51, %c3_i32 : i32
    %68 = arith.index_cast %67 : i32 to index
    %69 = memref.load %arg0[%68] : memref<48xi32, #tpu.memory_space<smem>>
    %70 = arith.index_cast %69 : i32 to index
    %c0_31 = arith.constant 0 : index
    %71 = vector.load %arg21[%70, %c0_31] : memref<16x40xf32, #tpu.memory_space<vmem>>, vector<1x40xf32>
    %c4_i32 = arith.constant 4 : i32
    %72 = arith.addi %51, %c4_i32 : i32
    %73 = arith.index_cast %72 : i32 to index
    %74 = memref.load %arg0[%73] : memref<48xi32, #tpu.memory_space<smem>>
    %75 = arith.index_cast %74 : i32 to index
    %c0_32 = arith.constant 0 : index
    %76 = vector.load %arg21[%75, %c0_32] : memref<16x40xf32, #tpu.memory_space<vmem>>, vector<1x40xf32>
    %c5_i32 = arith.constant 5 : i32
    %77 = arith.addi %51, %c5_i32 : i32
    %78 = arith.index_cast %77 : i32 to index
    %79 = memref.load %arg0[%78] : memref<48xi32, #tpu.memory_space<smem>>
    %80 = arith.index_cast %79 : i32 to index
    %c0_33 = arith.constant 0 : index
    %81 = vector.load %arg21[%80, %c0_33] : memref<16x40xf32, #tpu.memory_space<vmem>>, vector<1x40xf32>
    %c6_i32 = arith.constant 6 : i32
    %82 = arith.addi %51, %c6_i32 : i32
    %83 = arith.index_cast %82 : i32 to index
    %84 = memref.load %arg0[%83] : memref<48xi32, #tpu.memory_space<smem>>
    %85 = arith.index_cast %84 : i32 to index
    %c0_34 = arith.constant 0 : index
    %86 = vector.load %arg21[%85, %c0_34] : memref<16x40xf32, #tpu.memory_space<vmem>>, vector<1x40xf32>
    %c7_i32 = arith.constant 7 : i32
    %87 = arith.addi %51, %c7_i32 : i32
    %88 = arith.index_cast %87 : i32 to index
    %89 = memref.load %arg0[%88] : memref<48xi32, #tpu.memory_space<smem>>
    %90 = arith.index_cast %89 : i32 to index
    %c0_35 = arith.constant 0 : index
    %91 = vector.load %arg21[%90, %c0_35] : memref<16x40xf32, #tpu.memory_space<vmem>>, vector<1x40xf32>
    %92 = tpu.concatenate %56, %61, %66, %71, %76, %81, %86, %91 in 0 : vector<1x40xf32>, vector<1x40xf32>, vector<1x40xf32>, vector<1x40xf32>, vector<1x40xf32>, vector<1x40xf32>, vector<1x40xf32>, vector<1x40xf32> -> vector<8x40xf32>
    %93 = arith.index_cast %51 : i32 to index
    %c0_36 = arith.constant 0 : index
    %94 = vector.load %arg22[%93, %c0_36] : memref<48x40xf32, #tpu.memory_space<vmem>>, vector<8x40xf32>
    tpu.vector_store %arg22[%93, %c0_36], %92 {strides = array<i32>} : memref<48x40xf32, #tpu.memory_space<vmem>>, vector<8x40xf32>,
    %c1_i32_37 = arith.constant 1 : i32
    %c8_i32_38 = arith.constant 8 : i32
    %95 = arith.muli %c1_i32_37, %c8_i32_38 : i32
    %96 = tpu.assume_multiple %95, 8 : i32
    %c0_i32_39 = arith.constant 0 : i32
    %97 = arith.addi %96, %c0_i32_39 : i32
    %98 = arith.index_cast %97 : i32 to index
    %99 = memref.load %arg0[%98] : memref<48xi32, #tpu.memory_space<smem>>
    %100 = arith.index_cast %99 : i32 to index
    %c0_40 = arith.constant 0 : index
    %101 = vector.load %arg21[%100, %c0_40] : memref<16x40xf32, #tpu.memory_space<vmem>>, vector<1x40xf32>
    %c1_i32_41 = arith.constant 1 : i32
    %102 = arith.addi %96, %c1_i32_41 : i32
    %103 = arith.index_cast %102 : i32 to index
    %104 = memref.load %arg0[%103] : memref<48xi32, #tpu.memory_space<smem>>
    %105 = arith.index_cast %104 : i32 to index
    %c0_42 = arith.constant 0 : index
    %106 = vector.load %arg21[%105, %c0_42] : memref<16x40xf32, #tpu.memory_space<vmem>>, vector<1x40xf32>
    %c2_i32_43 = arith.constant 2 : i32
    %107 = arith.addi %96, %c2_i32_43 : i32
    %108 = arith.index_cast %107 : i32 to index
    %109 = memref.load %arg0[%108] : memref<48xi32, #tpu.memory_space<smem>>
    %110 = arith.index_cast %109 : i32 to index
    %c0_44 = arith.constant 0 : index
    %111 = vector.load %arg21[%110, %c0_44] : memref<16x40xf32, #tpu.memory_space<vmem>>, vector<1x40xf32>
    %c3_i32_45 = arith.constant 3 : i32
    %112 = arith.addi %96, %c3_i32_45 : i32
    %113 = arith.index_cast %112 : i32 to index
    %114 = memref.load %arg0[%113] : memref<48xi32, #tpu.memory_space<smem>>
    %115 = arith.index_cast %114 : i32 to index
    %c0_46 = arith.constant 0 : index
    %116 = vector.load %arg21[%115, %c0_46] : memref<16x40xf32, #tpu.memory_space<vmem>>, vector<1x40xf32>
    %c4_i32_47 = arith.constant 4 : i32
    %117 = arith.addi %96, %c4_i32_47 : i32
    %118 = arith.index_cast %117 : i32 to index
    %119 = memref.load %arg0[%118] : memref<48xi32, #tpu.memory_space<smem>>
    %120 = arith.index_cast %119 : i32 to index
    %c0_48 = arith.constant 0 : index
    %121 = vector.load %arg21[%120, %c0_48] : memref<16x40xf32, #tpu.memory_space<vmem>>, vector<1x40xf32>
    %c5_i32_49 = arith.constant 5 : i32
    %122 = arith.addi %96, %c5_i32_49 : i32
    %123 = arith.index_cast %122 : i32 to index
    %124 = memref.load %arg0[%123] : memref<48xi32, #tpu.memory_space<smem>>
    %125 = arith.index_cast %124 : i32 to index
    %c0_50 = arith.constant 0 : index
    %126 = vector.load %arg21[%125, %c0_50] : memref<16x40xf32, #tpu.memory_space<vmem>>, vector<1x40xf32>
    %c6_i32_51 = arith.constant 6 : i32
    %127 = arith.addi %96, %c6_i32_51 : i32
    %128 = arith.index_cast %127 : i32 to index
    %129 = memref.load %arg0[%128] : memref<48xi32, #tpu.memory_space<smem>>
    %130 = arith.index_cast %129 : i32 to index
    %c0_52 = arith.constant 0 : index
    %131 = vector.load %arg21[%130, %c0_52] : memref<16x40xf32, #tpu.memory_space<vmem>>, vector<1x40xf32>
    %c7_i32_53 = arith.constant 7 : i32
    %132 = arith.addi %96, %c7_i32_53 : i32
    %133 = arith.index_cast %132 : i32 to index
    %134 = memref.load %arg0[%133] : memref<48xi32, #tpu.memory_space<smem>>
    %135 = arith.index_cast %134 : i32 to index
    %c0_54 = arith.constant 0 : index
    %136 = vector.load %arg21[%135, %c0_54] : memref<16x40xf32, #tpu.memory_space<vmem>>, vector<1x40xf32>
    %137 = tpu.concatenate %101, %106, %111, %116, %121, %126, %131, %136 in 0 : vector<1x40xf32>, vector<1x40xf32>, vector<1x40xf32>, vector<1x40xf32>, vector<1x40xf32>, vector<1x40xf32>, vector<1x40xf32>, vector<1x40xf32> -> vector<8x40xf32>
    %138 = arith.index_cast %96 : i32 to index
    %c0_55 = arith.constant 0 : index
    %139 = vector.load %arg22[%138, %c0_55] : memref<48x40xf32, #tpu.memory_space<vmem>>, vector<8x40xf32>
    tpu.vector_store %arg22[%138, %c0_55], %137 {strides = array<i32>} : memref<48x40xf32, #tpu.memory_space<vmem>>, vector<8x40xf32>,
    %c2_i32_56 = arith.constant 2 : i32
    %c8_i32_57 = arith.constant 8 : i32
    %140 = arith.muli %c2_i32_56, %c8_i32_57 : i32
    %141 = tpu.assume_multiple %140, 8 : i32
    %c0_i32_58 = arith.constant 0 : i32
    %142 = arith.addi %141, %c0_i32_58 : i32
    %143 = arith.index_cast %142 : i32 to index
    %144 = memref.load %arg0[%143] : memref<48xi32, #tpu.memory_space<smem>>
    %145 = arith.index_cast %144 : i32 to index
    %c0_59 = arith.constant 0 : index
    %146 = vector.load %arg21[%145, %c0_59] : memref<16x40xf32, #tpu.memory_space<vmem>>, vector<1x40xf32>
    %c1_i32_60 = arith.constant 1 : i32
    %147 = arith.addi %141, %c1_i32_60 : i32
    %148 = arith.index_cast %147 : i32 to index
    %149 = memref.load %arg0[%148] : memref<48xi32, #tpu.memory_space<smem>>
    %150 = arith.index_cast %149 : i32 to index
    %c0_61 = arith.constant 0 : index
    %151 = vector.load %arg21[%150, %c0_61] : memref<16x40xf32, #tpu.memory_space<vmem>>, vector<1x40xf32>
    %c2_i32_62 = arith.constant 2 : i32
    %152 = arith.addi %141, %c2_i32_62 : i32
    %153 = arith.index_cast %152 : i32 to index
    %154 = memref.load %arg0[%153] : memref<48xi32, #tpu.memory_space<smem>>
    %155 = arith.index_cast %154 : i32 to index
    %c0_63 = arith.constant 0 : index
    %156 = vector.load %arg21[%155, %c0_63] : memref<16x40xf32, #tpu.memory_space<vmem>>, vector<1x40xf32>
    %c3_i32_64 = arith.constant 3 : i32
    %157 = arith.addi %141, %c3_i32_64 : i32
    %158 = arith.index_cast %157 : i32 to index
    %159 = memref.load %arg0[%158] : memref<48xi32, #tpu.memory_space<smem>>
    %160 = arith.index_cast %159 : i32 to index
    %c0_65 = arith.constant 0 : index
    %161 = vector.load %arg21[%160, %c0_65] : memref<16x40xf32, #tpu.memory_space<vmem>>, vector<1x40xf32>
    %c4_i32_66 = arith.constant 4 : i32
    %162 = arith.addi %141, %c4_i32_66 : i32
    %163 = arith.index_cast %162 : i32 to index
    %164 = memref.load %arg0[%163] : memref<48xi32, #tpu.memory_space<smem>>
    %165 = arith.index_cast %164 : i32 to index
    %c0_67 = arith.constant 0 : index
    %166 = vector.load %arg21[%165, %c0_67] : memref<16x40xf32, #tpu.memory_space<vmem>>, vector<1x40xf32>
    %c5_i32_68 = arith.constant 5 : i32
    %167 = arith.addi %141, %c5_i32_68 : i32
    %168 = arith.index_cast %167 : i32 to index
    %169 = memref.load %arg0[%168] : memref<48xi32, #tpu.memory_space<smem>>
    %170 = arith.index_cast %169 : i32 to index
    %c0_69 = arith.constant 0 : index
    %171 = vector.load %arg21[%170, %c0_69] : memref<16x40xf32, #tpu.memory_space<vmem>>, vector<1x40xf32>
    %c6_i32_70 = arith.constant 6 : i32
    %172 = arith.addi %141, %c6_i32_70 : i32
    %173 = arith.index_cast %172 : i32 to index
    %174 = memref.load %arg0[%173] : memref<48xi32, #tpu.memory_space<smem>>
    %175 = arith.index_cast %174 : i32 to index
    %c0_71 = arith.constant 0 : index
    %176 = vector.load %arg21[%175, %c0_71] : memref<16x40xf32, #tpu.memory_space<vmem>>, vector<1x40xf32>
    %c7_i32_72 = arith.constant 7 : i32
    %177 = arith.addi %141, %c7_i32_72 : i32
    %178 = arith.index_cast %177 : i32 to index
    %179 = memref.load %arg0[%178] : memref<48xi32, #tpu.memory_space<smem>>
    %180 = arith.index_cast %179 : i32 to index
    %c0_73 = arith.constant 0 : index
    %181 = vector.load %arg21[%180, %c0_73] : memref<16x40xf32, #tpu.memory_space<vmem>>, vector<1x40xf32>
    %182 = tpu.concatenate %146, %151, %156, %161, %166, %171, %176, %181 in 0 : vector<1x40xf32>, vector<1x40xf32>, vector<1x40xf32>, vector<1x40xf32>, vector<1x40xf32>, vector<1x40xf32>, vector<1x40xf32>, vector<1x40xf32> -> vector<8x40xf32>
    %183 = arith.index_cast %141 : i32 to index
    %c0_74 = arith.constant 0 : index
    %184 = vector.load %arg22[%183, %c0_74] : memref<48x40xf32, #tpu.memory_space<vmem>>, vector<8x40xf32>
    tpu.vector_store %arg22[%183, %c0_74], %182 {strides = array<i32>} : memref<48x40xf32, #tpu.memory_space<vmem>>, vector<8x40xf32>,
    %c3_i32_75 = arith.constant 3 : i32
    %c8_i32_76 = arith.constant 8 : i32
    %185 = arith.muli %c3_i32_75, %c8_i32_76 : i32
    %186 = tpu.assume_multiple %185, 8 : i32
    %c0_i32_77 = arith.constant 0 : i32
    %187 = arith.addi %186, %c0_i32_77 : i32
    %188 = arith.index_cast %187 : i32 to index
    %189 = memref.load %arg0[%188] : memref<48xi32, #tpu.memory_space<smem>>
    %190 = arith.index_cast %189 : i32 to index
    %c0_78 = arith.constant 0 : index
    %191 = vector.load %arg21[%190, %c0_78] : memref<16x40xf32, #tpu.memory_space<vmem>>, vector<1x40xf32>
    %c1_i32_79 = arith.constant 1 : i32
    %192 = arith.addi %186, %c1_i32_79 : i32
    %193 = arith.index_cast %192 : i32 to index
    %194 = memref.load %arg0[%193] : memref<48xi32, #tpu.memory_space<smem>>
    %195 = arith.index_cast %194 : i32 to index
    %c0_80 = arith.constant 0 : index
    %196 = vector.load %arg21[%195, %c0_80] : memref<16x40xf32, #tpu.memory_space<vmem>>, vector<1x40xf32>
    %c2_i32_81 = arith.constant 2 : i32
    %197 = arith.addi %186, %c2_i32_81 : i32
    %198 = arith.index_cast %197 : i32 to index
    %199 = memref.load %arg0[%198] : memref<48xi32, #tpu.memory_space<smem>>
    %200 = arith.index_cast %199 : i32 to index
    %c0_82 = arith.constant 0 : index
    %201 = vector.load %arg21[%200, %c0_82] : memref<16x40xf32, #tpu.memory_space<vmem>>, vector<1x40xf32>
    %c3_i32_83 = arith.constant 3 : i32
    %202 = arith.addi %186, %c3_i32_83 : i32
    %203 = arith.index_cast %202 : i32 to index
    %204 = memref.load %arg0[%203] : memref<48xi32, #tpu.memory_space<smem>>
    %205 = arith.index_cast %204 : i32 to index
    %c0_84 = arith.constant 0 : index
    %206 = vector.load %arg21[%205, %c0_84] : memref<16x40xf32, #tpu.memory_space<vmem>>, vector<1x40xf32>
    %c4_i32_85 = arith.constant 4 : i32
    %207 = arith.addi %186, %c4_i32_85 : i32
    %208 = arith.index_cast %207 : i32 to index
    %209 = memref.load %arg0[%208] : memref<48xi32, #tpu.memory_space<smem>>
    %210 = arith.index_cast %209 : i32 to index
    %c0_86 = arith.constant 0 : index
    %211 = vector.load %arg21[%210, %c0_86] : memref<16x40xf32, #tpu.memory_space<vmem>>, vector<1x40xf32>
    %c5_i32_87 = arith.constant 5 : i32
    %212 = arith.addi %186, %c5_i32_87 : i32
    %213 = arith.index_cast %212 : i32 to index
    %214 = memref.load %arg0[%213] : memref<48xi32, #tpu.memory_space<smem>>
    %215 = arith.index_cast %214 : i32 to index
    %c0_88 = arith.constant 0 : index
    %216 = vector.load %arg21[%215, %c0_88] : memref<16x40xf32, #tpu.memory_space<vmem>>, vector<1x40xf32>
    %c6_i32_89 = arith.constant 6 : i32
    %217 = arith.addi %186, %c6_i32_89 : i32
    %218 = arith.index_cast %217 : i32 to index
    %219 = memref.load %arg0[%218] : memref<48xi32, #tpu.memory_space<smem>>
    %220 = arith.index_cast %219 : i32 to index
    %c0_90 = arith.constant 0 : index
    %221 = vector.load %arg21[%220, %c0_90] : memref<16x40xf32, #tpu.memory_space<vmem>>, vector<1x40xf32>
    %c7_i32_91 = arith.constant 7 : i32
    %222 = arith.addi %186, %c7_i32_91 : i32
    %223 = arith.index_cast %222 : i32 to index
    %224 = memref.load %arg0[%223] : memref<48xi32, #tpu.memory_space<smem>>
    %225 = arith.index_cast %224 : i32 to index
    %c0_92 = arith.constant 0 : index
    %226 = vector.load %arg21[%225, %c0_92] : memref<16x40xf32, #tpu.memory_space<vmem>>, vector<1x40xf32>
    %227 = tpu.concatenate %191, %196, %201, %206, %211, %216, %221, %226 in 0 : vector<1x40xf32>, vector<1x40xf32>, vector<1x40xf32>, vector<1x40xf32>, vector<1x40xf32>, vector<1x40xf32>, vector<1x40xf32>, vector<1x40xf32> -> vector<8x40xf32>
    %228 = arith.index_cast %186 : i32 to index
    %c0_93 = arith.constant 0 : index
    %229 = vector.load %arg22[%228, %c0_93] : memref<48x40xf32, #tpu.memory_space<vmem>>, vector<8x40xf32>
    tpu.vector_store %arg22[%228, %c0_93], %227 {strides = array<i32>} : memref<48x40xf32, #tpu.memory_space<vmem>>, vector<8x40xf32>,
    %c4_i32_94 = arith.constant 4 : i32
    %c8_i32_95 = arith.constant 8 : i32
    %230 = arith.muli %c4_i32_94, %c8_i32_95 : i32
    %231 = tpu.assume_multiple %230, 8 : i32
    %c0_i32_96 = arith.constant 0 : i32
    %232 = arith.addi %231, %c0_i32_96 : i32
    %233 = arith.index_cast %232 : i32 to index
    %234 = memref.load %arg0[%233] : memref<48xi32, #tpu.memory_space<smem>>
    %235 = arith.index_cast %234 : i32 to index
    %c0_97 = arith.constant 0 : index
    %236 = vector.load %arg21[%235, %c0_97] : memref<16x40xf32, #tpu.memory_space<vmem>>, vector<1x40xf32>
    %c1_i32_98 = arith.constant 1 : i32
    %237 = arith.addi %231, %c1_i32_98 : i32
    %238 = arith.index_cast %237 : i32 to index
    %239 = memref.load %arg0[%238] : memref<48xi32, #tpu.memory_space<smem>>
    %240 = arith.index_cast %239 : i32 to index
    %c0_99 = arith.constant 0 : index
    %241 = vector.load %arg21[%240, %c0_99] : memref<16x40xf32, #tpu.memory_space<vmem>>, vector<1x40xf32>
    %c2_i32_100 = arith.constant 2 : i32
    %242 = arith.addi %231, %c2_i32_100 : i32
    %243 = arith.index_cast %242 : i32 to index
    %244 = memref.load %arg0[%243] : memref<48xi32, #tpu.memory_space<smem>>
    %245 = arith.index_cast %244 : i32 to index
    %c0_101 = arith.constant 0 : index
    %246 = vector.load %arg21[%245, %c0_101] : memref<16x40xf32, #tpu.memory_space<vmem>>, vector<1x40xf32>
    %c3_i32_102 = arith.constant 3 : i32
    %247 = arith.addi %231, %c3_i32_102 : i32
    %248 = arith.index_cast %247 : i32 to index
    %249 = memref.load %arg0[%248] : memref<48xi32, #tpu.memory_space<smem>>
    %250 = arith.index_cast %249 : i32 to index
    %c0_103 = arith.constant 0 : index
    %251 = vector.load %arg21[%250, %c0_103] : memref<16x40xf32, #tpu.memory_space<vmem>>, vector<1x40xf32>
    %c4_i32_104 = arith.constant 4 : i32
    %252 = arith.addi %231, %c4_i32_104 : i32
    %253 = arith.index_cast %252 : i32 to index
    %254 = memref.load %arg0[%253] : memref<48xi32, #tpu.memory_space<smem>>
    %255 = arith.index_cast %254 : i32 to index
    %c0_105 = arith.constant 0 : index
    %256 = vector.load %arg21[%255, %c0_105] : memref<16x40xf32, #tpu.memory_space<vmem>>, vector<1x40xf32>
    %c5_i32_106 = arith.constant 5 : i32
    %257 = arith.addi %231, %c5_i32_106 : i32
    %258 = arith.index_cast %257 : i32 to index
    %259 = memref.load %arg0[%258] : memref<48xi32, #tpu.memory_space<smem>>
    %260 = arith.index_cast %259 : i32 to index
    %c0_107 = arith.constant 0 : index
    %261 = vector.load %arg21[%260, %c0_107] : memref<16x40xf32, #tpu.memory_space<vmem>>, vector<1x40xf32>
    %c6_i32_108 = arith.constant 6 : i32
    %262 = arith.addi %231, %c6_i32_108 : i32
    %263 = arith.index_cast %262 : i32 to index
    %264 = memref.load %arg0[%263] : memref<48xi32, #tpu.memory_space<smem>>
    %265 = arith.index_cast %264 : i32 to index
    %c0_109 = arith.constant 0 : index
    %266 = vector.load %arg21[%265, %c0_109] : memref<16x40xf32, #tpu.memory_space<vmem>>, vector<1x40xf32>
    %c7_i32_110 = arith.constant 7 : i32
    %267 = arith.addi %231, %c7_i32_110 : i32
    %268 = arith.index_cast %267 : i32 to index
    %269 = memref.load %arg0[%268] : memref<48xi32, #tpu.memory_space<smem>>
    %270 = arith.index_cast %269 : i32 to index
    %c0_111 = arith.constant 0 : index
    %271 = vector.load %arg21[%270, %c0_111] : memref<16x40xf32, #tpu.memory_space<vmem>>, vector<1x40xf32>
    %272 = tpu.concatenate %236, %241, %246, %251, %256, %261, %266, %271 in 0 : vector<1x40xf32>, vector<1x40xf32>, vector<1x40xf32>, vector<1x40xf32>, vector<1x40xf32>, vector<1x40xf32>, vector<1x40xf32>, vector<1x40xf32> -> vector<8x40xf32>
    %273 = arith.index_cast %231 : i32 to index
    %c0_112 = arith.constant 0 : index
    %274 = vector.load %arg22[%273, %c0_112] : memref<48x40xf32, #tpu.memory_space<vmem>>, vector<8x40xf32>
    tpu.vector_store %arg22[%273, %c0_112], %272 {strides = array<i32>} : memref<48x40xf32, #tpu.memory_space<vmem>>, vector<8x40xf32>,
    %c5_i32_113 = arith.constant 5 : i32
    %c8_i32_114 = arith.constant 8 : i32
    %275 = arith.muli %c5_i32_113, %c8_i32_114 : i32
    %276 = tpu.assume_multiple %275, 8 : i32
    %c0_i32_115 = arith.constant 0 : i32
    %277 = arith.addi %276, %c0_i32_115 : i32
    %278 = arith.index_cast %277 : i32 to index
    %279 = memref.load %arg0[%278] : memref<48xi32, #tpu.memory_space<smem>>
    %280 = arith.index_cast %279 : i32 to index
    %c0_116 = arith.constant 0 : index
    %281 = vector.load %arg21[%280, %c0_116] : memref<16x40xf32, #tpu.memory_space<vmem>>, vector<1x40xf32>
    %c1_i32_117 = arith.constant 1 : i32
    %282 = arith.addi %276, %c1_i32_117 : i32
    %283 = arith.index_cast %282 : i32 to index
    %284 = memref.load %arg0[%283] : memref<48xi32, #tpu.memory_space<smem>>
    %285 = arith.index_cast %284 : i32 to index
    %c0_118 = arith.constant 0 : index
    %286 = vector.load %arg21[%285, %c0_118] : memref<16x40xf32, #tpu.memory_space<vmem>>, vector<1x40xf32>
    %c2_i32_119 = arith.constant 2 : i32
    %287 = arith.addi %276, %c2_i32_119 : i32
    %288 = arith.index_cast %287 : i32 to index
    %289 = memref.load %arg0[%288] : memref<48xi32, #tpu.memory_space<smem>>
    %290 = arith.index_cast %289 : i32 to index
    %c0_120 = arith.constant 0 : index
    %291 = vector.load %arg21[%290, %c0_120] : memref<16x40xf32, #tpu.memory_space<vmem>>, vector<1x40xf32>
    %c3_i32_121 = arith.constant 3 : i32
    %292 = arith.addi %276, %c3_i32_121 : i32
    %293 = arith.index_cast %292 : i32 to index
    %294 = memref.load %arg0[%293] : memref<48xi32, #tpu.memory_space<smem>>
    %295 = arith.index_cast %294 : i32 to index
    %c0_122 = arith.constant 0 : index
    %296 = vector.load %arg21[%295, %c0_122] : memref<16x40xf32, #tpu.memory_space<vmem>>, vector<1x40xf32>
    %c4_i32_123 = arith.constant 4 : i32
    %297 = arith.addi %276, %c4_i32_123 : i32
    %298 = arith.index_cast %297 : i32 to index
    %299 = memref.load %arg0[%298] : memref<48xi32, #tpu.memory_space<smem>>
    %300 = arith.index_cast %299 : i32 to index
    %c0_124 = arith.constant 0 : index
    %301 = vector.load %arg21[%300, %c0_124] : memref<16x40xf32, #tpu.memory_space<vmem>>, vector<1x40xf32>
    %c5_i32_125 = arith.constant 5 : i32
    %302 = arith.addi %276, %c5_i32_125 : i32
    %303 = arith.index_cast %302 : i32 to index
    %304 = memref.load %arg0[%303] : memref<48xi32, #tpu.memory_space<smem>>
    %305 = arith.index_cast %304 : i32 to index
    %c0_126 = arith.constant 0 : index
    %306 = vector.load %arg21[%305, %c0_126] : memref<16x40xf32, #tpu.memory_space<vmem>>, vector<1x40xf32>
    %c6_i32_127 = arith.constant 6 : i32
    %307 = arith.addi %276, %c6_i32_127 : i32
    %308 = arith.index_cast %307 : i32 to index
    %309 = memref.load %arg0[%308] : memref<48xi32, #tpu.memory_space<smem>>
    %310 = arith.index_cast %309 : i32 to index
    %c0_128 = arith.constant 0 : index
    %311 = vector.load %arg21[%310, %c0_128] : memref<16x40xf32, #tpu.memory_space<vmem>>, vector<1x40xf32>
    %c7_i32_129 = arith.constant 7 : i32
    %312 = arith.addi %276, %c7_i32_129 : i32
    %313 = arith.index_cast %312 : i32 to index
    %314 = memref.load %arg0[%313] : memref<48xi32, #tpu.memory_space<smem>>
    %315 = arith.index_cast %314 : i32 to index
    %c0_130 = arith.constant 0 : index
    %316 = vector.load %arg21[%315, %c0_130] : memref<16x40xf32, #tpu.memory_space<vmem>>, vector<1x40xf32>
    %317 = tpu.concatenate %281, %286, %291, %296, %301, %306, %311, %316 in 0 : vector<1x40xf32>, vector<1x40xf32>, vector<1x40xf32>, vector<1x40xf32>, vector<1x40xf32>, vector<1x40xf32>, vector<1x40xf32>, vector<1x40xf32> -> vector<8x40xf32>
    %318 = arith.index_cast %276 : i32 to index
    %c0_131 = arith.constant 0 : index
    %319 = vector.load %arg22[%318, %c0_131] : memref<48x40xf32, #tpu.memory_space<vmem>>, vector<8x40xf32>
    tpu.vector_store %arg22[%318, %c0_131], %317 {strides = array<i32>} : memref<48x40xf32, #tpu.memory_space<vmem>>, vector<8x40xf32>,
    %c6_i32_132 = arith.constant 6 : i32
    %c0_133 = arith.constant 0 : index
    %c0_134 = arith.constant 0 : index
    %320 = vector.load %arg22[%c0_133, %c0_134] : memref<48x40xf32, #tpu.memory_space<vmem>>, vector<48x40xf32>
    %321 = vector.extract_strided_slice %320 {offsets = [0, 0], sizes = [48, 32], strides = [1, 1]} : vector<48x40xf32> to vector<48x32xf32>
    %322 = vector.extract_strided_slice %320 {offsets = [0, 32], sizes = [48, 4], strides = [1, 1]} : vector<48x40xf32> to vector<48x4xf32>
    %c0_135 = arith.constant 0 : index
    %c36 = arith.constant 36 : index
    %323 = vector.load %arg21[%c0_135, %c36] : memref<16x40xf32, #tpu.memory_space<vmem>>, vector<16x4xf32>
    %cst_136 = arith.constant dense<0.000000e+00> : vector<48x4xf32>
    %324 = tpu.matmul %11, %323, %cst_136 {dimension_numbers = #tpu.dot_dimension_numbers<[1], [0], [0], [1], [0, 0, 1, 1], [], []>} : vector<48x16xf32>, vector<16x4xf32>, vector<48x4xf32> -> vector<48x4xf32>
    %325 = arith.addf %322, %324 : vector<48x4xf32>
    %cst_137 = arith.constant 0.000000e+00 : f32
    %326 = vector.broadcast %cst_137 : f32 to vector<48x4xf32>
    %327 = arith.cmpf ogt, %325, %326 : vector<48x4xf32>
    %cst_138 = arith.constant 2.000000e-01 : f32
    %328 = vector.broadcast %cst_138 : f32 to vector<48x4xf32>
    %329 = arith.mulf %328, %325 : vector<48x4xf32>
    %330 = arith.select %327, %325, %329 : vector<48x4xi1>, vector<48x4xf32>
    %331 = vector.shape_cast %330 : vector<48x4xf32> to vector<1x48x4xf32>
    %cst_139 = arith.constant dense<0xFF800000> : vector<1xf32>
    %332 = vector.multi_reduction <maximumf>, %331, %cst_139 [1, 2] : vector<1x48x4xf32> to vector<1xf32>
    %333 = vector.shape_cast %332 : vector<1xf32> to vector<1x1x1xf32>
    %334 = vector.extract %333[0, 0, 0] : f32 from vector<1x1x1xf32>
    %335 = vector.broadcast %334 : f32 to vector<48x4xf32>
    %336 = arith.subf %330, %335 : vector<48x4xf32>
    %337 = math.exp %336 : vector<48x4xf32>
    %cst_140 = arith.constant dense<0.000000e+00> : vector<48x32xf32>
    %338 = tpu.matmul %337, %24, %cst_140 {dimension_numbers = #tpu.dot_dimension_numbers<[1], [0], [0], [1], [0, 0, 1, 1], [], []>} : vector<48x4xf32>, vector<4x32xf32>, vector<48x32xf32> -> vector<48x32xf32>
    %339 = arith.mulf %321, %338 : vector<48x32xf32>
    %cst_141 = arith.constant dense<0.000000e+00> : vector<16x4xf32>
    %340 = tpu.matmul %5, %337, %cst_141 {dimension_numbers = #tpu.dot_dimension_numbers<[1], [0], [0], [1], [0, 0, 1, 1], [], []>} : vector<16x48xf32>, vector<48x4xf32>, vector<16x4xf32> -> vector<16x4xf32>
    %cst_142 = arith.constant dense<0.000000e+00> : vector<16x32xf32>
    %341 = tpu.matmul %5, %339, %cst_142 {dimension_numbers = #tpu.dot_dimension_numbers<[1], [0], [0], [1], [0, 0, 1, 1], [], []>} : vector<16x48xf32>, vector<48x32xf32>, vector<16x32xf32> -> vector<16x32xf32>
    %cst_143 = arith.constant 1.000000e-16 : f32
    %342 = vector.broadcast %cst_143 : f32 to vector<16x4xf32>
    %343 = arith.addf %340, %342 : vector<16x4xf32>
    %344 = tpu.reciprocal %343 {approx = true} : vector<16x4xf32> -> vector<16x4xf32>
    %cst_144 = arith.constant dense<0.000000e+00> : vector<48x4xf32>
    %345 = tpu.matmul %11, %344, %cst_144 {dimension_numbers = #tpu.dot_dimension_numbers<[1], [0], [0], [1], [0, 0, 1, 1], [], []>} : vector<48x16xf32>, vector<16x4xf32>, vector<48x4xf32> -> vector<48x4xf32>
    %346 = arith.mulf %337, %345 : vector<48x4xf32>
    %c0_145 = arith.constant 0 : index
    %c0_146 = arith.constant 0 : index
    %c0_147 = arith.constant 0 : index
    %347 = vector.load %arg20[%c0_145, %c0_146, %c0_147] : memref<3x48x4xf32, #tpu.memory_space<vmem>>, vector<1x48x4xf32>
    %348 = vector.shape_cast %347 : vector<1x48x4xf32> to vector<48x4xf32>
    %349 = vector.shape_cast %346 : vector<48x4xf32> to vector<1x48x4xf32>
    tpu.vector_store %arg20[%c0_145, %c0_146, %c0_147], %349 {strides = array<i32>} : memref<3x48x4xf32, #tpu.memory_space<vmem>>, vector<1x48x4xf32>,
    %cst_148 = arith.constant dense<0.000000e+00> : vector<16x32xf32>
    %350 = tpu.matmul %344, %24, %cst_148 {dimension_numbers = #tpu.dot_dimension_numbers<[1], [0], [0], [1], [0, 0, 1, 1], [], []>} : vector<16x4xf32>, vector<4x32xf32>, vector<16x32xf32> -> vector<16x32xf32>
    %351 = arith.mulf %341, %350 : vector<16x32xf32>
    %c0_149 = arith.constant 0 : index
    %c0_150 = arith.constant 0 : index
    %c0_151 = arith.constant 0 : index
    %352 = vector.load %arg10[%c0_149, %c0_150, %c0_151] : memref<3x1x32xf32, #tpu.memory_space<vmem>>, vector<1x1x32xf32>
    %353 = vector.shape_cast %352 : vector<1x1x32xf32> to vector<1x32xf32>
    %354 = vector.broadcast %353 : vector<1x32xf32> to vector<16x32xf32>
    %355 = arith.addf %351, %354 : vector<16x32xf32>
    %cst_152 = arith.constant 0.000000e+00 : f32
    %356 = vector.broadcast %cst_152 : f32 to vector<16x32xf32>
    %357 = arith.maximumf %355, %356 : vector<16x32xf32>
    %c1 = arith.constant 1 : index
    %c0_153 = arith.constant 0 : index
    %c0_154 = arith.constant 0 : index
    %358 = vector.load %arg7[%c1, %c0_153, %c0_154] : memref<3x1x32xf32, #tpu.memory_space<vmem>>, vector<1x1x32xf32>
    %359 = vector.shape_cast %358 : vector<1x1x32xf32> to vector<1x32xf32>
    %360 = vector.broadcast %359 : vector<1x32xf32> to vector<16x32xf32>
    %361 = arith.mulf %357, %360 : vector<16x32xf32>
    %c1_155 = arith.constant 1 : index
    %c0_156 = arith.constant 0 : index
    %c0_157 = arith.constant 0 : index
    %362 = vector.load %arg8[%c1_155, %c0_156, %c0_157] : memref<3x1x32xf32, #tpu.memory_space<vmem>>, vector<1x1x32xf32>
    %363 = vector.shape_cast %362 : vector<1x1x32xf32> to vector<1x32xf32>
    %364 = vector.broadcast %363 : vector<1x32xf32> to vector<16x32xf32>
    %365 = arith.addf %361, %364 : vector<16x32xf32>
    %366 = arith.truncf %365 : vector<16x32xf32> to vector<16x32xbf16>
    %c1_158 = arith.constant 1 : index
    %c0_159 = arith.constant 0 : index
    %c0_160 = arith.constant 0 : index
    %367 = vector.load %arg9[%c1_158, %c0_159, %c0_160] : memref<3x32x40xbf16, #tpu.memory_space<vmem>>, vector<1x32x40xbf16>
    %368 = vector.shape_cast %367 : vector<1x32x40xbf16> to vector<32x40xbf16>
    %cst_161 = arith.constant dense<0.000000e+00> : vector<16x40xf32>
    %369 = tpu.matmul %366, %368, %cst_161 {dimension_numbers = #tpu.dot_dimension_numbers<[1], [0], [0], [1], [0, 0, 1, 1], [], []>} : vector<16x32xbf16>, vector<32x40xbf16>, vector<16x40xf32> -> vector<16x40xf32>
    %c0_162 = arith.constant 0 : index
    %c0_163 = arith.constant 0 : index
    %370 = vector.load %arg21[%c0_162, %c0_163] : memref<16x40xf32, #tpu.memory_space<vmem>>, vector<16x40xf32>
    tpu.vector_store %arg21[%c0_162, %c0_163], %369 {strides = array<i32>} : memref<16x40xf32, #tpu.memory_space<vmem>>, vector<16x40xf32>,
    %c0_i32_164 = arith.constant 0 : i32
    %c8_i32_165 = arith.constant 8 : i32
    %371 = arith.muli %c0_i32_164, %c8_i32_165 : i32
    %372 = tpu.assume_multiple %371, 8 : i32
    %c0_i32_166 = arith.constant 0 : i32
    %373 = arith.addi %372, %c0_i32_166 : i32
    %374 = arith.index_cast %373 : i32 to index
    %375 = memref.load %arg0[%374] : memref<48xi32, #tpu.memory_space<smem>>
    %376 = arith.index_cast %375 : i32 to index
    %c0_167 = arith.constant 0 : index
    %377 = vector.load %arg21[%376, %c0_167] : memref<16x40xf32, #tpu.memory_space<vmem>>, vector<1x40xf32>
    %c1_i32_168 = arith.constant 1 : i32
    %378 = arith.addi %372, %c1_i32_168 : i32
    %379 = arith.index_cast %378 : i32 to index
    %380 = memref.load %arg0[%379] : memref<48xi32, #tpu.memory_space<smem>>
    %381 = arith.index_cast %380 : i32 to index
    %c0_169 = arith.constant 0 : index
    %382 = vector.load %arg21[%381, %c0_169] : memref<16x40xf32, #tpu.memory_space<vmem>>, vector<1x40xf32>
    %c2_i32_170 = arith.constant 2 : i32
    %383 = arith.addi %372, %c2_i32_170 : i32
    %384 = arith.index_cast %383 : i32 to index
    %385 = memref.load %arg0[%384] : memref<48xi32, #tpu.memory_space<smem>>
    %386 = arith.index_cast %385 : i32 to index
    %c0_171 = arith.constant 0 : index
    %387 = vector.load %arg21[%386, %c0_171] : memref<16x40xf32, #tpu.memory_space<vmem>>, vector<1x40xf32>
    %c3_i32_172 = arith.constant 3 : i32
    %388 = arith.addi %372, %c3_i32_172 : i32
    %389 = arith.index_cast %388 : i32 to index
    %390 = memref.load %arg0[%389] : memref<48xi32, #tpu.memory_space<smem>>
    %391 = arith.index_cast %390 : i32 to index
    %c0_173 = arith.constant 0 : index
    %392 = vector.load %arg21[%391, %c0_173] : memref<16x40xf32, #tpu.memory_space<vmem>>, vector<1x40xf32>
    %c4_i32_174 = arith.constant 4 : i32
    %393 = arith.addi %372, %c4_i32_174 : i32
    %394 = arith.index_cast %393 : i32 to index
    %395 = memref.load %arg0[%394] : memref<48xi32, #tpu.memory_space<smem>>
    %396 = arith.index_cast %395 : i32 to index
    %c0_175 = arith.constant 0 : index
    %397 = vector.load %arg21[%396, %c0_175] : memref<16x40xf32, #tpu.memory_space<vmem>>, vector<1x40xf32>
    %c5_i32_176 = arith.constant 5 : i32
    %398 = arith.addi %372, %c5_i32_176 : i32
    %399 = arith.index_cast %398 : i32 to index
    %400 = memref.load %arg0[%399] : memref<48xi32, #tpu.memory_space<smem>>
    %401 = arith.index_cast %400 : i32 to index
    %c0_177 = arith.constant 0 : index
    %402 = vector.load %arg21[%401, %c0_177] : memref<16x40xf32, #tpu.memory_space<vmem>>, vector<1x40xf32>
    %c6_i32_178 = arith.constant 6 : i32
    %403 = arith.addi %372, %c6_i32_178 : i32
    %404 = arith.index_cast %403 : i32 to index
    %405 = memref.load %arg0[%404] : memref<48xi32, #tpu.memory_space<smem>>
    %406 = arith.index_cast %405 : i32 to index
    %c0_179 = arith.constant 0 : index
    %407 = vector.load %arg21[%406, %c0_179] : memref<16x40xf32, #tpu.memory_space<vmem>>, vector<1x40xf32>
    %c7_i32_180 = arith.constant 7 : i32
    %408 = arith.addi %372, %c7_i32_180 : i32
    %409 = arith.index_cast %408 : i32 to index
    %410 = memref.load %arg0[%409] : memref<48xi32, #tpu.memory_space<smem>>
    %411 = arith.index_cast %410 : i32 to index
    %c0_181 = arith.constant 0 : index
    %412 = vector.load %arg21[%411, %c0_181] : memref<16x40xf32, #tpu.memory_space<vmem>>, vector<1x40xf32>
    %413 = tpu.concatenate %377, %382, %387, %392, %397, %402, %407, %412 in 0 : vector<1x40xf32>, vector<1x40xf32>, vector<1x40xf32>, vector<1x40xf32>, vector<1x40xf32>, vector<1x40xf32>, vector<1x40xf32>, vector<1x40xf32> -> vector<8x40xf32>
    %414 = arith.index_cast %372 : i32 to index
    %c0_182 = arith.constant 0 : index
    %415 = vector.load %arg22[%414, %c0_182] : memref<48x40xf32, #tpu.memory_space<vmem>>, vector<8x40xf32>
    tpu.vector_store %arg22[%414, %c0_182], %413 {strides = array<i32>} : memref<48x40xf32, #tpu.memory_space<vmem>>, vector<8x40xf32>,
    %c1_i32_183 = arith.constant 1 : i32
    %c8_i32_184 = arith.constant 8 : i32
    %416 = arith.muli %c1_i32_183, %c8_i32_184 : i32
    %417 = tpu.assume_multiple %416, 8 : i32
    %c0_i32_185 = arith.constant 0 : i32
    %418 = arith.addi %417, %c0_i32_185 : i32
    %419 = arith.index_cast %418 : i32 to index
    %420 = memref.load %arg0[%419] : memref<48xi32, #tpu.memory_space<smem>>
    %421 = arith.index_cast %420 : i32 to index
    %c0_186 = arith.constant 0 : index
    %422 = vector.load %arg21[%421, %c0_186] : memref<16x40xf32, #tpu.memory_space<vmem>>, vector<1x40xf32>
    %c1_i32_187 = arith.constant 1 : i32
    %423 = arith.addi %417, %c1_i32_187 : i32
    %424 = arith.index_cast %423 : i32 to index
    %425 = memref.load %arg0[%424] : memref<48xi32, #tpu.memory_space<smem>>
    %426 = arith.index_cast %425 : i32 to index
    %c0_188 = arith.constant 0 : index
    %427 = vector.load %arg21[%426, %c0_188] : memref<16x40xf32, #tpu.memory_space<vmem>>, vector<1x40xf32>
    %c2_i32_189 = arith.constant 2 : i32
    %428 = arith.addi %417, %c2_i32_189 : i32
    %429 = arith.index_cast %428 : i32 to index
    %430 = memref.load %arg0[%429] : memref<48xi32, #tpu.memory_space<smem>>
    %431 = arith.index_cast %430 : i32 to index
    %c0_190 = arith.constant 0 : index
    %432 = vector.load %arg21[%431, %c0_190] : memref<16x40xf32, #tpu.memory_space<vmem>>, vector<1x40xf32>
    %c3_i32_191 = arith.constant 3 : i32
    %433 = arith.addi %417, %c3_i32_191 : i32
    %434 = arith.index_cast %433 : i32 to index
    %435 = memref.load %arg0[%434] : memref<48xi32, #tpu.memory_space<smem>>
    %436 = arith.index_cast %435 : i32 to index
    %c0_192 = arith.constant 0 : index
    %437 = vector.load %arg21[%436, %c0_192] : memref<16x40xf32, #tpu.memory_space<vmem>>, vector<1x40xf32>
    %c4_i32_193 = arith.constant 4 : i32
    %438 = arith.addi %417, %c4_i32_193 : i32
    %439 = arith.index_cast %438 : i32 to index
    %440 = memref.load %arg0[%439] : memref<48xi32, #tpu.memory_space<smem>>
    %441 = arith.index_cast %440 : i32 to index
    %c0_194 = arith.constant 0 : index
    %442 = vector.load %arg21[%441, %c0_194] : memref<16x40xf32, #tpu.memory_space<vmem>>, vector<1x40xf32>
    %c5_i32_195 = arith.constant 5 : i32
    %443 = arith.addi %417, %c5_i32_195 : i32
    %444 = arith.index_cast %443 : i32 to index
    %445 = memref.load %arg0[%444] : memref<48xi32, #tpu.memory_space<smem>>
    %446 = arith.index_cast %445 : i32 to index
    %c0_196 = arith.constant 0 : index
    %447 = vector.load %arg21[%446, %c0_196] : memref<16x40xf32, #tpu.memory_space<vmem>>, vector<1x40xf32>
    %c6_i32_197 = arith.constant 6 : i32
    %448 = arith.addi %417, %c6_i32_197 : i32
    %449 = arith.index_cast %448 : i32 to index
    %450 = memref.load %arg0[%449] : memref<48xi32, #tpu.memory_space<smem>>
    %451 = arith.index_cast %450 : i32 to index
    %c0_198 = arith.constant 0 : index
    %452 = vector.load %arg21[%451, %c0_198] : memref<16x40xf32, #tpu.memory_space<vmem>>, vector<1x40xf32>
    %c7_i32_199 = arith.constant 7 : i32
    %453 = arith.addi %417, %c7_i32_199 : i32
    %454 = arith.index_cast %453 : i32 to index
    %455 = memref.load %arg0[%454] : memref<48xi32, #tpu.memory_space<smem>>
    %456 = arith.index_cast %455 : i32 to index
    %c0_200 = arith.constant 0 : index
    %457 = vector.load %arg21[%456, %c0_200] : memref<16x40xf32, #tpu.memory_space<vmem>>, vector<1x40xf32>
    %458 = tpu.concatenate %422, %427, %432, %437, %442, %447, %452, %457 in 0 : vector<1x40xf32>, vector<1x40xf32>, vector<1x40xf32>, vector<1x40xf32>, vector<1x40xf32>, vector<1x40xf32>, vector<1x40xf32>, vector<1x40xf32> -> vector<8x40xf32>
    %459 = arith.index_cast %417 : i32 to index
    %c0_201 = arith.constant 0 : index
    %460 = vector.load %arg22[%459, %c0_201] : memref<48x40xf32, #tpu.memory_space<vmem>>, vector<8x40xf32>
    tpu.vector_store %arg22[%459, %c0_201], %458 {strides = array<i32>} : memref<48x40xf32, #tpu.memory_space<vmem>>, vector<8x40xf32>,
    %c2_i32_202 = arith.constant 2 : i32
    %c8_i32_203 = arith.constant 8 : i32
    %461 = arith.muli %c2_i32_202, %c8_i32_203 : i32
    %462 = tpu.assume_multiple %461, 8 : i32
    %c0_i32_204 = arith.constant 0 : i32
    %463 = arith.addi %462, %c0_i32_204 : i32
    %464 = arith.index_cast %463 : i32 to index
    %465 = memref.load %arg0[%464] : memref<48xi32, #tpu.memory_space<smem>>
    %466 = arith.index_cast %465 : i32 to index
    %c0_205 = arith.constant 0 : index
    %467 = vector.load %arg21[%466, %c0_205] : memref<16x40xf32, #tpu.memory_space<vmem>>, vector<1x40xf32>
    %c1_i32_206 = arith.constant 1 : i32
    %468 = arith.addi %462, %c1_i32_206 : i32
    %469 = arith.index_cast %468 : i32 to index
    %470 = memref.load %arg0[%469] : memref<48xi32, #tpu.memory_space<smem>>
    %471 = arith.index_cast %470 : i32 to index
    %c0_207 = arith.constant 0 : index
    %472 = vector.load %arg21[%471, %c0_207] : memref<16x40xf32, #tpu.memory_space<vmem>>, vector<1x40xf32>
    %c2_i32_208 = arith.constant 2 : i32
    %473 = arith.addi %462, %c2_i32_208 : i32
    %474 = arith.index_cast %473 : i32 to index
    %475 = memref.load %arg0[%474] : memref<48xi32, #tpu.memory_space<smem>>
    %476 = arith.index_cast %475 : i32 to index
    %c0_209 = arith.constant 0 : index
    %477 = vector.load %arg21[%476, %c0_209] : memref<16x40xf32, #tpu.memory_space<vmem>>, vector<1x40xf32>
    %c3_i32_210 = arith.constant 3 : i32
    %478 = arith.addi %462, %c3_i32_210 : i32
    %479 = arith.index_cast %478 : i32 to index
    %480 = memref.load %arg0[%479] : memref<48xi32, #tpu.memory_space<smem>>
    %481 = arith.index_cast %480 : i32 to index
    %c0_211 = arith.constant 0 : index
    %482 = vector.load %arg21[%481, %c0_211] : memref<16x40xf32, #tpu.memory_space<vmem>>, vector<1x40xf32>
    %c4_i32_212 = arith.constant 4 : i32
    %483 = arith.addi %462, %c4_i32_212 : i32
    %484 = arith.index_cast %483 : i32 to index
    %485 = memref.load %arg0[%484] : memref<48xi32, #tpu.memory_space<smem>>
    %486 = arith.index_cast %485 : i32 to index
    %c0_213 = arith.constant 0 : index
    %487 = vector.load %arg21[%486, %c0_213] : memref<16x40xf32, #tpu.memory_space<vmem>>, vector<1x40xf32>
    %c5_i32_214 = arith.constant 5 : i32
    %488 = arith.addi %462, %c5_i32_214 : i32
    %489 = arith.index_cast %488 : i32 to index
    %490 = memref.load %arg0[%489] : memref<48xi32, #tpu.memory_space<smem>>
    %491 = arith.index_cast %490 : i32 to index
    %c0_215 = arith.constant 0 : index
    %492 = vector.load %arg21[%491, %c0_215] : memref<16x40xf32, #tpu.memory_space<vmem>>, vector<1x40xf32>
    %c6_i32_216 = arith.constant 6 : i32
    %493 = arith.addi %462, %c6_i32_216 : i32
    %494 = arith.index_cast %493 : i32 to index
    %495 = memref.load %arg0[%494] : memref<48xi32, #tpu.memory_space<smem>>
    %496 = arith.index_cast %495 : i32 to index
    %c0_217 = arith.constant 0 : index
    %497 = vector.load %arg21[%496, %c0_217] : memref<16x40xf32, #tpu.memory_space<vmem>>, vector<1x40xf32>
    %c7_i32_218 = arith.constant 7 : i32
    %498 = arith.addi %462, %c7_i32_218 : i32
    %499 = arith.index_cast %498 : i32 to index
    %500 = memref.load %arg0[%499] : memref<48xi32, #tpu.memory_space<smem>>
    %501 = arith.index_cast %500 : i32 to index
    %c0_219 = arith.constant 0 : index
    %502 = vector.load %arg21[%501, %c0_219] : memref<16x40xf32, #tpu.memory_space<vmem>>, vector<1x40xf32>
    %503 = tpu.concatenate %467, %472, %477, %482, %487, %492, %497, %502 in 0 : vector<1x40xf32>, vector<1x40xf32>, vector<1x40xf32>, vector<1x40xf32>, vector<1x40xf32>, vector<1x40xf32>, vector<1x40xf32>, vector<1x40xf32> -> vector<8x40xf32>
    %504 = arith.index_cast %462 : i32 to index
    %c0_220 = arith.constant 0 : index
    %505 = vector.load %arg22[%504, %c0_220] : memref<48x40xf32, #tpu.memory_space<vmem>>, vector<8x40xf32>
    tpu.vector_store %arg22[%504, %c0_220], %503 {strides = array<i32>} : memref<48x40xf32, #tpu.memory_space<vmem>>, vector<8x40xf32>,
    %c3_i32_221 = arith.constant 3 : i32
    %c8_i32_222 = arith.constant 8 : i32
    %506 = arith.muli %c3_i32_221, %c8_i32_222 : i32
    %507 = tpu.assume_multiple %506, 8 : i32
    %c0_i32_223 = arith.constant 0 : i32
    %508 = arith.addi %507, %c0_i32_223 : i32
    %509 = arith.index_cast %508 : i32 to index
    %510 = memref.load %arg0[%509] : memref<48xi32, #tpu.memory_space<smem>>
    %511 = arith.index_cast %510 : i32 to index
    %c0_224 = arith.constant 0 : index
    %512 = vector.load %arg21[%511, %c0_224] : memref<16x40xf32, #tpu.memory_space<vmem>>, vector<1x40xf32>
    %c1_i32_225 = arith.constant 1 : i32
    %513 = arith.addi %507, %c1_i32_225 : i32
    %514 = arith.index_cast %513 : i32 to index
    %515 = memref.load %arg0[%514] : memref<48xi32, #tpu.memory_space<smem>>
    %516 = arith.index_cast %515 : i32 to index
    %c0_226 = arith.constant 0 : index
    %517 = vector.load %arg21[%516, %c0_226] : memref<16x40xf32, #tpu.memory_space<vmem>>, vector<1x40xf32>
    %c2_i32_227 = arith.constant 2 : i32
    %518 = arith.addi %507, %c2_i32_227 : i32
    %519 = arith.index_cast %518 : i32 to index
    %520 = memref.load %arg0[%519] : memref<48xi32, #tpu.memory_space<smem>>
    %521 = arith.index_cast %520 : i32 to index
    %c0_228 = arith.constant 0 : index
    %522 = vector.load %arg21[%521, %c0_228] : memref<16x40xf32, #tpu.memory_space<vmem>>, vector<1x40xf32>
    %c3_i32_229 = arith.constant 3 : i32
    %523 = arith.addi %507, %c3_i32_229 : i32
    %524 = arith.index_cast %523 : i32 to index
    %525 = memref.load %arg0[%524] : memref<48xi32, #tpu.memory_space<smem>>
    %526 = arith.index_cast %525 : i32 to index
    %c0_230 = arith.constant 0 : index
    %527 = vector.load %arg21[%526, %c0_230] : memref<16x40xf32, #tpu.memory_space<vmem>>, vector<1x40xf32>
    %c4_i32_231 = arith.constant 4 : i32
    %528 = arith.addi %507, %c4_i32_231 : i32
    %529 = arith.index_cast %528 : i32 to index
    %530 = memref.load %arg0[%529] : memref<48xi32, #tpu.memory_space<smem>>
    %531 = arith.index_cast %530 : i32 to index
    %c0_232 = arith.constant 0 : index
    %532 = vector.load %arg21[%531, %c0_232] : memref<16x40xf32, #tpu.memory_space<vmem>>, vector<1x40xf32>
    %c5_i32_233 = arith.constant 5 : i32
    %533 = arith.addi %507, %c5_i32_233 : i32
    %534 = arith.index_cast %533 : i32 to index
    %535 = memref.load %arg0[%534] : memref<48xi32, #tpu.memory_space<smem>>
    %536 = arith.index_cast %535 : i32 to index
    %c0_234 = arith.constant 0 : index
    %537 = vector.load %arg21[%536, %c0_234] : memref<16x40xf32, #tpu.memory_space<vmem>>, vector<1x40xf32>
    %c6_i32_235 = arith.constant 6 : i32
    %538 = arith.addi %507, %c6_i32_235 : i32
    %539 = arith.index_cast %538 : i32 to index
    %540 = memref.load %arg0[%539] : memref<48xi32, #tpu.memory_space<smem>>
    %541 = arith.index_cast %540 : i32 to index
    %c0_236 = arith.constant 0 : index
    %542 = vector.load %arg21[%541, %c0_236] : memref<16x40xf32, #tpu.memory_space<vmem>>, vector<1x40xf32>
    %c7_i32_237 = arith.constant 7 : i32
    %543 = arith.addi %507, %c7_i32_237 : i32
    %544 = arith.index_cast %543 : i32 to index
    %545 = memref.load %arg0[%544] : memref<48xi32, #tpu.memory_space<smem>>
    %546 = arith.index_cast %545 : i32 to index
    %c0_238 = arith.constant 0 : index
    %547 = vector.load %arg21[%546, %c0_238] : memref<16x40xf32, #tpu.memory_space<vmem>>, vector<1x40xf32>
    %548 = tpu.concatenate %512, %517, %522, %527, %532, %537, %542, %547 in 0 : vector<1x40xf32>, vector<1x40xf32>, vector<1x40xf32>, vector<1x40xf32>, vector<1x40xf32>, vector<1x40xf32>, vector<1x40xf32>, vector<1x40xf32> -> vector<8x40xf32>
    %549 = arith.index_cast %507 : i32 to index
    %c0_239 = arith.constant 0 : index
    %550 = vector.load %arg22[%549, %c0_239] : memref<48x40xf32, #tpu.memory_space<vmem>>, vector<8x40xf32>
    tpu.vector_store %arg22[%549, %c0_239], %548 {strides = array<i32>} : memref<48x40xf32, #tpu.memory_space<vmem>>, vector<8x40xf32>,
    %c4_i32_240 = arith.constant 4 : i32
    %c8_i32_241 = arith.constant 8 : i32
    %551 = arith.muli %c4_i32_240, %c8_i32_241 : i32
    %552 = tpu.assume_multiple %551, 8 : i32
    %c0_i32_242 = arith.constant 0 : i32
    %553 = arith.addi %552, %c0_i32_242 : i32
    %554 = arith.index_cast %553 : i32 to index
    %555 = memref.load %arg0[%554] : memref<48xi32, #tpu.memory_space<smem>>
    %556 = arith.index_cast %555 : i32 to index
    %c0_243 = arith.constant 0 : index
    %557 = vector.load %arg21[%556, %c0_243] : memref<16x40xf32, #tpu.memory_space<vmem>>, vector<1x40xf32>
    %c1_i32_244 = arith.constant 1 : i32
    %558 = arith.addi %552, %c1_i32_244 : i32
    %559 = arith.index_cast %558 : i32 to index
    %560 = memref.load %arg0[%559] : memref<48xi32, #tpu.memory_space<smem>>
    %561 = arith.index_cast %560 : i32 to index
    %c0_245 = arith.constant 0 : index
    %562 = vector.load %arg21[%561, %c0_245] : memref<16x40xf32, #tpu.memory_space<vmem>>, vector<1x40xf32>
    %c2_i32_246 = arith.constant 2 : i32
    %563 = arith.addi %552, %c2_i32_246 : i32
    %564 = arith.index_cast %563 : i32 to index
    %565 = memref.load %arg0[%564] : memref<48xi32, #tpu.memory_space<smem>>
    %566 = arith.index_cast %565 : i32 to index
    %c0_247 = arith.constant 0 : index
    %567 = vector.load %arg21[%566, %c0_247] : memref<16x40xf32, #tpu.memory_space<vmem>>, vector<1x40xf32>
    %c3_i32_248 = arith.constant 3 : i32
    %568 = arith.addi %552, %c3_i32_248 : i32
    %569 = arith.index_cast %568 : i32 to index
    %570 = memref.load %arg0[%569] : memref<48xi32, #tpu.memory_space<smem>>
    %571 = arith.index_cast %570 : i32 to index
    %c0_249 = arith.constant 0 : index
    %572 = vector.load %arg21[%571, %c0_249] : memref<16x40xf32, #tpu.memory_space<vmem>>, vector<1x40xf32>
    %c4_i32_250 = arith.constant 4 : i32
    %573 = arith.addi %552, %c4_i32_250 : i32
    %574 = arith.index_cast %573 : i32 to index
    %575 = memref.load %arg0[%574] : memref<48xi32, #tpu.memory_space<smem>>
    %576 = arith.index_cast %575 : i32 to index
    %c0_251 = arith.constant 0 : index
    %577 = vector.load %arg21[%576, %c0_251] : memref<16x40xf32, #tpu.memory_space<vmem>>, vector<1x40xf32>
    %c5_i32_252 = arith.constant 5 : i32
    %578 = arith.addi %552, %c5_i32_252 : i32
    %579 = arith.index_cast %578 : i32 to index
    %580 = memref.load %arg0[%579] : memref<48xi32, #tpu.memory_space<smem>>
    %581 = arith.index_cast %580 : i32 to index
    %c0_253 = arith.constant 0 : index
    %582 = vector.load %arg21[%581, %c0_253] : memref<16x40xf32, #tpu.memory_space<vmem>>, vector<1x40xf32>
    %c6_i32_254 = arith.constant 6 : i32
    %583 = arith.addi %552, %c6_i32_254 : i32
    %584 = arith.index_cast %583 : i32 to index
    %585 = memref.load %arg0[%584] : memref<48xi32, #tpu.memory_space<smem>>
    %586 = arith.index_cast %585 : i32 to index
    %c0_255 = arith.constant 0 : index
    %587 = vector.load %arg21[%586, %c0_255] : memref<16x40xf32, #tpu.memory_space<vmem>>, vector<1x40xf32>
    %c7_i32_256 = arith.constant 7 : i32
    %588 = arith.addi %552, %c7_i32_256 : i32
    %589 = arith.index_cast %588 : i32 to index
    %590 = memref.load %arg0[%589] : memref<48xi32, #tpu.memory_space<smem>>
    %591 = arith.index_cast %590 : i32 to index
    %c0_257 = arith.constant 0 : index
    %592 = vector.load %arg21[%591, %c0_257] : memref<16x40xf32, #tpu.memory_space<vmem>>, vector<1x40xf32>
    %593 = tpu.concatenate %557, %562, %567, %572, %577, %582, %587, %592 in 0 : vector<1x40xf32>, vector<1x40xf32>, vector<1x40xf32>, vector<1x40xf32>, vector<1x40xf32>, vector<1x40xf32>, vector<1x40xf32>, vector<1x40xf32> -> vector<8x40xf32>
    %594 = arith.index_cast %552 : i32 to index
    %c0_258 = arith.constant 0 : index
    %595 = vector.load %arg22[%594, %c0_258] : memref<48x40xf32, #tpu.memory_space<vmem>>, vector<8x40xf32>
    tpu.vector_store %arg22[%594, %c0_258], %593 {strides = array<i32>} : memref<48x40xf32, #tpu.memory_space<vmem>>, vector<8x40xf32>,
    %c5_i32_259 = arith.constant 5 : i32
    %c8_i32_260 = arith.constant 8 : i32
    %596 = arith.muli %c5_i32_259, %c8_i32_260 : i32
    %597 = tpu.assume_multiple %596, 8 : i32
    %c0_i32_261 = arith.constant 0 : i32
    %598 = arith.addi %597, %c0_i32_261 : i32
    %599 = arith.index_cast %598 : i32 to index
    %600 = memref.load %arg0[%599] : memref<48xi32, #tpu.memory_space<smem>>
    %601 = arith.index_cast %600 : i32 to index
    %c0_262 = arith.constant 0 : index
    %602 = vector.load %arg21[%601, %c0_262] : memref<16x40xf32, #tpu.memory_space<vmem>>, vector<1x40xf32>
    %c1_i32_263 = arith.constant 1 : i32
    %603 = arith.addi %597, %c1_i32_263 : i32
    %604 = arith.index_cast %603 : i32 to index
    %605 = memref.load %arg0[%604] : memref<48xi32, #tpu.memory_space<smem>>
    %606 = arith.index_cast %605 : i32 to index
    %c0_264 = arith.constant 0 : index
    %607 = vector.load %arg21[%606, %c0_264] : memref<16x40xf32, #tpu.memory_space<vmem>>, vector<1x40xf32>
    %c2_i32_265 = arith.constant 2 : i32
    %608 = arith.addi %597, %c2_i32_265 : i32
    %609 = arith.index_cast %608 : i32 to index
    %610 = memref.load %arg0[%609] : memref<48xi32, #tpu.memory_space<smem>>
    %611 = arith.index_cast %610 : i32 to index
    %c0_266 = arith.constant 0 : index
    %612 = vector.load %arg21[%611, %c0_266] : memref<16x40xf32, #tpu.memory_space<vmem>>, vector<1x40xf32>
    %c3_i32_267 = arith.constant 3 : i32
    %613 = arith.addi %597, %c3_i32_267 : i32
    %614 = arith.index_cast %613 : i32 to index
    %615 = memref.load %arg0[%614] : memref<48xi32, #tpu.memory_space<smem>>
    %616 = arith.index_cast %615 : i32 to index
    %c0_268 = arith.constant 0 : index
    %617 = vector.load %arg21[%616, %c0_268] : memref<16x40xf32, #tpu.memory_space<vmem>>, vector<1x40xf32>
    %c4_i32_269 = arith.constant 4 : i32
    %618 = arith.addi %597, %c4_i32_269 : i32
    %619 = arith.index_cast %618 : i32 to index
    %620 = memref.load %arg0[%619] : memref<48xi32, #tpu.memory_space<smem>>
    %621 = arith.index_cast %620 : i32 to index
    %c0_270 = arith.constant 0 : index
    %622 = vector.load %arg21[%621, %c0_270] : memref<16x40xf32, #tpu.memory_space<vmem>>, vector<1x40xf32>
    %c5_i32_271 = arith.constant 5 : i32
    %623 = arith.addi %597, %c5_i32_271 : i32
    %624 = arith.index_cast %623 : i32 to index
    %625 = memref.load %arg0[%624] : memref<48xi32, #tpu.memory_space<smem>>
    %626 = arith.index_cast %625 : i32 to index
    %c0_272 = arith.constant 0 : index
    %627 = vector.load %arg21[%626, %c0_272] : memref<16x40xf32, #tpu.memory_space<vmem>>, vector<1x40xf32>
    %c6_i32_273 = arith.constant 6 : i32
    %628 = arith.addi %597, %c6_i32_273 : i32
    %629 = arith.index_cast %628 : i32 to index
    %630 = memref.load %arg0[%629] : memref<48xi32, #tpu.memory_space<smem>>
    %631 = arith.index_cast %630 : i32 to index
    %c0_274 = arith.constant 0 : index
    %632 = vector.load %arg21[%631, %c0_274] : memref<16x40xf32, #tpu.memory_space<vmem>>, vector<1x40xf32>
    %c7_i32_275 = arith.constant 7 : i32
    %633 = arith.addi %597, %c7_i32_275 : i32
    %634 = arith.index_cast %633 : i32 to index
    %635 = memref.load %arg0[%634] : memref<48xi32, #tpu.memory_space<smem>>
    %636 = arith.index_cast %635 : i32 to index
    %c0_276 = arith.constant 0 : index
    %637 = vector.load %arg21[%636, %c0_276] : memref<16x40xf32, #tpu.memory_space<vmem>>, vector<1x40xf32>
    %638 = tpu.concatenate %602, %607, %612, %617, %622, %627, %632, %637 in 0 : vector<1x40xf32>, vector<1x40xf32>, vector<1x40xf32>, vector<1x40xf32>, vector<1x40xf32>, vector<1x40xf32>, vector<1x40xf32>, vector<1x40xf32> -> vector<8x40xf32>
    %639 = arith.index_cast %597 : i32 to index
    %c0_277 = arith.constant 0 : index
    %640 = vector.load %arg22[%639, %c0_277] : memref<48x40xf32, #tpu.memory_space<vmem>>, vector<8x40xf32>
    tpu.vector_store %arg22[%639, %c0_277], %638 {strides = array<i32>} : memref<48x40xf32, #tpu.memory_space<vmem>>, vector<8x40xf32>,
    %c6_i32_278 = arith.constant 6 : i32
    %c0_279 = arith.constant 0 : index
    %c0_280 = arith.constant 0 : index
    %641 = vector.load %arg22[%c0_279, %c0_280] : memref<48x40xf32, #tpu.memory_space<vmem>>, vector<48x40xf32>
    %642 = vector.extract_strided_slice %641 {offsets = [0, 0], sizes = [48, 32], strides = [1, 1]} : vector<48x40xf32> to vector<48x32xf32>
    %643 = vector.extract_strided_slice %641 {offsets = [0, 32], sizes = [48, 4], strides = [1, 1]} : vector<48x40xf32> to vector<48x4xf32>
    %c0_281 = arith.constant 0 : index
    %c36_282 = arith.constant 36 : index
    %644 = vector.load %arg21[%c0_281, %c36_282] : memref<16x40xf32, #tpu.memory_space<vmem>>, vector<16x4xf32>
    %cst_283 = arith.constant dense<0.000000e+00> : vector<48x4xf32>
    %645 = tpu.matmul %11, %644, %cst_283 {dimension_numbers = #tpu.dot_dimension_numbers<[1], [0], [0], [1], [0, 0, 1, 1], [], []>} : vector<48x16xf32>, vector<16x4xf32>, vector<48x4xf32> -> vector<48x4xf32>
    %646 = arith.addf %643, %645 : vector<48x4xf32>
    %cst_284 = arith.constant 0.000000e+00 : f32
    %647 = vector.broadcast %cst_284 : f32 to vector<48x4xf32>
    %648 = arith.cmpf ogt, %646, %647 : vector<48x4xf32>
    %cst_285 = arith.constant 2.000000e-01 : f32
    %649 = vector.broadcast %cst_285 : f32 to vector<48x4xf32>
    %650 = arith.mulf %649, %646 : vector<48x4xf32>
    %651 = arith.select %648, %646, %650 : vector<48x4xi1>, vector<48x4xf32>
    %652 = vector.shape_cast %651 : vector<48x4xf32> to vector<1x48x4xf32>
    %cst_286 = arith.constant dense<0xFF800000> : vector<1xf32>
    %653 = vector.multi_reduction <maximumf>, %652, %cst_286 [1, 2] : vector<1x48x4xf32> to vector<1xf32>
    %654 = vector.shape_cast %653 : vector<1xf32> to vector<1x1x1xf32>
    %655 = vector.extract %654[0, 0, 0] : f32 from vector<1x1x1xf32>
    %656 = vector.broadcast %655 : f32 to vector<48x4xf32>
    %657 = arith.subf %651, %656 : vector<48x4xf32>
    %658 = math.exp %657 : vector<48x4xf32>
    %cst_287 = arith.constant dense<0.000000e+00> : vector<48x32xf32>
    %659 = tpu.matmul %658, %24, %cst_287 {dimension_numbers = #tpu.dot_dimension_numbers<[1], [0], [0], [1], [0, 0, 1, 1], [], []>} : vector<48x4xf32>, vector<4x32xf32>, vector<48x32xf32> -> vector<48x32xf32>
    %660 = arith.mulf %642, %659 : vector<48x32xf32>
    %cst_288 = arith.constant dense<0.000000e+00> : vector<16x4xf32>
    %661 = tpu.matmul %5, %658, %cst_288 {dimension_numbers = #tpu.dot_dimension_numbers<[1], [0], [0], [1], [0, 0, 1, 1], [], []>} : vector<16x48xf32>, vector<48x4xf32>, vector<16x4xf32> -> vector<16x4xf32>
    %cst_289 = arith.constant dense<0.000000e+00> : vector<16x32xf32>
    %662 = tpu.matmul %5, %660, %cst_289 {dimension_numbers = #tpu.dot_dimension_numbers<[1], [0], [0], [1], [0, 0, 1, 1], [], []>} : vector<16x48xf32>, vector<48x32xf32>, vector<16x32xf32> -> vector<16x32xf32>
    %cst_290 = arith.constant 1.000000e-16 : f32
    %663 = vector.broadcast %cst_290 : f32 to vector<16x4xf32>
    %664 = arith.addf %661, %663 : vector<16x4xf32>
    %665 = tpu.reciprocal %664 {approx = true} : vector<16x4xf32> -> vector<16x4xf32>
    %cst_291 = arith.constant dense<0.000000e+00> : vector<48x4xf32>
    %666 = tpu.matmul %11, %665, %cst_291 {dimension_numbers = #tpu.dot_dimension_numbers<[1], [0], [0], [1], [0, 0, 1, 1], [], []>} : vector<48x16xf32>, vector<16x4xf32>, vector<48x4xf32> -> vector<48x4xf32>
    %667 = arith.mulf %658, %666 : vector<48x4xf32>
    %c1_292 = arith.constant 1 : index
    %c0_293 = arith.constant 0 : index
    %c0_294 = arith.constant 0 : index
    %668 = vector.load %arg20[%c1_292, %c0_293, %c0_294] : memref<3x48x4xf32, #tpu.memory_space<vmem>>, vector<1x48x4xf32>
    %669 = vector.shape_cast %668 : vector<1x48x4xf32> to vector<48x4xf32>
    %670 = vector.shape_cast %667 : vector<48x4xf32> to vector<1x48x4xf32>
    tpu.vector_store %arg20[%c1_292, %c0_293, %c0_294], %670 {strides = array<i32>} : memref<3x48x4xf32, #tpu.memory_space<vmem>>, vector<1x48x4xf32>,
    %cst_295 = arith.constant dense<0.000000e+00> : vector<16x32xf32>
    %671 = tpu.matmul %665, %24, %cst_295 {dimension_numbers = #tpu.dot_dimension_numbers<[1], [0], [0], [1], [0, 0, 1, 1], [], []>} : vector<16x4xf32>, vector<4x32xf32>, vector<16x32xf32> -> vector<16x32xf32>
    %672 = arith.mulf %662, %671 : vector<16x32xf32>
    %c1_296 = arith.constant 1 : index
    %c0_297 = arith.constant 0 : index
    %c0_298 = arith.constant 0 : index
    %673 = vector.load %arg10[%c1_296, %c0_297, %c0_298] : memref<3x1x32xf32, #tpu.memory_space<vmem>>, vector<1x1x32xf32>
    %674 = vector.shape_cast %673 : vector<1x1x32xf32> to vector<1x32xf32>
    %675 = vector.broadcast %674 : vector<1x32xf32> to vector<16x32xf32>
    %676 = arith.addf %672, %675 : vector<16x32xf32>
    %cst_299 = arith.constant 0.000000e+00 : f32
    %677 = vector.broadcast %cst_299 : f32 to vector<16x32xf32>
    %678 = arith.maximumf %676, %677 : vector<16x32xf32>
    %c2 = arith.constant 2 : index
    %c0_300 = arith.constant 0 : index
    %c0_301 = arith.constant 0 : index
    %679 = vector.load %arg7[%c2, %c0_300, %c0_301] : memref<3x1x32xf32, #tpu.memory_space<vmem>>, vector<1x1x32xf32>
    %680 = vector.shape_cast %679 : vector<1x1x32xf32> to vector<1x32xf32>
    %681 = vector.broadcast %680 : vector<1x32xf32> to vector<16x32xf32>
    %682 = arith.mulf %678, %681 : vector<16x32xf32>
    %c2_302 = arith.constant 2 : index
    %c0_303 = arith.constant 0 : index
    %c0_304 = arith.constant 0 : index
    %683 = vector.load %arg8[%c2_302, %c0_303, %c0_304] : memref<3x1x32xf32, #tpu.memory_space<vmem>>, vector<1x1x32xf32>
    %684 = vector.shape_cast %683 : vector<1x1x32xf32> to vector<1x32xf32>
    %685 = vector.broadcast %684 : vector<1x32xf32> to vector<16x32xf32>
    %686 = arith.addf %682, %685 : vector<16x32xf32>
    %687 = arith.truncf %686 : vector<16x32xf32> to vector<16x32xbf16>
    %c2_305 = arith.constant 2 : index
    %c0_306 = arith.constant 0 : index
    %c0_307 = arith.constant 0 : index
    %688 = vector.load %arg9[%c2_305, %c0_306, %c0_307] : memref<3x32x40xbf16, #tpu.memory_space<vmem>>, vector<1x32x40xbf16>
    %689 = vector.shape_cast %688 : vector<1x32x40xbf16> to vector<32x40xbf16>
    %cst_308 = arith.constant dense<0.000000e+00> : vector<16x40xf32>
    %690 = tpu.matmul %687, %689, %cst_308 {dimension_numbers = #tpu.dot_dimension_numbers<[1], [0], [0], [1], [0, 0, 1, 1], [], []>} : vector<16x32xbf16>, vector<32x40xbf16>, vector<16x40xf32> -> vector<16x40xf32>
    %c0_309 = arith.constant 0 : index
    %c0_310 = arith.constant 0 : index
    %691 = vector.load %arg21[%c0_309, %c0_310] : memref<16x40xf32, #tpu.memory_space<vmem>>, vector<16x40xf32>
    tpu.vector_store %arg21[%c0_309, %c0_310], %690 {strides = array<i32>} : memref<16x40xf32, #tpu.memory_space<vmem>>, vector<16x40xf32>,
    %c0_i32_311 = arith.constant 0 : i32
    %c8_i32_312 = arith.constant 8 : i32
    %692 = arith.muli %c0_i32_311, %c8_i32_312 : i32
    %693 = tpu.assume_multiple %692, 8 : i32
    %c0_i32_313 = arith.constant 0 : i32
    %694 = arith.addi %693, %c0_i32_313 : i32
    %695 = arith.index_cast %694 : i32 to index
    %696 = memref.load %arg0[%695] : memref<48xi32, #tpu.memory_space<smem>>
    %697 = arith.index_cast %696 : i32 to index
    %c0_314 = arith.constant 0 : index
    %698 = vector.load %arg21[%697, %c0_314] : memref<16x40xf32, #tpu.memory_space<vmem>>, vector<1x40xf32>
    %c1_i32_315 = arith.constant 1 : i32
    %699 = arith.addi %693, %c1_i32_315 : i32
    %700 = arith.index_cast %699 : i32 to index
    %701 = memref.load %arg0[%700] : memref<48xi32, #tpu.memory_space<smem>>
    %702 = arith.index_cast %701 : i32 to index
    %c0_316 = arith.constant 0 : index
    %703 = vector.load %arg21[%702, %c0_316] : memref<16x40xf32, #tpu.memory_space<vmem>>, vector<1x40xf32>
    %c2_i32_317 = arith.constant 2 : i32
    %704 = arith.addi %693, %c2_i32_317 : i32
    %705 = arith.index_cast %704 : i32 to index
    %706 = memref.load %arg0[%705] : memref<48xi32, #tpu.memory_space<smem>>
    %707 = arith.index_cast %706 : i32 to index
    %c0_318 = arith.constant 0 : index
    %708 = vector.load %arg21[%707, %c0_318] : memref<16x40xf32, #tpu.memory_space<vmem>>, vector<1x40xf32>
    %c3_i32_319 = arith.constant 3 : i32
    %709 = arith.addi %693, %c3_i32_319 : i32
    %710 = arith.index_cast %709 : i32 to index
    %711 = memref.load %arg0[%710] : memref<48xi32, #tpu.memory_space<smem>>
    %712 = arith.index_cast %711 : i32 to index
    %c0_320 = arith.constant 0 : index
    %713 = vector.load %arg21[%712, %c0_320] : memref<16x40xf32, #tpu.memory_space<vmem>>, vector<1x40xf32>
    %c4_i32_321 = arith.constant 4 : i32
    %714 = arith.addi %693, %c4_i32_321 : i32
    %715 = arith.index_cast %714 : i32 to index
    %716 = memref.load %arg0[%715] : memref<48xi32, #tpu.memory_space<smem>>
    %717 = arith.index_cast %716 : i32 to index
    %c0_322 = arith.constant 0 : index
    %718 = vector.load %arg21[%717, %c0_322] : memref<16x40xf32, #tpu.memory_space<vmem>>, vector<1x40xf32>
    %c5_i32_323 = arith.constant 5 : i32
    %719 = arith.addi %693, %c5_i32_323 : i32
    %720 = arith.index_cast %719 : i32 to index
    %721 = memref.load %arg0[%720] : memref<48xi32, #tpu.memory_space<smem>>
    %722 = arith.index_cast %721 : i32 to index
    %c0_324 = arith.constant 0 : index
    %723 = vector.load %arg21[%722, %c0_324] : memref<16x40xf32, #tpu.memory_space<vmem>>, vector<1x40xf32>
    %c6_i32_325 = arith.constant 6 : i32
    %724 = arith.addi %693, %c6_i32_325 : i32
    %725 = arith.index_cast %724 : i32 to index
    %726 = memref.load %arg0[%725] : memref<48xi32, #tpu.memory_space<smem>>
    %727 = arith.index_cast %726 : i32 to index
    %c0_326 = arith.constant 0 : index
    %728 = vector.load %arg21[%727, %c0_326] : memref<16x40xf32, #tpu.memory_space<vmem>>, vector<1x40xf32>
    %c7_i32_327 = arith.constant 7 : i32
    %729 = arith.addi %693, %c7_i32_327 : i32
    %730 = arith.index_cast %729 : i32 to index
    %731 = memref.load %arg0[%730] : memref<48xi32, #tpu.memory_space<smem>>
    %732 = arith.index_cast %731 : i32 to index
    %c0_328 = arith.constant 0 : index
    %733 = vector.load %arg21[%732, %c0_328] : memref<16x40xf32, #tpu.memory_space<vmem>>, vector<1x40xf32>
    %734 = tpu.concatenate %698, %703, %708, %713, %718, %723, %728, %733 in 0 : vector<1x40xf32>, vector<1x40xf32>, vector<1x40xf32>, vector<1x40xf32>, vector<1x40xf32>, vector<1x40xf32>, vector<1x40xf32>, vector<1x40xf32> -> vector<8x40xf32>
    %735 = arith.index_cast %693 : i32 to index
    %c0_329 = arith.constant 0 : index
    %736 = vector.load %arg22[%735, %c0_329] : memref<48x40xf32, #tpu.memory_space<vmem>>, vector<8x40xf32>
    tpu.vector_store %arg22[%735, %c0_329], %734 {strides = array<i32>} : memref<48x40xf32, #tpu.memory_space<vmem>>, vector<8x40xf32>,
    %c1_i32_330 = arith.constant 1 : i32
    %c8_i32_331 = arith.constant 8 : i32
    %737 = arith.muli %c1_i32_330, %c8_i32_331 : i32
    %738 = tpu.assume_multiple %737, 8 : i32
    %c0_i32_332 = arith.constant 0 : i32
    %739 = arith.addi %738, %c0_i32_332 : i32
    %740 = arith.index_cast %739 : i32 to index
    %741 = memref.load %arg0[%740] : memref<48xi32, #tpu.memory_space<smem>>
    %742 = arith.index_cast %741 : i32 to index
    %c0_333 = arith.constant 0 : index
    %743 = vector.load %arg21[%742, %c0_333] : memref<16x40xf32, #tpu.memory_space<vmem>>, vector<1x40xf32>
    %c1_i32_334 = arith.constant 1 : i32
    %744 = arith.addi %738, %c1_i32_334 : i32
    %745 = arith.index_cast %744 : i32 to index
    %746 = memref.load %arg0[%745] : memref<48xi32, #tpu.memory_space<smem>>
    %747 = arith.index_cast %746 : i32 to index
    %c0_335 = arith.constant 0 : index
    %748 = vector.load %arg21[%747, %c0_335] : memref<16x40xf32, #tpu.memory_space<vmem>>, vector<1x40xf32>
    %c2_i32_336 = arith.constant 2 : i32
    %749 = arith.addi %738, %c2_i32_336 : i32
    %750 = arith.index_cast %749 : i32 to index
    %751 = memref.load %arg0[%750] : memref<48xi32, #tpu.memory_space<smem>>
    %752 = arith.index_cast %751 : i32 to index
    %c0_337 = arith.constant 0 : index
    %753 = vector.load %arg21[%752, %c0_337] : memref<16x40xf32, #tpu.memory_space<vmem>>, vector<1x40xf32>
    %c3_i32_338 = arith.constant 3 : i32
    %754 = arith.addi %738, %c3_i32_338 : i32
    %755 = arith.index_cast %754 : i32 to index
    %756 = memref.load %arg0[%755] : memref<48xi32, #tpu.memory_space<smem>>
    %757 = arith.index_cast %756 : i32 to index
    %c0_339 = arith.constant 0 : index
    %758 = vector.load %arg21[%757, %c0_339] : memref<16x40xf32, #tpu.memory_space<vmem>>, vector<1x40xf32>
    %c4_i32_340 = arith.constant 4 : i32
    %759 = arith.addi %738, %c4_i32_340 : i32
    %760 = arith.index_cast %759 : i32 to index
    %761 = memref.load %arg0[%760] : memref<48xi32, #tpu.memory_space<smem>>
    %762 = arith.index_cast %761 : i32 to index
    %c0_341 = arith.constant 0 : index
    %763 = vector.load %arg21[%762, %c0_341] : memref<16x40xf32, #tpu.memory_space<vmem>>, vector<1x40xf32>
    %c5_i32_342 = arith.constant 5 : i32
    %764 = arith.addi %738, %c5_i32_342 : i32
    %765 = arith.index_cast %764 : i32 to index
    %766 = memref.load %arg0[%765] : memref<48xi32, #tpu.memory_space<smem>>
    %767 = arith.index_cast %766 : i32 to index
    %c0_343 = arith.constant 0 : index
    %768 = vector.load %arg21[%767, %c0_343] : memref<16x40xf32, #tpu.memory_space<vmem>>, vector<1x40xf32>
    %c6_i32_344 = arith.constant 6 : i32
    %769 = arith.addi %738, %c6_i32_344 : i32
    %770 = arith.index_cast %769 : i32 to index
    %771 = memref.load %arg0[%770] : memref<48xi32, #tpu.memory_space<smem>>
    %772 = arith.index_cast %771 : i32 to index
    %c0_345 = arith.constant 0 : index
    %773 = vector.load %arg21[%772, %c0_345] : memref<16x40xf32, #tpu.memory_space<vmem>>, vector<1x40xf32>
    %c7_i32_346 = arith.constant 7 : i32
    %774 = arith.addi %738, %c7_i32_346 : i32
    %775 = arith.index_cast %774 : i32 to index
    %776 = memref.load %arg0[%775] : memref<48xi32, #tpu.memory_space<smem>>
    %777 = arith.index_cast %776 : i32 to index
    %c0_347 = arith.constant 0 : index
    %778 = vector.load %arg21[%777, %c0_347] : memref<16x40xf32, #tpu.memory_space<vmem>>, vector<1x40xf32>
    %779 = tpu.concatenate %743, %748, %753, %758, %763, %768, %773, %778 in 0 : vector<1x40xf32>, vector<1x40xf32>, vector<1x40xf32>, vector<1x40xf32>, vector<1x40xf32>, vector<1x40xf32>, vector<1x40xf32>, vector<1x40xf32> -> vector<8x40xf32>
    %780 = arith.index_cast %738 : i32 to index
    %c0_348 = arith.constant 0 : index
    %781 = vector.load %arg22[%780, %c0_348] : memref<48x40xf32, #tpu.memory_space<vmem>>, vector<8x40xf32>
    tpu.vector_store %arg22[%780, %c0_348], %779 {strides = array<i32>} : memref<48x40xf32, #tpu.memory_space<vmem>>, vector<8x40xf32>,
    %c2_i32_349 = arith.constant 2 : i32
    %c8_i32_350 = arith.constant 8 : i32
    %782 = arith.muli %c2_i32_349, %c8_i32_350 : i32
    %783 = tpu.assume_multiple %782, 8 : i32
    %c0_i32_351 = arith.constant 0 : i32
    %784 = arith.addi %783, %c0_i32_351 : i32
    %785 = arith.index_cast %784 : i32 to index
    %786 = memref.load %arg0[%785] : memref<48xi32, #tpu.memory_space<smem>>
    %787 = arith.index_cast %786 : i32 to index
    %c0_352 = arith.constant 0 : index
    %788 = vector.load %arg21[%787, %c0_352] : memref<16x40xf32, #tpu.memory_space<vmem>>, vector<1x40xf32>
    %c1_i32_353 = arith.constant 1 : i32
    %789 = arith.addi %783, %c1_i32_353 : i32
    %790 = arith.index_cast %789 : i32 to index
    %791 = memref.load %arg0[%790] : memref<48xi32, #tpu.memory_space<smem>>
    %792 = arith.index_cast %791 : i32 to index
    %c0_354 = arith.constant 0 : index
    %793 = vector.load %arg21[%792, %c0_354] : memref<16x40xf32, #tpu.memory_space<vmem>>, vector<1x40xf32>
    %c2_i32_355 = arith.constant 2 : i32
    %794 = arith.addi %783, %c2_i32_355 : i32
    %795 = arith.index_cast %794 : i32 to index
    %796 = memref.load %arg0[%795] : memref<48xi32, #tpu.memory_space<smem>>
    %797 = arith.index_cast %796 : i32 to index
    %c0_356 = arith.constant 0 : index
    %798 = vector.load %arg21[%797, %c0_356] : memref<16x40xf32, #tpu.memory_space<vmem>>, vector<1x40xf32>
    %c3_i32_357 = arith.constant 3 : i32
    %799 = arith.addi %783, %c3_i32_357 : i32
    %800 = arith.index_cast %799 : i32 to index
    %801 = memref.load %arg0[%800] : memref<48xi32, #tpu.memory_space<smem>>
    %802 = arith.index_cast %801 : i32 to index
    %c0_358 = arith.constant 0 : index
    %803 = vector.load %arg21[%802, %c0_358] : memref<16x40xf32, #tpu.memory_space<vmem>>, vector<1x40xf32>
    %c4_i32_359 = arith.constant 4 : i32
    %804 = arith.addi %783, %c4_i32_359 : i32
    %805 = arith.index_cast %804 : i32 to index
    %806 = memref.load %arg0[%805] : memref<48xi32, #tpu.memory_space<smem>>
    %807 = arith.index_cast %806 : i32 to index
    %c0_360 = arith.constant 0 : index
    %808 = vector.load %arg21[%807, %c0_360] : memref<16x40xf32, #tpu.memory_space<vmem>>, vector<1x40xf32>
    %c5_i32_361 = arith.constant 5 : i32
    %809 = arith.addi %783, %c5_i32_361 : i32
    %810 = arith.index_cast %809 : i32 to index
    %811 = memref.load %arg0[%810] : memref<48xi32, #tpu.memory_space<smem>>
    %812 = arith.index_cast %811 : i32 to index
    %c0_362 = arith.constant 0 : index
    %813 = vector.load %arg21[%812, %c0_362] : memref<16x40xf32, #tpu.memory_space<vmem>>, vector<1x40xf32>
    %c6_i32_363 = arith.constant 6 : i32
    %814 = arith.addi %783, %c6_i32_363 : i32
    %815 = arith.index_cast %814 : i32 to index
    %816 = memref.load %arg0[%815] : memref<48xi32, #tpu.memory_space<smem>>
    %817 = arith.index_cast %816 : i32 to index
    %c0_364 = arith.constant 0 : index
    %818 = vector.load %arg21[%817, %c0_364] : memref<16x40xf32, #tpu.memory_space<vmem>>, vector<1x40xf32>
    %c7_i32_365 = arith.constant 7 : i32
    %819 = arith.addi %783, %c7_i32_365 : i32
    %820 = arith.index_cast %819 : i32 to index
    %821 = memref.load %arg0[%820] : memref<48xi32, #tpu.memory_space<smem>>
    %822 = arith.index_cast %821 : i32 to index
    %c0_366 = arith.constant 0 : index
    %823 = vector.load %arg21[%822, %c0_366] : memref<16x40xf32, #tpu.memory_space<vmem>>, vector<1x40xf32>
    %824 = tpu.concatenate %788, %793, %798, %803, %808, %813, %818, %823 in 0 : vector<1x40xf32>, vector<1x40xf32>, vector<1x40xf32>, vector<1x40xf32>, vector<1x40xf32>, vector<1x40xf32>, vector<1x40xf32>, vector<1x40xf32> -> vector<8x40xf32>
    %825 = arith.index_cast %783 : i32 to index
    %c0_367 = arith.constant 0 : index
    %826 = vector.load %arg22[%825, %c0_367] : memref<48x40xf32, #tpu.memory_space<vmem>>, vector<8x40xf32>
    tpu.vector_store %arg22[%825, %c0_367], %824 {strides = array<i32>} : memref<48x40xf32, #tpu.memory_space<vmem>>, vector<8x40xf32>,
    %c3_i32_368 = arith.constant 3 : i32
    %c8_i32_369 = arith.constant 8 : i32
    %827 = arith.muli %c3_i32_368, %c8_i32_369 : i32
    %828 = tpu.assume_multiple %827, 8 : i32
    %c0_i32_370 = arith.constant 0 : i32
    %829 = arith.addi %828, %c0_i32_370 : i32
    %830 = arith.index_cast %829 : i32 to index
    %831 = memref.load %arg0[%830] : memref<48xi32, #tpu.memory_space<smem>>
    %832 = arith.index_cast %831 : i32 to index
    %c0_371 = arith.constant 0 : index
    %833 = vector.load %arg21[%832, %c0_371] : memref<16x40xf32, #tpu.memory_space<vmem>>, vector<1x40xf32>
    %c1_i32_372 = arith.constant 1 : i32
    %834 = arith.addi %828, %c1_i32_372 : i32
    %835 = arith.index_cast %834 : i32 to index
    %836 = memref.load %arg0[%835] : memref<48xi32, #tpu.memory_space<smem>>
    %837 = arith.index_cast %836 : i32 to index
    %c0_373 = arith.constant 0 : index
    %838 = vector.load %arg21[%837, %c0_373] : memref<16x40xf32, #tpu.memory_space<vmem>>, vector<1x40xf32>
    %c2_i32_374 = arith.constant 2 : i32
    %839 = arith.addi %828, %c2_i32_374 : i32
    %840 = arith.index_cast %839 : i32 to index
    %841 = memref.load %arg0[%840] : memref<48xi32, #tpu.memory_space<smem>>
    %842 = arith.index_cast %841 : i32 to index
    %c0_375 = arith.constant 0 : index
    %843 = vector.load %arg21[%842, %c0_375] : memref<16x40xf32, #tpu.memory_space<vmem>>, vector<1x40xf32>
    %c3_i32_376 = arith.constant 3 : i32
    %844 = arith.addi %828, %c3_i32_376 : i32
    %845 = arith.index_cast %844 : i32 to index
    %846 = memref.load %arg0[%845] : memref<48xi32, #tpu.memory_space<smem>>
    %847 = arith.index_cast %846 : i32 to index
    %c0_377 = arith.constant 0 : index
    %848 = vector.load %arg21[%847, %c0_377] : memref<16x40xf32, #tpu.memory_space<vmem>>, vector<1x40xf32>
    %c4_i32_378 = arith.constant 4 : i32
    %849 = arith.addi %828, %c4_i32_378 : i32
    %850 = arith.index_cast %849 : i32 to index
    %851 = memref.load %arg0[%850] : memref<48xi32, #tpu.memory_space<smem>>
    %852 = arith.index_cast %851 : i32 to index
    %c0_379 = arith.constant 0 : index
    %853 = vector.load %arg21[%852, %c0_379] : memref<16x40xf32, #tpu.memory_space<vmem>>, vector<1x40xf32>
    %c5_i32_380 = arith.constant 5 : i32
    %854 = arith.addi %828, %c5_i32_380 : i32
    %855 = arith.index_cast %854 : i32 to index
    %856 = memref.load %arg0[%855] : memref<48xi32, #tpu.memory_space<smem>>
    %857 = arith.index_cast %856 : i32 to index
    %c0_381 = arith.constant 0 : index
    %858 = vector.load %arg21[%857, %c0_381] : memref<16x40xf32, #tpu.memory_space<vmem>>, vector<1x40xf32>
    %c6_i32_382 = arith.constant 6 : i32
    %859 = arith.addi %828, %c6_i32_382 : i32
    %860 = arith.index_cast %859 : i32 to index
    %861 = memref.load %arg0[%860] : memref<48xi32, #tpu.memory_space<smem>>
    %862 = arith.index_cast %861 : i32 to index
    %c0_383 = arith.constant 0 : index
    %863 = vector.load %arg21[%862, %c0_383] : memref<16x40xf32, #tpu.memory_space<vmem>>, vector<1x40xf32>
    %c7_i32_384 = arith.constant 7 : i32
    %864 = arith.addi %828, %c7_i32_384 : i32
    %865 = arith.index_cast %864 : i32 to index
    %866 = memref.load %arg0[%865] : memref<48xi32, #tpu.memory_space<smem>>
    %867 = arith.index_cast %866 : i32 to index
    %c0_385 = arith.constant 0 : index
    %868 = vector.load %arg21[%867, %c0_385] : memref<16x40xf32, #tpu.memory_space<vmem>>, vector<1x40xf32>
    %869 = tpu.concatenate %833, %838, %843, %848, %853, %858, %863, %868 in 0 : vector<1x40xf32>, vector<1x40xf32>, vector<1x40xf32>, vector<1x40xf32>, vector<1x40xf32>, vector<1x40xf32>, vector<1x40xf32>, vector<1x40xf32> -> vector<8x40xf32>
    %870 = arith.index_cast %828 : i32 to index
    %c0_386 = arith.constant 0 : index
    %871 = vector.load %arg22[%870, %c0_386] : memref<48x40xf32, #tpu.memory_space<vmem>>, vector<8x40xf32>
    tpu.vector_store %arg22[%870, %c0_386], %869 {strides = array<i32>} : memref<48x40xf32, #tpu.memory_space<vmem>>, vector<8x40xf32>,
    %c4_i32_387 = arith.constant 4 : i32
    %c8_i32_388 = arith.constant 8 : i32
    %872 = arith.muli %c4_i32_387, %c8_i32_388 : i32
    %873 = tpu.assume_multiple %872, 8 : i32
    %c0_i32_389 = arith.constant 0 : i32
    %874 = arith.addi %873, %c0_i32_389 : i32
    %875 = arith.index_cast %874 : i32 to index
    %876 = memref.load %arg0[%875] : memref<48xi32, #tpu.memory_space<smem>>
    %877 = arith.index_cast %876 : i32 to index
    %c0_390 = arith.constant 0 : index
    %878 = vector.load %arg21[%877, %c0_390] : memref<16x40xf32, #tpu.memory_space<vmem>>, vector<1x40xf32>
    %c1_i32_391 = arith.constant 1 : i32
    %879 = arith.addi %873, %c1_i32_391 : i32
    %880 = arith.index_cast %879 : i32 to index
    %881 = memref.load %arg0[%880] : memref<48xi32, #tpu.memory_space<smem>>
    %882 = arith.index_cast %881 : i32 to index
    %c0_392 = arith.constant 0 : index
    %883 = vector.load %arg21[%882, %c0_392] : memref<16x40xf32, #tpu.memory_space<vmem>>, vector<1x40xf32>
    %c2_i32_393 = arith.constant 2 : i32
    %884 = arith.addi %873, %c2_i32_393 : i32
    %885 = arith.index_cast %884 : i32 to index
    %886 = memref.load %arg0[%885] : memref<48xi32, #tpu.memory_space<smem>>
    %887 = arith.index_cast %886 : i32 to index
    %c0_394 = arith.constant 0 : index
    %888 = vector.load %arg21[%887, %c0_394] : memref<16x40xf32, #tpu.memory_space<vmem>>, vector<1x40xf32>
    %c3_i32_395 = arith.constant 3 : i32
    %889 = arith.addi %873, %c3_i32_395 : i32
    %890 = arith.index_cast %889 : i32 to index
    %891 = memref.load %arg0[%890] : memref<48xi32, #tpu.memory_space<smem>>
    %892 = arith.index_cast %891 : i32 to index
    %c0_396 = arith.constant 0 : index
    %893 = vector.load %arg21[%892, %c0_396] : memref<16x40xf32, #tpu.memory_space<vmem>>, vector<1x40xf32>
    %c4_i32_397 = arith.constant 4 : i32
    %894 = arith.addi %873, %c4_i32_397 : i32
    %895 = arith.index_cast %894 : i32 to index
    %896 = memref.load %arg0[%895] : memref<48xi32, #tpu.memory_space<smem>>
    %897 = arith.index_cast %896 : i32 to index
    %c0_398 = arith.constant 0 : index
    %898 = vector.load %arg21[%897, %c0_398] : memref<16x40xf32, #tpu.memory_space<vmem>>, vector<1x40xf32>
    %c5_i32_399 = arith.constant 5 : i32
    %899 = arith.addi %873, %c5_i32_399 : i32
    %900 = arith.index_cast %899 : i32 to index
    %901 = memref.load %arg0[%900] : memref<48xi32, #tpu.memory_space<smem>>
    %902 = arith.index_cast %901 : i32 to index
    %c0_400 = arith.constant 0 : index
    %903 = vector.load %arg21[%902, %c0_400] : memref<16x40xf32, #tpu.memory_space<vmem>>, vector<1x40xf32>
    %c6_i32_401 = arith.constant 6 : i32
    %904 = arith.addi %873, %c6_i32_401 : i32
    %905 = arith.index_cast %904 : i32 to index
    %906 = memref.load %arg0[%905] : memref<48xi32, #tpu.memory_space<smem>>
    %907 = arith.index_cast %906 : i32 to index
    %c0_402 = arith.constant 0 : index
    %908 = vector.load %arg21[%907, %c0_402] : memref<16x40xf32, #tpu.memory_space<vmem>>, vector<1x40xf32>
    %c7_i32_403 = arith.constant 7 : i32
    %909 = arith.addi %873, %c7_i32_403 : i32
    %910 = arith.index_cast %909 : i32 to index
    %911 = memref.load %arg0[%910] : memref<48xi32, #tpu.memory_space<smem>>
    %912 = arith.index_cast %911 : i32 to index
    %c0_404 = arith.constant 0 : index
    %913 = vector.load %arg21[%912, %c0_404] : memref<16x40xf32, #tpu.memory_space<vmem>>, vector<1x40xf32>
    %914 = tpu.concatenate %878, %883, %888, %893, %898, %903, %908, %913 in 0 : vector<1x40xf32>, vector<1x40xf32>, vector<1x40xf32>, vector<1x40xf32>, vector<1x40xf32>, vector<1x40xf32>, vector<1x40xf32>, vector<1x40xf32> -> vector<8x40xf32>
    %915 = arith.index_cast %873 : i32 to index
    %c0_405 = arith.constant 0 : index
    %916 = vector.load %arg22[%915, %c0_405] : memref<48x40xf32, #tpu.memory_space<vmem>>, vector<8x40xf32>
    tpu.vector_store %arg22[%915, %c0_405], %914 {strides = array<i32>} : memref<48x40xf32, #tpu.memory_space<vmem>>, vector<8x40xf32>,
    %c5_i32_406 = arith.constant 5 : i32
    %c8_i32_407 = arith.constant 8 : i32
    %917 = arith.muli %c5_i32_406, %c8_i32_407 : i32
    %918 = tpu.assume_multiple %917, 8 : i32
    %c0_i32_408 = arith.constant 0 : i32
    %919 = arith.addi %918, %c0_i32_408 : i32
    %920 = arith.index_cast %919 : i32 to index
    %921 = memref.load %arg0[%920] : memref<48xi32, #tpu.memory_space<smem>>
    %922 = arith.index_cast %921 : i32 to index
    %c0_409 = arith.constant 0 : index
    %923 = vector.load %arg21[%922, %c0_409] : memref<16x40xf32, #tpu.memory_space<vmem>>, vector<1x40xf32>
    %c1_i32_410 = arith.constant 1 : i32
    %924 = arith.addi %918, %c1_i32_410 : i32
    %925 = arith.index_cast %924 : i32 to index
    %926 = memref.load %arg0[%925] : memref<48xi32, #tpu.memory_space<smem>>
    %927 = arith.index_cast %926 : i32 to index
    %c0_411 = arith.constant 0 : index
    %928 = vector.load %arg21[%927, %c0_411] : memref<16x40xf32, #tpu.memory_space<vmem>>, vector<1x40xf32>
    %c2_i32_412 = arith.constant 2 : i32
    %929 = arith.addi %918, %c2_i32_412 : i32
    %930 = arith.index_cast %929 : i32 to index
    %931 = memref.load %arg0[%930] : memref<48xi32, #tpu.memory_space<smem>>
    %932 = arith.index_cast %931 : i32 to index
    %c0_413 = arith.constant 0 : index
    %933 = vector.load %arg21[%932, %c0_413] : memref<16x40xf32, #tpu.memory_space<vmem>>, vector<1x40xf32>
    %c3_i32_414 = arith.constant 3 : i32
    %934 = arith.addi %918, %c3_i32_414 : i32
    %935 = arith.index_cast %934 : i32 to index
    %936 = memref.load %arg0[%935] : memref<48xi32, #tpu.memory_space<smem>>
    %937 = arith.index_cast %936 : i32 to index
    %c0_415 = arith.constant 0 : index
    %938 = vector.load %arg21[%937, %c0_415] : memref<16x40xf32, #tpu.memory_space<vmem>>, vector<1x40xf32>
    %c4_i32_416 = arith.constant 4 : i32
    %939 = arith.addi %918, %c4_i32_416 : i32
    %940 = arith.index_cast %939 : i32 to index
    %941 = memref.load %arg0[%940] : memref<48xi32, #tpu.memory_space<smem>>
    %942 = arith.index_cast %941 : i32 to index
    %c0_417 = arith.constant 0 : index
    %943 = vector.load %arg21[%942, %c0_417] : memref<16x40xf32, #tpu.memory_space<vmem>>, vector<1x40xf32>
    %c5_i32_418 = arith.constant 5 : i32
    %944 = arith.addi %918, %c5_i32_418 : i32
    %945 = arith.index_cast %944 : i32 to index
    %946 = memref.load %arg0[%945] : memref<48xi32, #tpu.memory_space<smem>>
    %947 = arith.index_cast %946 : i32 to index
    %c0_419 = arith.constant 0 : index
    %948 = vector.load %arg21[%947, %c0_419] : memref<16x40xf32, #tpu.memory_space<vmem>>, vector<1x40xf32>
    %c6_i32_420 = arith.constant 6 : i32
    %949 = arith.addi %918, %c6_i32_420 : i32
    %950 = arith.index_cast %949 : i32 to index
    %951 = memref.load %arg0[%950] : memref<48xi32, #tpu.memory_space<smem>>
    %952 = arith.index_cast %951 : i32 to index
    %c0_421 = arith.constant 0 : index
    %953 = vector.load %arg21[%952, %c0_421] : memref<16x40xf32, #tpu.memory_space<vmem>>, vector<1x40xf32>
    %c7_i32_422 = arith.constant 7 : i32
    %954 = arith.addi %918, %c7_i32_422 : i32
    %955 = arith.index_cast %954 : i32 to index
    %956 = memref.load %arg0[%955] : memref<48xi32, #tpu.memory_space<smem>>
    %957 = arith.index_cast %956 : i32 to index
    %c0_423 = arith.constant 0 : index
    %958 = vector.load %arg21[%957, %c0_423] : memref<16x40xf32, #tpu.memory_space<vmem>>, vector<1x40xf32>
    %959 = tpu.concatenate %923, %928, %933, %938, %943, %948, %953, %958 in 0 : vector<1x40xf32>, vector<1x40xf32>, vector<1x40xf32>, vector<1x40xf32>, vector<1x40xf32>, vector<1x40xf32>, vector<1x40xf32>, vector<1x40xf32> -> vector<8x40xf32>
    %960 = arith.index_cast %918 : i32 to index
    %c0_424 = arith.constant 0 : index
    %961 = vector.load %arg22[%960, %c0_424] : memref<48x40xf32, #tpu.memory_space<vmem>>, vector<8x40xf32>
    tpu.vector_store %arg22[%960, %c0_424], %959 {strides = array<i32>} : memref<48x40xf32, #tpu.memory_space<vmem>>, vector<8x40xf32>,
    %c6_i32_425 = arith.constant 6 : i32
    %c0_426 = arith.constant 0 : index
    %c0_427 = arith.constant 0 : index
    %962 = vector.load %arg22[%c0_426, %c0_427] : memref<48x40xf32, #tpu.memory_space<vmem>>, vector<48x40xf32>
    %963 = vector.extract_strided_slice %962 {offsets = [0, 0], sizes = [48, 32], strides = [1, 1]} : vector<48x40xf32> to vector<48x32xf32>
    %964 = vector.extract_strided_slice %962 {offsets = [0, 32], sizes = [48, 4], strides = [1, 1]} : vector<48x40xf32> to vector<48x4xf32>
    %c0_428 = arith.constant 0 : index
    %c36_429 = arith.constant 36 : index
    %965 = vector.load %arg21[%c0_428, %c36_429] : memref<16x40xf32, #tpu.memory_space<vmem>>, vector<16x4xf32>
    %cst_430 = arith.constant dense<0.000000e+00> : vector<48x4xf32>
    %966 = tpu.matmul %11, %965, %cst_430 {dimension_numbers = #tpu.dot_dimension_numbers<[1], [0], [0], [1], [0, 0, 1, 1], [], []>} : vector<48x16xf32>, vector<16x4xf32>, vector<48x4xf32> -> vector<48x4xf32>
    %967 = arith.addf %964, %966 : vector<48x4xf32>
    %cst_431 = arith.constant 0.000000e+00 : f32
    %968 = vector.broadcast %cst_431 : f32 to vector<48x4xf32>
    %969 = arith.cmpf ogt, %967, %968 : vector<48x4xf32>
    %cst_432 = arith.constant 2.000000e-01 : f32
    %970 = vector.broadcast %cst_432 : f32 to vector<48x4xf32>
    %971 = arith.mulf %970, %967 : vector<48x4xf32>
    %972 = arith.select %969, %967, %971 : vector<48x4xi1>, vector<48x4xf32>
    %973 = vector.shape_cast %972 : vector<48x4xf32> to vector<1x48x4xf32>
    %cst_433 = arith.constant dense<0xFF800000> : vector<1xf32>
    %974 = vector.multi_reduction <maximumf>, %973, %cst_433 [1, 2] : vector<1x48x4xf32> to vector<1xf32>
    %975 = vector.shape_cast %974 : vector<1xf32> to vector<1x1x1xf32>
    %976 = vector.extract %975[0, 0, 0] : f32 from vector<1x1x1xf32>
    %977 = vector.broadcast %976 : f32 to vector<48x4xf32>
    %978 = arith.subf %972, %977 : vector<48x4xf32>
    %979 = math.exp %978 : vector<48x4xf32>
    %cst_434 = arith.constant dense<0.000000e+00> : vector<48x32xf32>
    %980 = tpu.matmul %979, %24, %cst_434 {dimension_numbers = #tpu.dot_dimension_numbers<[1], [0], [0], [1], [0, 0, 1, 1], [], []>} : vector<48x4xf32>, vector<4x32xf32>, vector<48x32xf32> -> vector<48x32xf32>
    %981 = arith.mulf %963, %980 : vector<48x32xf32>
    %cst_435 = arith.constant dense<0.000000e+00> : vector<16x4xf32>
    %982 = tpu.matmul %5, %979, %cst_435 {dimension_numbers = #tpu.dot_dimension_numbers<[1], [0], [0], [1], [0, 0, 1, 1], [], []>} : vector<16x48xf32>, vector<48x4xf32>, vector<16x4xf32> -> vector<16x4xf32>
    %cst_436 = arith.constant dense<0.000000e+00> : vector<16x32xf32>
    %983 = tpu.matmul %5, %981, %cst_436 {dimension_numbers = #tpu.dot_dimension_numbers<[1], [0], [0], [1], [0, 0, 1, 1], [], []>} : vector<16x48xf32>, vector<48x32xf32>, vector<16x32xf32> -> vector<16x32xf32>
    %cst_437 = arith.constant 1.000000e-16 : f32
    %984 = vector.broadcast %cst_437 : f32 to vector<16x4xf32>
    %985 = arith.addf %982, %984 : vector<16x4xf32>
    %986 = tpu.reciprocal %985 {approx = true} : vector<16x4xf32> -> vector<16x4xf32>
    %cst_438 = arith.constant dense<0.000000e+00> : vector<48x4xf32>
    %987 = tpu.matmul %11, %986, %cst_438 {dimension_numbers = #tpu.dot_dimension_numbers<[1], [0], [0], [1], [0, 0, 1, 1], [], []>} : vector<48x16xf32>, vector<16x4xf32>, vector<48x4xf32> -> vector<48x4xf32>
    %988 = arith.mulf %979, %987 : vector<48x4xf32>
    %c2_439 = arith.constant 2 : index
    %c0_440 = arith.constant 0 : index
    %c0_441 = arith.constant 0 : index
    %989 = vector.load %arg20[%c2_439, %c0_440, %c0_441] : memref<3x48x4xf32, #tpu.memory_space<vmem>>, vector<1x48x4xf32>
    %990 = vector.shape_cast %989 : vector<1x48x4xf32> to vector<48x4xf32>
    %991 = vector.shape_cast %988 : vector<48x4xf32> to vector<1x48x4xf32>
    tpu.vector_store %arg20[%c2_439, %c0_440, %c0_441], %991 {strides = array<i32>} : memref<3x48x4xf32, #tpu.memory_space<vmem>>, vector<1x48x4xf32>,
    %cst_442 = arith.constant dense<0.000000e+00> : vector<16x32xf32>
    %992 = tpu.matmul %986, %24, %cst_442 {dimension_numbers = #tpu.dot_dimension_numbers<[1], [0], [0], [1], [0, 0, 1, 1], [], []>} : vector<16x4xf32>, vector<4x32xf32>, vector<16x32xf32> -> vector<16x32xf32>
    %993 = arith.mulf %983, %992 : vector<16x32xf32>
    %c2_443 = arith.constant 2 : index
    %c0_444 = arith.constant 0 : index
    %c0_445 = arith.constant 0 : index
    %994 = vector.load %arg10[%c2_443, %c0_444, %c0_445] : memref<3x1x32xf32, #tpu.memory_space<vmem>>, vector<1x1x32xf32>
    %995 = vector.shape_cast %994 : vector<1x1x32xf32> to vector<1x32xf32>
    %996 = vector.broadcast %995 : vector<1x32xf32> to vector<16x32xf32>
    %997 = arith.addf %993, %996 : vector<16x32xf32>
    %cst_446 = arith.constant 0.000000e+00 : f32
    %998 = vector.broadcast %cst_446 : f32 to vector<16x32xf32>
    %999 = arith.maximumf %997, %998 : vector<16x32xf32>
    %c0_447 = arith.constant 0 : index
    %c0_448 = arith.constant 0 : index
    %1000 = vector.load %arg11[%c0_447, %c0_448] : memref<1x32xf32, #tpu.memory_space<vmem>>, vector<1x32xf32>
    %1001 = vector.broadcast %1000 : vector<1x32xf32> to vector<16x32xf32>
    %1002 = arith.mulf %999, %1001 : vector<16x32xf32>
    %c0_449 = arith.constant 0 : index
    %c0_450 = arith.constant 0 : index
    %1003 = vector.load %arg12[%c0_449, %c0_450] : memref<1x32xf32, #tpu.memory_space<vmem>>, vector<1x32xf32>
    %1004 = vector.broadcast %1003 : vector<1x32xf32> to vector<16x32xf32>
    %1005 = arith.addf %1002, %1004 : vector<16x32xf32>
    %1006 = arith.truncf %1005 : vector<16x32xf32> to vector<16x32xbf16>
    %c0_451 = arith.constant 0 : index
    %c0_452 = arith.constant 0 : index
    %1007 = vector.load %arg13[%c0_451, %c0_452] : memref<32x32xbf16, #tpu.memory_space<vmem>>, vector<32x32xbf16>
    %cst_453 = arith.constant dense<0.000000e+00> : vector<16x32xf32>
    %1008 = tpu.matmul %1006, %1007, %cst_453 {dimension_numbers = #tpu.dot_dimension_numbers<[1], [0], [0], [1], [0, 0, 1, 1], [], []>} : vector<16x32xbf16>, vector<32x32xbf16>, vector<16x32xf32> -> vector<16x32xf32>
    %c0_454 = arith.constant 0 : index
    %c0_455 = arith.constant 0 : index
    %1009 = vector.load %arg14[%c0_454, %c0_455] : memref<1x32xf32, #tpu.memory_space<vmem>>, vector<1x32xf32>
    %1010 = vector.broadcast %1009 : vector<1x32xf32> to vector<16x32xf32>
    %1011 = arith.addf %1008, %1010 : vector<16x32xf32>
    %cst_456 = arith.constant 0.000000e+00 : f32
    %1012 = vector.broadcast %cst_456 : f32 to vector<16x32xf32>
    %1013 = arith.maximumf %1011, %1012 : vector<16x32xf32>
    %c0_457 = arith.constant 0 : index
    %c0_458 = arith.constant 0 : index
    %1014 = vector.load %arg15[%c0_457, %c0_458] : memref<1x32xf32, #tpu.memory_space<vmem>>, vector<1x32xf32>
    %1015 = vector.broadcast %1014 : vector<1x32xf32> to vector<16x32xf32>
    %1016 = arith.mulf %1013, %1015 : vector<16x32xf32>
    %c0_459 = arith.constant 0 : index
    %c0_460 = arith.constant 0 : index
    %1017 = vector.load %arg16[%c0_459, %c0_460] : memref<1x32xf32, #tpu.memory_space<vmem>>, vector<1x32xf32>
    %1018 = vector.broadcast %1017 : vector<1x32xf32> to vector<16x32xf32>
    %1019 = arith.addf %1016, %1018 : vector<16x32xf32>
    %c0_461 = arith.constant 0 : index
    %c0_462 = arith.constant 0 : index
    %1020 = vector.load %arg17[%c0_461, %c0_462] : memref<32x128xf32, #tpu.memory_space<vmem>>, vector<32x128xf32>
    %cst_463 = arith.constant dense<0.000000e+00> : vector<16x128xf32>
    %1021 = tpu.matmul %1019, %1020, %cst_463 {dimension_numbers = #tpu.dot_dimension_numbers<[1], [0], [0], [1], [0, 0, 1, 1], [], []>} : vector<16x32xf32>, vector<32x128xf32>, vector<16x128xf32> -> vector<16x128xf32>
    %c0_464 = arith.constant 0 : index
    %c0_465 = arith.constant 0 : index
    %1022 = vector.load %arg18[%c0_464, %c0_465] : memref<1x128xf32, #tpu.memory_space<vmem>>, vector<1x128xf32>
    %1023 = vector.broadcast %1022 : vector<1x128xf32> to vector<16x128xf32>
    %1024 = arith.addf %1021, %1023 : vector<16x128xf32>
    %c0_466 = arith.constant 0 : index
    %c0_467 = arith.constant 0 : index
    %1025 = vector.load %arg19[%c0_466, %c0_467] : memref<16x128xf32, #tpu.memory_space<vmem>>, vector<16x128xf32>
    tpu.vector_store %arg19[%c0_466, %c0_467], %1024 {strides = array<i32>} : memref<16x128xf32, #tpu.memory_space<vmem>>, vector<16x128xf32>,
    return
  }
}

</mosaic_0001>

<llo_original>
// kernel: tpu_custom_call.1
$region0: #{tpu_custom_call.1}
  #allocation0 [shape = 'u32[]', space=smem, size = 0x4, offset = 0x4, fixed_abs, tag = 'smem constant byte address 0x4 - core index']
  #allocation1 [shape = 'u32[144,128]{1,0:T(1,128)}', space=vmem, size = 0x12000, scoped, tag = 'internal scratch']
  #allocation2 [shape = 'f32[16,40]{1,0:T(8,128)}', space=vmem, size = 0x2000, scoped, tag = 'scratch operand']
  #allocation3 [shape = 'f32[48,40]{1,0:T(8,128)}', space=vmem, size = 0x6000, scoped, tag = 'scratch operand']
  %s0 = inlined_call_operand.vmem [shape: s32[48], index: 0, kind: input, shape index: {}]
  %s1 = inlined_call_operand.vmem [shape: s32[48,1], index: 1, kind: input, shape index: {}]
  %s2 = inlined_call_operand.vmem [shape: s32[1,48], index: 2, kind: input, shape index: {}]
  %s3 = inlined_call_operand.hbm [shape: f32[16,16], index: 3, kind: input, shape index: {}]
  %s4 = inlined_call_operand.hbm [shape: f32[1,16], index: 4, kind: input, shape index: {}]
  %s5 = inlined_call_operand.hbm [shape: f32[1,16], index: 5, kind: input, shape index: {}]
  %s6 = inlined_call_operand.hbm [shape: bf16[16,32], index: 6, kind: input, shape index: {}]
  %s7 = inlined_call_operand.hbm [shape: f32[3,1,32], index: 7, kind: input, shape index: {}]
  %s8 = inlined_call_operand.hbm [shape: f32[3,1,32], index: 8, kind: input, shape index: {}]
  %s9 = inlined_call_operand.vmem [shape: bf16[3,32,40], index: 9, kind: input, shape index: {}]
  %s10 = inlined_call_operand.hbm [shape: f32[3,1,32], index: 10, kind: input, shape index: {}]
  %s11 = inlined_call_operand.hbm [shape: f32[1,32], index: 11, kind: input, shape index: {}]
  %s12 = inlined_call_operand.hbm [shape: f32[1,32], index: 12, kind: input, shape index: {}]
  %s13 = inlined_call_operand.vmem [shape: bf16[32,32], index: 13, kind: input, shape index: {}]
  %s14 = inlined_call_operand.vmem [shape: f32[1,32], index: 14, kind: input, shape index: {}]
  %s15 = inlined_call_operand.vmem [shape: f32[1,32], index: 15, kind: input, shape index: {}]
  %s16 = inlined_call_operand.vmem [shape: f32[1,32], index: 16, kind: input, shape index: {}]
  %s17 = inlined_call_operand.vmem [shape: f32[32,128], index: 17, kind: input, shape index: {}]
  %s18 = inlined_call_operand.vmem [shape: f32[1,128], index: 18, kind: input, shape index: {}]
  %s19 = inlined_call_operand.hbm [shape: f32[16,128], index: 19, kind: output, shape index: {0}]
  %s20 = inlined_call_operand.vmem [shape: f32[3,48,4], index: 20, kind: output, shape index: {1}]
  %21 = xla_tuple %s19, %s20
  %s22 = sld [smem:[#allocation0]]
  $region134: #{tpu_custom_call.1} parent=0
    _
  %s24 = ssub.s32 1, %s22
  %s25 = scalar_select 0, %s24, %s22
  $region1: #{tpu_custom_call.1} parent=0
    #allocation4 [shape = 'u8[512]{0}', space=smem, size = 0x200, scoped, tag = 'input window, operand 0, single buffered']
    #allocation5 [shape = 's32[1]{0}', space=sflag, size = 0x4, scoped, tag = 'scoped memory for tpu_custom_call.1']
    #allocation6 [shape = 's32[1]{0}', space=sflag, size = 0x4, scoped, tag = 'scoped memory for tpu_custom_call.1']
    #allocation7 [shape = 's32[1]{0}', space=sflag, size = 0x4, scoped, tag = 'scoped memory for tpu_custom_call.1']
    #allocation8 [shape = 'u8[8192]{0}', space=vmem, size = 0x2000, scoped, tag = 'input window, operand 3, single buffered']
    #allocation9 [shape = 'u8[512]{0}', space=vmem, size = 0x400, scoped, tag = 'input window, operand 4, single buffered']
    #allocation10 [shape = 's32[1]{0}', space=sflag, size = 0x4, scoped, tag = 'scoped memory for tpu_custom_call.1']
    #allocation11 [shape = 'u8[512]{0}', space=vmem, size = 0x400, scoped, tag = 'input window, operand 5, single buffered']
    #allocation12 [shape = 'u8[4096]{0}', space=vmem, size = 0x1000, scoped, tag = 'input window, operand 6, single buffered']
    #allocation13 [shape = 's32[1]{0}', space=sflag, size = 0x4, scoped, tag = 'scoped memory for tpu_custom_call.1']
    #allocation14 [shape = 'u8[1536]{0}', space=vmem, size = 0x800, scoped, tag = 'input window, operand 7, single buffered']
    #allocation15 [shape = 'u8[1536]{0}', space=vmem, size = 0x800, scoped, tag = 'input window, operand 8, single buffered']
    #allocation16 [shape = 's32[1]{0}', space=sflag, size = 0x4, scoped, tag = 'scoped memory for tpu_custom_call.1']
    #allocation17 [shape = 'u8[1536]{0}', space=vmem, size = 0x800, scoped, tag = 'input window, operand 10, single buffered']
    #allocation18 [shape = 'u8[512]{0}', space=vmem, size = 0x400, scoped, tag = 'input window, operand 11, single buffered']
    #allocation19 [shape = 's32[1]{0}', space=sflag, size = 0x4, scoped, tag = 'scoped memory for tpu_custom_call.1']
    #allocation20 [shape = 'u8[512]{0}', space=vmem, size = 0x400, scoped, tag = 'input window, operand 12, single buffered']
    #allocation21 [shape = 'u8[8192]{0}', space=vmem, size = 0x2000, scoped, tag = 'output window, operand 0, single buffered']
    %26 = vsyncpa [#allocation7], 0
    %27 = vsyncpa [#allocation5], 0
    %28 = vsyncpa [#allocation10], 0
    %29 = vsyncpa [#allocation13], 0
    %30 = vsyncpa [#allocation16], 0
    %31 = vsyncpa [#allocation19], 0
    %32 = vsyncpa [#allocation6], 0
    // Predicated region
    $region2: #{tpu_custom_call.1} parent=1 // pred_check
      _
    $region3: #{tpu_custom_call.1} parent=1 // pred_check_branch
      %34 = sbr.rel (0) target = $region5
    $region4: #{tpu_custom_call.1} parent=1 // pred_region
      %s36 = ssub.s32 16, 16
      %37 = vsyncadd [#allocation7], %s36
      %s39 = sshll.u32 %s0, 4
      %s40 = int_to_ptr.vmem [resolvable:$true] %s39
      %42 = dma.vmem_to_smem %s40, 16, [#allocation4], [#allocation7]
    $region5: #{tpu_custom_call.1} parent=1 // pred_fallthru
      _
    // Predicated region
    $region6: #{tpu_custom_call.1} parent=1 // pred_check
      _
    $region7: #{tpu_custom_call.1} parent=1 // pred_check_branch
      %44 = sbr.rel (0) target = $region9
    $region8: #{tpu_custom_call.1} parent=1 // pred_region
      _
    $region9: #{tpu_custom_call.1} parent=1 // pred_fallthru
      _
    // Predicated region
    $region10: #{tpu_custom_call.1} parent=1 // pred_check
      _
    $region11: #{tpu_custom_call.1} parent=1 // pred_check_branch
      %46 = sbr.rel (0) target = $region13
    $region12: #{tpu_custom_call.1} parent=1 // pred_region
      _
    $region13: #{tpu_custom_call.1} parent=1 // pred_fallthru
      _
    // Predicated region
    $region14: #{tpu_custom_call.1} parent=1 // pred_check
      _
    $region15: #{tpu_custom_call.1} parent=1 // pred_check_branch
      %48 = sbr.rel (0) target = $region17
    $region16: #{tpu_custom_call.1} parent=1 // pred_region
      %s50 = ssub.s32 256, 256
      %51 = vsyncadd [#allocation5], %s50
      %s52 = sshll.u32 [#allocation8], 4
      %s53 = int_to_ptr.vmem [resolvable:$true] %s52
      %58 = dma.hbm_to_vmem [thread:$0]  %s3, 256, %s53, [#allocation5], 128, 128, 8
    $region17: #{tpu_custom_call.1} parent=1 // pred_fallthru
      _
    // Predicated region
    $region18: #{tpu_custom_call.1} parent=1 // pred_check
      _
    $region19: #{tpu_custom_call.1} parent=1 // pred_check_branch
      %60 = sbr.rel (0) target = $region21
    $region20: #{tpu_custom_call.1} parent=1 // pred_region
      %s62 = ssub.s32 16, 16
      %63 = vsyncadd [#allocation10], %s62
      %s65 = sshll.u32 [#allocation9], 4
      %s66 = int_to_ptr.vmem [resolvable:$true] %s65
      %68 = dma.hbm_to_vmem [thread:$0]  %s4, 16, %s66, [#allocation10]
    $region21: #{tpu_custom_call.1} parent=1 // pred_fallthru
      _
    // Predicated region
    $region22: #{tpu_custom_call.1} parent=1 // pred_check
      _
    $region23: #{tpu_custom_call.1} parent=1 // pred_check_branch
      %70 = sbr.rel (0) target = $region25
    $region24: #{tpu_custom_call.1} parent=1 // pred_region
      %s72 = ssub.s32 16, 16
      %73 = vsyncadd [#allocation10], %s72
      %s75 = sshll.u32 [#allocation11], 4
      %s76 = int_to_ptr.vmem [resolvable:$true] %s75
      %78 = dma.hbm_to_vmem [thread:$0]  %s5, 16, %s76, [#allocation10]
    $region25: #{tpu_custom_call.1} parent=1 // pred_fallthru
      _
    // Predicated region
    $region26: #{tpu_custom_call.1} parent=1 // pred_check
      _
    $region27: #{tpu_custom_call.1} parent=1 // pred_check_branch
      %80 = sbr.rel (0) target = $region29
    $region28: #{tpu_custom_call.1} parent=1 // pred_region
      %s82 = ssub.s32 128, 128
      %83 = vsyncadd [#allocation13], %s82
      %s84 = sshll.u32 [#allocation12], 4
      %s85 = int_to_ptr.vmem [resolvable:$true] %s84
      %90 = dma.hbm_to_vmem [thread:$0]  %s6, 128, %s85, [#allocation13], 64, 64, 4
    $region29: #{tpu_custom_call.1} parent=1 // pred_fallthru
      _
    // Predicated region
    $region30: #{tpu_custom_call.1} parent=1 // pred_check
      _
    $region31: #{tpu_custom_call.1} parent=1 // pred_check_branch
      %92 = sbr.rel (0) target = $region33
    $region32: #{tpu_custom_call.1} parent=1 // pred_region
      %s94 = ssub.s32 48, 48
      %95 = vsyncadd [#allocation13], %s94
      %s96 = sshll.u32 [#allocation14], 4
      %s97 = int_to_ptr.vmem [resolvable:$true] %s96
      %102 = dma.hbm_to_vmem [thread:$0]  %s7, 48, %s97, [#allocation13], 16, 16, 1
    $region33: #{tpu_custom_call.1} parent=1 // pred_fallthru
      _
    // Predicated region
    $region34: #{tpu_custom_call.1} parent=1 // pred_check
      _
    $region35: #{tpu_custom_call.1} parent=1 // pred_check_branch
      %104 = sbr.rel (0) target = $region37
    $region36: #{tpu_custom_call.1} parent=1 // pred_region
      %s106 = ssub.s32 48, 48
      %107 = vsyncadd [#allocation16], %s106
      %s108 = sshll.u32 [#allocation15], 4
      %s109 = int_to_ptr.vmem [resolvable:$true] %s108
      %114 = dma.hbm_to_vmem [thread:$0]  %s8, 48, %s109, [#allocation16], 16, 16, 1
    $region37: #{tpu_custom_call.1} parent=1 // pred_fallthru
      _
    // Predicated region
    $region38: #{tpu_custom_call.1} parent=1 // pred_check
      _
    $region39: #{tpu_custom_call.1} parent=1 // pred_check_branch
      %116 = sbr.rel (0) target = $region41
    $region40: #{tpu_custom_call.1} parent=1 // pred_region
      _
    $region41: #{tpu_custom_call.1} parent=1 // pred_fallthru
      _
    // Predicated region
    $region42: #{tpu_custom_call.1} parent=1 // pred_check
      _
    $region43: #{tpu_custom_call.1} parent=1 // pred_check_branch
      %118 = sbr.rel (0) target = $region45
    $region44: #{tpu_custom_call.1} parent=1 // pred_region
      %s120 = ssub.s32 48, 48
      %121 = vsyncadd [#allocation16], %s120
      %s122 = sshll.u32 [#allocation17], 4
      %s123 = int_to_ptr.vmem [resolvable:$true] %s122
      %128 = dma.hbm_to_vmem [thread:$0]  %s10, 48, %s123, [#allocation16], 16, 16, 1
    $region45: #{tpu_custom_call.1} parent=1 // pred_fallthru
      _
    // Predicated region
    $region46: #{tpu_custom_call.1} parent=1 // pred_check
      _
    $region47: #{tpu_custom_call.1} parent=1 // pred_check_branch
      %130 = sbr.rel (0) target = $region49
    $region48: #{tpu_custom_call.1} parent=1 // pred_region
      %s132 = ssub.s32 16, 16
      %133 = vsyncadd [#allocation19], %s132
      %s135 = sshll.u32 [#allocation18], 4
      %s136 = int_to_ptr.vmem [resolvable:$true] %s135
      %138 = dma.hbm_to_vmem [thread:$0]  %s11, 16, %s136, [#allocation19]
    $region49: #{tpu_custom_call.1} parent=1 // pred_fallthru
      _
    // Predicated region
    $region50: #{tpu_custom_call.1} parent=1 // pred_check
      _
    $region51: #{tpu_custom_call.1} parent=1 // pred_check_branch
      %140 = sbr.rel (0) target = $region53
    $region52: #{tpu_custom_call.1} parent=1 // pred_region
      %s142 = ssub.s32 16, 16
      %143 = vsyncadd [#allocation19], %s142
      %s145 = sshll.u32 [#allocation20], 4
      %s146 = int_to_ptr.vmem [resolvable:$true] %s145
      %148 = dma.hbm_to_vmem [thread:$0]  %s12, 16, %s146, [#allocation19]
    $region53: #{tpu_custom_call.1} parent=1 // pred_fallthru
      _
    // Predicated region
    $region54: #{tpu_custom_call.1} parent=1 // pred_check
      _
    $region55: #{tpu_custom_call.1} parent=1 // pred_check_branch
      %150 = sbr.rel (0) target = $region57
    $region56: #{tpu_custom_call.1} parent=1 // pred_region
      _
    $region57: #{tpu_custom_call.1} parent=1 // pred_fallthru
      _
    // Predicated region
    $region58: #{tpu_custom_call.1} parent=1 // pred_check
      _
    $region59: #{tpu_custom_call.1} parent=1 // pred_check_branch
      %152 = sbr.rel (0) target = $region61
    $region60: #{tpu_custom_call.1} parent=1 // pred_region
      _
    $region61: #{tpu_custom_call.1} parent=1 // pred_fallthru
      _
    // Predicated region
    $region62: #{tpu_custom_call.1} parent=1 // pred_check
      _
    $region63: #{tpu_custom_call.1} parent=1 // pred_check_branch
      %154 = sbr.rel (0) target = $region65
    $region64: #{tpu_custom_call.1} parent=1 // pred_region
      _
    $region65: #{tpu_custom_call.1} parent=1 // pred_fallthru
      _
    // Predicated region
    $region66: #{tpu_custom_call.1} parent=1 // pred_check
      _
    $region67: #{tpu_custom_call.1} parent=1 // pred_check_branch
      %156 = sbr.rel (0) target = $region69
    $region68: #{tpu_custom_call.1} parent=1 // pred_region
      _
    $region69: #{tpu_custom_call.1} parent=1 // pred_fallthru
      _
    // Predicated region
    $region70: #{tpu_custom_call.1} parent=1 // pred_check
      _
    $region71: #{tpu_custom_call.1} parent=1 // pred_check_branch
      %158 = sbr.rel (0) target = $region73
    $region72: #{tpu_custom_call.1} parent=1 // pred_region
      _
    $region73: #{tpu_custom_call.1} parent=1 // pred_fallthru
      _
    // Predicated region
    $region74: #{tpu_custom_call.1} parent=1 // pred_check
      _
    $region75: #{tpu_custom_call.1} parent=1 // pred_check_branch
      %160 = sbr.rel (0) target = $region77
    $region76: #{tpu_custom_call.1} parent=1 // pred_region
      _
    $region77: #{tpu_custom_call.1} parent=1 // pred_fallthru
      _
    // Predicated region
    $region78: #{tpu_custom_call.1} parent=1 // pred_check
      _
    $region79: #{tpu_custom_call.1} parent=1 // pred_check_branch
      %162 = sbr.rel (0) target = $region81
    $region80: #{tpu_custom_call.1} parent=1 // pred_region
      %163 = dma.done [#allocation7], 16
    $region81: #{tpu_custom_call.1} parent=1 // pred_fallthru
      _
    // Predicated region
    $region82: #{tpu_custom_call.1} parent=1 // pred_check
      _
    $region83: #{tpu_custom_call.1} parent=1 // pred_check_branch
      %165 = sbr.rel (0) target = $region85
    $region84: #{tpu_custom_call.1} parent=1 // pred_region
      %166 = dma.done [#allocation5], 256
    $region85: #{tpu_custom_call.1} parent=1 // pred_fallthru
      _
    // Predicated region
    $region86: #{tpu_custom_call.1} parent=1 // pred_check
      _
    $region87: #{tpu_custom_call.1} parent=1 // pred_check_branch
      %168 = sbr.rel (0) target = $region89
    $region88: #{tpu_custom_call.1} parent=1 // pred_region
      %169 = dma.done [#allocation10], 16
    $region89: #{tpu_custom_call.1} parent=1 // pred_fallthru
      _
    // Predicated region
    $region90: #{tpu_custom_call.1} parent=1 // pred_check
      _
    $region91: #{tpu_custom_call.1} parent=1 // pred_check_branch
      %171 = sbr.rel (0) target = $region93
    $region92: #{tpu_custom_call.1} parent=1 // pred_region
      %172 = dma.done [#allocation10], 16
    $region93: #{tpu_custom_call.1} parent=1 // pred_fallthru
      _
    // Predicated region
    $region94: #{tpu_custom_call.1} parent=1 // pred_check
      _
    $region95: #{tpu_custom_call.1} parent=1 // pred_check_branch
      %174 = sbr.rel (0) target = $region97
    $region96: #{tpu_custom_call.1} parent=1 // pred_region
      %175 = dma.done [#allocation13], 128
    $region97: #{tpu_custom_call.1} parent=1 // pred_fallthru
      _
    // Predicated region
    $region98: #{tpu_custom_call.1} parent=1 // pred_check
      _
    $region99: #{tpu_custom_call.1} parent=1 // pred_check_branch
      %177 = sbr.rel (0) target = $region101
    $region100: #{tpu_custom_call.1} parent=1 // pred_region
      %178 = dma.done [#allocation13], 48
    $region101: #{tpu_custom_call.1} parent=1 // pred_fallthru
      _
    // Predicated region
    $region102: #{tpu_custom_call.1} parent=1 // pred_check
      _
    $region103: #{tpu_custom_call.1} parent=1 // pred_check_branch
      %180 = sbr.rel (0) target = $region105
    $region104: #{tpu_custom_call.1} parent=1 // pred_region
      %181 = dma.done [#allocation16], 48
    $region105: #{tpu_custom_call.1} parent=1 // pred_fallthru
      _
    // Predicated region
    $region106: #{tpu_custom_call.1} parent=1 // pred_check
      _
    $region107: #{tpu_custom_call.1} parent=1 // pred_check_branch
      %183 = sbr.rel (0) target = $region109
    $region108: #{tpu_custom_call.1} parent=1 // pred_region
      %184 = dma.done [#allocation16], 48
    $region109: #{tpu_custom_call.1} parent=1 // pred_fallthru
      _
    // Predicated region
    $region110: #{tpu_custom_call.1} parent=1 // pred_check
      _
    $region111: #{tpu_custom_call.1} parent=1 // pred_check_branch
      %186 = sbr.rel (0) target = $region113
    $region112: #{tpu_custom_call.1} parent=1 // pred_region
      %187 = dma.done [#allocation19], 16
    $region113: #{tpu_custom_call.1} parent=1 // pred_fallthru
      _
    // Predicated region
    $region114: #{tpu_custom_call.1} parent=1 // pred_check
      _
    $region115: #{tpu_custom_call.1} parent=1 // pred_check_branch
      %189 = sbr.rel (0) target = $region117
    $region116: #{tpu_custom_call.1} parent=1 // pred_region
      %190 = dma.done [#allocation19], 16
    $region117: #{tpu_custom_call.1} parent=1 // pred_fallthru
      _
    %191 = sfence
    %v193 = vld [vmem:[%s2] sm:$0x1]
    %v194 = vlaneseq
    %v195 = vshrl.u32 %v194, 7
    %v196 = vadd.s32 %v195, 8
    %v197 = vlaneseq
    %v198 = vshrl.u32 %v197, 7
    %v199 = vsub.s32 0, %v198
    %v200 = vrot.slane %v193, %v199
    %vm201 = vcmp.eq.s32.totalorder %v200, %v195
    %vm202 = vcmp.eq.s32.totalorder %v200, %v196
    %v203 = vsel %vm201, 1, 0
    %v204 = vsel %vm202, 1, 0
    %v205 = vcvt.s32.f32 %v203
    %v206 = vcvt.s32.f32 %v204
    %v207 = vld [vmem:[%s1] sm:$0xff]
    %v208 = vld [vmem:[%s1 + $0x8] sm:$0xff]
    %v209 = vld [vmem:[%s1 + $0x10] sm:$0xff]
    %v210 = vld [vmem:[%s1 + $0x18] sm:$0xff]
    %v211 = vld [vmem:[%s1 + $0x20] sm:$0xff]
    %v212 = vld [vmem:[%s1 + $0x28] sm:$0xff]
    %v213 = vlaneseq
    %v214 = vand.u32 %v213, 127
    %215 = vset.pattern.permute.xlu0 0
    %216 = vperm.xlu0 %215, %v207
    %v217 = vpop.permute.xlu0 %216
    %218 = vset.pattern.permute.xlu0 0
    %219 = vperm.xlu0 %218, %v208
    %v220 = vpop.permute.xlu0 %219
    %221 = vset.pattern.permute.xlu0 0
    %222 = vperm.xlu0 %221, %v209
    %v223 = vpop.permute.xlu0 %222
    %224 = vset.pattern.permute.xlu0 0
    %225 = vperm.xlu0 %224, %v210
    %v226 = vpop.permute.xlu0 %225
    %227 = vset.pattern.permute.xlu0 0
    %228 = vperm.xlu0 %227, %v211
    %v229 = vpop.permute.xlu0 %228
    %230 = vset.pattern.permute.xlu0 0
    %231 = vperm.xlu0 %230, %v212
    %v232 = vpop.permute.xlu0 %231
    %vm233 = vcmp.eq.s32.totalorder %v217, %v214
    %vm234 = vcmp.eq.s32.totalorder %v220, %v214
    %vm235 = vcmp.eq.s32.totalorder %v223, %v214
    %vm236 = vcmp.eq.s32.totalorder %v226, %v214
    %vm237 = vcmp.eq.s32.totalorder %v229, %v214
    %vm238 = vcmp.eq.s32.totalorder %v232, %v214
    %v239 = vsel %vm233, 1, 0
    %v240 = vsel %vm234, 1, 0
    %v241 = vsel %vm235, 1, 0
    %v242 = vsel %vm236, 1, 0
    %v243 = vsel %vm237, 1, 0
    %v244 = vsel %vm238, 1, 0
    %v245 = vcvt.s32.f32 %v239
    %v246 = vcvt.s32.f32 %v240
    %v247 = vcvt.s32.f32 %v241
    %v248 = vcvt.s32.f32 %v242
    %v249 = vcvt.s32.f32 %v243
    %v250 = vcvt.s32.f32 %v244
    %v251 = vmul.u32 %v195, 8
    %vm252 = vcmp.ge.s32.totalorder %v214, %v251
    %v253 = vadd.s32 %v195, 1
    %v254 = vmul.u32 %v253, 8
    %vm255 = vcmp.lt.s32.totalorder %v214, %v254
    %vm256 = vmand %vm252, %vm255
    %v257 = vsel %vm256, 1, 0
    %v258 = vcvt.s32.f32 %v257
    %v259 = vld [vmem:[#allocation8] sm:$0xff]
    %v260 = vld [vmem:[#allocation8 + $0x8] sm:$0xff]
    %v261 = vld [vmem:[#allocation9] sm:$0x1]
    %v263 = vlaneseq
    %v264 = vshrl.u32 %v263, 7
    %v265 = vsub.s32 0, %v264
    %v266 = vrot.slane %v261, %v265
    %v268 = vmul.f32 %v259, %v266
    %v269 = vmul.f32 %v260, %v266
    %v270 = vld [vmem:[#allocation11] sm:$0x1]
    %v272 = vlaneseq
    %v273 = vshrl.u32 %v272, 7
    %v274 = vsub.s32 0, %v273
    %v275 = vrot.slane %v270, %v274
    %v277 = vadd.f32 %v268, %v275
    %v278 = vadd.f32 %v269, %v275
    %v279 = vpack.c.bf16 %v278, %v277
    %v280 = vld [vmem:[#allocation12] sm:$0xf]
    %v281 = vld [vmem:[#allocation12 + $0x4] sm:$0xf]
    %v284 = vunpack.c.l.b16 %v280
    %v285 = vunpack.c.l.b16 %v281
    %v286 = vpack.c.b16 %v285, %v284
    %vm288 = vcmask 130048
    %v290 = vsel %vm288, %v279, 0
    %292 = vmatprep.subr.bf16.mxu0 0
    %293 = vmatpush1.bf16.msra.mxu0 %v286
    %294 = vmatprep.subr.bf16.mxu0 0
    %295 = vmatpush1.bf16.msra.mxu0 0
    %296 = vmatprep.subr.bf16.mxu0 0
    %297 = vmatpush1.bf16.msra.mxu0 0
    %298 = vmatprep.subr.bf16.mxu0 0
    %299 = vmatpush1.bf16.msra.mxu0 0
    %300 = vmatprep.subr.bf16.mxu0 0
    %301 = vmatpush1.bf16.msra.mxu0 0
    %302 = vmatprep.subr.bf16.mxu0 0
    %303 = vmatpush1.bf16.msra.mxu0 0
    %304 = vmatprep.subr.bf16.mxu0 0
    %305 = vmatpush1.bf16.msra.mxu0 0
    %306 = vmatprep.subr.bf16.mxu0 0
    %307 = vmatpush1.bf16.msra.mxu0 0
    %308 = vmatprep.subr.bf16.mxu0 0
    %309 = vmatpush1.bf16.msra.mxu0 0
    %310 = vmatprep.subr.bf16.mxu0 0
    %311 = vmatpush1.bf16.msra.mxu0 0
    %312 = vmatprep.subr.bf16.mxu0 0
    %313 = vmatpush1.bf16.msra.mxu0 0
    %314 = vmatprep.subr.bf16.mxu0 0
    %315 = vmatpush1.bf16.msra.mxu0 0
    %316 = vmatprep.subr.bf16.mxu0 0
    %317 = vmatpush1.bf16.msra.mxu0 0
    %318 = vmatprep.subr.bf16.mxu0 0
    %319 = vmatpush1.bf16.msra.mxu0 0
    %320 = vmatprep.subr.bf16.mxu0 0
    %321 = vmatpush1.bf16.msra.mxu0 0
    %322 = vmatprep.subr.bf16.mxu0 0
    %323 = vmatpush1.bf16.msra.mxu0 0
    %324 = vmatprep.mubr.bf16.mxu0 0
    %325 = vmatmul.mubr.bf16.gmra.mrb[0].mxu0 %v290
    %v326 = vpop.f32.mrb[0].mxu0
    %v327 = vadd.f32 0.0, %v326
    %v328 = vpop.f32.mrb[0].mxu0
    %v329 = vpop.f32.mrb[0].mxu0
    %v330 = vadd.f32 0.0, %v329
    %v331 = vpop.f32.mrb[0].mxu0
    %332 = vdwg.mxu0
    %v333 = vmax.f32 %v327, 0.0
    %v334 = vmax.f32 %v330, 0.0
    %v335 = vld [vmem:[#allocation14] sm:$0x1]
    %v337 = vlaneseq
    %v338 = vshrl.u32 %v337, 7
    %v339 = vsub.s32 0, %v338
    %v340 = vrot.slane %v335, %v339
    %v342 = vmul.f32 %v333, %v340
    %v343 = vmul.f32 %v334, %v340
    %v344 = vld [vmem:[#allocation15] sm:$0x1]
    %v346 = vlaneseq
    %v347 = vshrl.u32 %v346, 7
    %v348 = vsub.s32 0, %v347
    %v349 = vrot.slane %v344, %v348
    %v351 = vadd.f32 %v342, %v349
    %v352 = vadd.f32 %v343, %v349
    %v353 = vpack.c.bf16 %v352, %v351
    %v354 = vld [vmem:[%s9] sm:$0xf]
    %v355 = vld [vmem:[%s9 + $0x4] sm:$0xf]
    %v356 = vld [vmem:[%s9 + $0x8] sm:$0xf]
    %v357 = vld [vmem:[%s9 + $0xc] sm:$0xf]
    %v362 = vunpack.c.l.b16 %v354
    %v363 = vunpack.c.l.b16 %v355
    %v364 = vunpack.c.l.b16 %v356
    %v365 = vunpack.c.l.b16 %v357
    %v366 = vpack.c.b16 %v363, %v362
    %v367 = vpack.c.b16 %v365, %v364
    %vm370 = vcmask 261120
    %v372 = vsel %vm370, %v353, 0
    %374 = vmatprep.subr.bf16.mxu0 0
    %375 = vmatpush1.bf16.msra.mxu0 %v366
    %376 = vmatprep.subr.bf16.mxu0 0
    %377 = vmatpush1.bf16.msra.mxu0 %v367
    %378 = vmatprep.subr.bf16.mxu0 0
    %379 = vmatpush1.bf16.msra.mxu0 0
    %380 = vmatprep.subr.bf16.mxu0 0
    %381 = vmatpush1.bf16.msra.mxu0 0
    %382 = vmatprep.subr.bf16.mxu0 0
    %383 = vmatpush1.bf16.msra.mxu0 0
    %384 = vmatprep.subr.bf16.mxu0 0
    %385 = vmatpush1.bf16.msra.mxu0 0
    %386 = vmatprep.subr.bf16.mxu0 0
    %387 = vmatpush1.bf16.msra.mxu0 0
    %388 = vmatprep.subr.bf16.mxu0 0
    %389 = vmatpush1.bf16.msra.mxu0 0
    %390 = vmatprep.subr.bf16.mxu0 0
    %391 = vmatpush1.bf16.msra.mxu0 0
    %392 = vmatprep.subr.bf16.mxu0 0
    %393 = vmatpush1.bf16.msra.mxu0 0
    %394 = vmatprep.subr.bf16.mxu0 0
    %395 = vmatpush1.bf16.msra.mxu0 0
    %396 = vmatprep.subr.bf16.mxu0 0
    %397 = vmatpush1.bf16.msra.mxu0 0
    %398 = vmatprep.subr.bf16.mxu0 0
    %399 = vmatpush1.bf16.msra.mxu0 0
    %400 = vmatprep.subr.bf16.mxu0 0
    %401 = vmatpush1.bf16.msra.mxu0 0
    %402 = vmatprep.subr.bf16.mxu0 0
    %403 = vmatpush1.bf16.msra.mxu0 0
    %404 = vmatprep.subr.bf16.mxu0 0
    %405 = vmatpush1.bf16.msra.mxu0 0
    %406 = vmatprep.mubr.bf16.mxu0 0
    %407 = vmatmul.mubr.bf16.gmra.mrb[0].mxu0 %v372
    %v408 = vpop.f32.mrb[0].mxu0
    %v409 = vadd.f32 0.0, %v408
    %v410 = vpop.f32.mrb[0].mxu0
    %v411 = vpop.f32.mrb[0].mxu0
    %v412 = vadd.f32 0.0, %v411
    %v413 = vpop.f32.mrb[0].mxu0
    %414 = vdwg.mxu0
    %vm415 = vcmask 326656
    %416 = vst.msk [vmem:[#allocation2] sm:$0xff] %vm415, %v409
    %417 = vst.msk [vmem:[#allocation2 + $0x8] sm:$0xff] %vm415, %v412
    %s418 = sld [smem:[#allocation4]]
    %s419 = scalar_lea.vmem [#allocation2], %s418
    %v420 = vld [vmem:[%s419] sm:$0x1]
    %s421 = sadd.s32 0, 1
    %s422 = sld [smem:[#allocation4 + %s421]]
    %s423 = scalar_lea.vmem [#allocation2], %s422
    %v424 = vld [vmem:[%s423] sm:$0x1]
    %s425 = sadd.s32 0, 2
    %s426 = sld [smem:[#allocation4 + %s425]]
    %s427 = scalar_lea.vmem [#allocation2], %s426
    %v428 = vld [vmem:[%s427] sm:$0x1]
    %s429 = sadd.s32 0, 3
    %s430 = sld [smem:[#allocation4 + %s429]]
    %s431 = scalar_lea.vmem [#allocation2], %s430
    %v432 = vld [vmem:[%s431] sm:$0x1]
    %s433 = sadd.s32 0, 4
    %s434 = sld [smem:[#allocation4 + %s433]]
    %s435 = scalar_lea.vmem [#allocation2], %s434
    %v436 = vld [vmem:[%s435] sm:$0x1]
    %s437 = sadd.s32 0, 5
    %s438 = sld [smem:[#allocation4 + %s437]]
    %s439 = scalar_lea.vmem [#allocation2], %s438
    %v440 = vld [vmem:[%s439] sm:$0x1]
    %s441 = sadd.s32 0, 6
    %s442 = sld [smem:[#allocation4 + %s441]]
    %s443 = scalar_lea.vmem [#allocation2], %s442
    %v444 = vld [vmem:[%s443] sm:$0x1]
    %s445 = sadd.s32 0, 7
    %s446 = sld [smem:[#allocation4 + %s445]]
    %s447 = scalar_lea.vmem [#allocation2], %s446
    %v448 = vld [vmem:[%s447] sm:$0x1]
    %v450 = vrot.slane %v424, 7
    %v453 = vrot.slane %v428, 6
    %v456 = vrot.slane %v432, 5
    %v459 = vrot.slane %v436, 4
    %v462 = vrot.slane %v440, 3
    %v465 = vrot.slane %v444, 2
    %v468 = vrot.slane %v448, 1
    %vm470 = vcmask 1040384
    %v471 = vsel %vm470, %v420, %v450
    %vm472 = vcmask 1041408
    %v473 = vsel %vm472, %v471, %v453
    %vm474 = vcmask 1042432
    %v475 = vsel %vm474, %v473, %v456
    %vm476 = vcmask 1043456
    %v477 = vsel %vm476, %v475, %v459
    %vm478 = vcmask 1044480
    %v479 = vsel %vm478, %v477, %v462
    %vm480 = vcmask 1045504
    %v481 = vsel %vm480, %v479, %v465
    %vm482 = vcmask 1046528
    %v483 = vsel %vm482, %v481, %v468
    %484 = vst.msk [vmem:[#allocation3] sm:$0xff] %vm415, %v483
    %s485 = sld [smem:[#allocation4 + $0x8]]
    %s486 = scalar_lea.vmem [#allocation2], %s485
    %v487 = vld [vmem:[%s486] sm:$0x1]
    %s488 = sadd.s32 8, 1
    %s489 = sld [smem:[#allocation4 + %s488]]
    %s490 = scalar_lea.vmem [#allocation2], %s489
    %v491 = vld [vmem:[%s490] sm:$0x1]
    %s492 = sadd.s32 8, 2
    %s493 = sld [smem:[#allocation4 + %s492]]
    %s494 = scalar_lea.vmem [#allocation2], %s493
    %v495 = vld [vmem:[%s494] sm:$0x1]
    %s496 = sadd.s32 8, 3
    %s497 = sld [smem:[#allocation4 + %s496]]
    %s498 = scalar_lea.vmem [#allocation2], %s497
    %v499 = vld [vmem:[%s498] sm:$0x1]
    %s500 = sadd.s32 8, 4
    %s501 = sld [smem:[#allocation4 + %s500]]
    %s502 = scalar_lea.vmem [#allocation2], %s501
    %v503 = vld [vmem:[%s502] sm:$0x1]
    %s504 = sadd.s32 8, 5
    %s505 = sld [smem:[#allocation4 + %s504]]
    %s506 = scalar_lea.vmem [#allocation2], %s505
    %v507 = vld [vmem:[%s506] sm:$0x1]
    %s508 = sadd.s32 8, 6
    %s509 = sld [smem:[#allocation4 + %s508]]
    %s510 = scalar_lea.vmem [#allocation2], %s509
    %v511 = vld [vmem:[%s510] sm:$0x1]
    %s512 = sadd.s32 8, 7
    %s513 = sld [smem:[#allocation4 + %s512]]
    %s514 = scalar_lea.vmem [#allocation2], %s513
    %v515 = vld [vmem:[%s514] sm:$0x1]
    %v517 = vrot.slane %v491, 7
    %v520 = vrot.slane %v495, 6
    %v523 = vrot.slane %v499, 5
    %v526 = vrot.slane %v503, 4
    %v529 = vrot.slane %v507, 3
    %v532 = vrot.slane %v511, 2
    %v535 = vrot.slane %v515, 1
    %v537 = vsel %vm470, %v487, %v517
    %v538 = vsel %vm472, %v537, %v520
    %v539 = vsel %vm474, %v538, %v523
    %v540 = vsel %vm476, %v539, %v526
    %v541 = vsel %vm478, %v540, %v529
    %v542 = vsel %vm480, %v541, %v532
    %v543 = vsel %vm482, %v542, %v535
    %s544 = scalar_lea.vmem [#allocation3], 8
    %545 = vst.msk [vmem:[%s544] sm:$0xff] %vm415, %v543
    %s546 = sld [smem:[#allocation4 + $0x10]]
    %s547 = scalar_lea.vmem [#allocation2], %s546
    %v548 = vld [vmem:[%s547] sm:$0x1]
    %s549 = sadd.s32 16, 1
    %s550 = sld [smem:[#allocation4 + %s549]]
    %s551 = scalar_lea.vmem [#allocation2], %s550
    %v552 = vld [vmem:[%s551] sm:$0x1]
    %s553 = sadd.s32 16, 2
    %s554 = sld [smem:[#allocation4 + %s553]]
    %s555 = scalar_lea.vmem [#allocation2], %s554
    %v556 = vld [vmem:[%s555] sm:$0x1]
    %s557 = sadd.s32 16, 3
    %s558 = sld [smem:[#allocation4 + %s557]]
    %s559 = scalar_lea.vmem [#allocation2], %s558
    %v560 = vld [vmem:[%s559] sm:$0x1]
    %s561 = sadd.s32 16, 4
    %s562 = sld [smem:[#allocation4 + %s561]]
    %s563 = scalar_lea.vmem [#allocation2], %s562
    %v564 = vld [vmem:[%s563] sm:$0x1]
    %s565 = sadd.s32 16, 5
    %s566 = sld [smem:[#allocation4 + %s565]]
    %s567 = scalar_lea.vmem [#allocation2], %s566
    %v568 = vld [vmem:[%s567] sm:$0x1]
    %s569 = sadd.s32 16, 6
    %s570 = sld [smem:[#allocation4 + %s569]]
    %s571 = scalar_lea.vmem [#allocation2], %s570
    %v572 = vld [vmem:[%s571] sm:$0x1]
    %s573 = sadd.s32 16, 7
    %s574 = sld [smem:[#allocation4 + %s573]]
    %s575 = scalar_lea.vmem [#allocation2], %s574
    %v576 = vld [vmem:[%s575] sm:$0x1]
    %v578 = vrot.slane %v552, 7
    %v581 = vrot.slane %v556, 6
    %v584 = vrot.slane %v560, 5
    %v587 = vrot.slane %v564, 4
    %v590 = vrot.slane %v568, 3
    %v593 = vrot.slane %v572, 2
    %v596 = vrot.slane %v576, 1
    %v598 = vsel %vm470, %v548, %v578
    %v599 = vsel %vm472, %v598, %v581
    %v600 = vsel %vm474, %v599, %v584
    %v601 = vsel %vm476, %v600, %v587
    %v602 = vsel %vm478, %v601, %v590
    %v603 = vsel %vm480, %v602, %v593
    %v604 = vsel %vm482, %v603, %v596
    %s605 = scalar_lea.vmem [#allocation3], 16
    %606 = vst.msk [vmem:[%s605] sm:$0xff] %vm415, %v604
    %s607 = sld [smem:[#allocation4 + $0x18]]
    %s608 = scalar_lea.vmem [#allocation2], %s607
    %v609 = vld [vmem:[%s608] sm:$0x1]
    %s610 = sadd.s32 24, 1
    %s611 = sld [smem:[#allocation4 + %s610]]
    %s612 = scalar_lea.vmem [#allocation2], %s611
    %v613 = vld [vmem:[%s612] sm:$0x1]
    %s614 = sadd.s32 24, 2
    %s615 = sld [smem:[#allocation4 + %s614]]
    %s616 = scalar_lea.vmem [#allocation2], %s615
    %v617 = vld [vmem:[%s616] sm:$0x1]
    %s618 = sadd.s32 24, 3
    %s619 = sld [smem:[#allocation4 + %s618]]
    %s620 = scalar_lea.vmem [#allocation2], %s619
    %v621 = vld [vmem:[%s620] sm:$0x1]
    %s622 = sadd.s32 24, 4
    %s623 = sld [smem:[#allocation4 + %s622]]
    %s624 = scalar_lea.vmem [#allocation2], %s623
    %v625 = vld [vmem:[%s624] sm:$0x1]
    %s626 = sadd.s32 24, 5
    %s627 = sld [smem:[#allocation4 + %s626]]
    %s628 = scalar_lea.vmem [#allocation2], %s627
    %v629 = vld [vmem:[%s628] sm:$0x1]
    %s630 = sadd.s32 24, 6
    %s631 = sld [smem:[#allocation4 + %s630]]
    %s632 = scalar_lea.vmem [#allocation2], %s631
    %v633 = vld [vmem:[%s632] sm:$0x1]
    %s634 = sadd.s32 24, 7
    %s635 = sld [smem:[#allocation4 + %s634]]
    %s636 = scalar_lea.vmem [#allocation2], %s635
    %v637 = vld [vmem:[%s636] sm:$0x1]
    %v639 = vrot.slane %v613, 7
    %v642 = vrot.slane %v617, 6
    %v645 = vrot.slane %v621, 5
    %v648 = vrot.slane %v625, 4
    %v651 = vrot.slane %v629, 3
    %v654 = vrot.slane %v633, 2
    %v657 = vrot.slane %v637, 1
    %v659 = vsel %vm470, %v609, %v639
    %v660 = vsel %vm472, %v659, %v642
    %v661 = vsel %vm474, %v660, %v645
    %v662 = vsel %vm476, %v661, %v648
    %v663 = vsel %vm478, %v662, %v651
    %v664 = vsel %vm480, %v663, %v654
    %v665 = vsel %vm482, %v664, %v657
    %s666 = scalar_lea.vmem [#allocation3], 24
    %667 = vst.msk [vmem:[%s666] sm:$0xff] %vm415, %v665
    %s668 = sld [smem:[#allocation4 + $0x20]]
    %s669 = scalar_lea.vmem [#allocation2], %s668
    %v670 = vld [vmem:[%s669] sm:$0x1]
    %s671 = sadd.s32 32, 1
    %s672 = sld [smem:[#allocation4 + %s671]]
    %s673 = scalar_lea.vmem [#allocation2], %s672
    %v674 = vld [vmem:[%s673] sm:$0x1]
    %s675 = sadd.s32 32, 2
    %s676 = sld [smem:[#allocation4 + %s675]]
    %s677 = scalar_lea.vmem [#allocation2], %s676
    %v678 = vld [vmem:[%s677] sm:$0x1]
    %s679 = sadd.s32 32, 3
    %s680 = sld [smem:[#allocation4 + %s679]]
    %s681 = scalar_lea.vmem [#allocation2], %s680
    %v682 = vld [vmem:[%s681] sm:$0x1]
    %s683 = sadd.s32 32, 4
    %s684 = sld [smem:[#allocation4 + %s683]]
    %s685 = scalar_lea.vmem [#allocation2], %s684
    %v686 = vld [vmem:[%s685] sm:$0x1]
    %s687 = sadd.s32 32, 5
    %s688 = sld [smem:[#allocation4 + %s687]]
    %s689 = scalar_lea.vmem [#allocation2], %s688
    %v690 = vld [vmem:[%s689] sm:$0x1]
    %s691 = sadd.s32 32, 6
    %s692 = sld [smem:[#allocation4 + %s691]]
    %s693 = scalar_lea.vmem [#allocation2], %s692
    %v694 = vld [vmem:[%s693] sm:$0x1]
    %s695 = sadd.s32 32, 7
    %s696 = sld [smem:[#allocation4 + %s695]]
    %s697 = scalar_lea.vmem [#allocation2], %s696
    %v698 = vld [vmem:[%s697] sm:$0x1]
    %v700 = vrot.slane %v674, 7
    %v703 = vrot.slane %v678, 6
    %v706 = vrot.slane %v682, 5
    %v709 = vrot.slane %v686, 4
    %v712 = vrot.slane %v690, 3
    %v715 = vrot.slane %v694, 2
    %v718 = vrot.slane %v698, 1
    %v720 = vsel %vm470, %v670, %v700
    %v721 = vsel %vm472, %v720, %v703
    %v722 = vsel %vm474, %v721, %v706
    %v723 = vsel %vm476, %v722, %v709
    %v724 = vsel %vm478, %v723, %v712
    %v725 = vsel %vm480, %v724, %v715
    %v726 = vsel %vm482, %v725, %v718
    %s727 = scalar_lea.vmem [#allocation3], 32
    %728 = vst.msk [vmem:[%s727] sm:$0xff] %vm415, %v726
    %s729 = sld [smem:[#allocation4 + $0x28]]
    %s730 = scalar_lea.vmem [#allocation2], %s729
    %v731 = vld [vmem:[%s730] sm:$0x1]
    %s732 = sadd.s32 40, 1
    %s733 = sld [smem:[#allocation4 + %s732]]
    %s734 = scalar_lea.vmem [#allocation2], %s733
    %v735 = vld [vmem:[%s734] sm:$0x1]
    %s736 = sadd.s32 40, 2
    %s737 = sld [smem:[#allocation4 + %s736]]
    %s738 = scalar_lea.vmem [#allocation2], %s737
    %v739 = vld [vmem:[%s738] sm:$0x1]
    %s740 = sadd.s32 40, 3
    %s741 = sld [smem:[#allocation4 + %s740]]
    %s742 = scalar_lea.vmem [#allocation2], %s741
    %v743 = vld [vmem:[%s742] sm:$0x1]
    %s744 = sadd.s32 40, 4
    %s745 = sld [smem:[#allocation4 + %s744]]
    %s746 = scalar_lea.vmem [#allocation2], %s745
    %v747 = vld [vmem:[%s746] sm:$0x1]
    %s748 = sadd.s32 40, 5
    %s749 = sld [smem:[#allocation4 + %s748]]
    %s750 = scalar_lea.vmem [#allocation2], %s749
    %v751 = vld [vmem:[%s750] sm:$0x1]
    %s752 = sadd.s32 40, 6
    %s753 = sld [smem:[#allocation4 + %s752]]
    %s754 = scalar_lea.vmem [#allocation2], %s753
    %v755 = vld [vmem:[%s754] sm:$0x1]
    %s756 = sadd.s32 40, 7
    %s757 = sld [smem:[#allocation4 + %s756]]
    %s758 = scalar_lea.vmem [#allocation2], %s757
    %v759 = vld [vmem:[%s758] sm:$0x1]
    %v761 = vrot.slane %v735, 7
    %v764 = vrot.slane %v739, 6
    %v767 = vrot.slane %v743, 5
    %v770 = vrot.slane %v747, 4
    %v773 = vrot.slane %v751, 3
    %v776 = vrot.slane %v755, 2
    %v779 = vrot.slane %v759, 1
    %v781 = vsel %vm470, %v731, %v761
    %v782 = vsel %vm472, %v781, %v764
    %v783 = vsel %vm474, %v782, %v767
    %v784 = vsel %vm476, %v783, %v770
    %v785 = vsel %vm478, %v784, %v773
    %v786 = vsel %vm480, %v785, %v776
    %v787 = vsel %vm482, %v786, %v779
    %s788 = scalar_lea.vmem [#allocation3], 40
    %789 = vst.msk [vmem:[%s788] sm:$0xff] %vm415, %v787
    %v790 = vld [vmem:[#allocation3] sm:$0xff]
    %v791 = vld [vmem:[#allocation3 + $0x8] sm:$0xff]
    %v792 = vld [vmem:[#allocation3 + $0x10] sm:$0xff]
    %v793 = vld [vmem:[#allocation3 + $0x18] sm:$0xff]
    %v794 = vld [vmem:[#allocation3 + $0x20] sm:$0xff]
    %v795 = vld [vmem:[#allocation3 + $0x28] sm:$0xff]
    %v796 = vld [vmem:[#allocation2] sm:$0xff]
    %v797 = vld [vmem:[#allocation2 + $0x8] sm:$0xff]
    %800 = vrot.lane.b32.xlu0 %v796, 92
    %v801 = vpop.permute.xlu0 %800
    %802 = vrot.lane.b32.xlu0 %v797, 92
    %v803 = vpop.permute.xlu0 %802
    %v807 = vsel %vm288, %v245, 0
    %v810 = vsel %vm288, %v246, 0
    %v813 = vsel %vm288, %v247, 0
    %v816 = vsel %vm288, %v248, 0
    %v819 = vsel %vm288, %v249, 0
    %v822 = vsel %vm288, %v250, 0
    %824 = vmatprep.subr.mxu0 0.0
    %825 = vmatpush1.msra.mxu0 %v801
    %826 = vmatprep.subr.mxu0 0.0
    %827 = vmatpush1.msra.mxu0 %v803
    %828 = vmatprep.subr.mxu0 0.0
    %829 = vmatpush1.msra.mxu0 0.0
    %830 = vmatprep.subr.mxu0 0.0
    %831 = vmatpush1.msra.mxu0 0.0
    %832 = vmatprep.subr.mxu0 0.0
    %833 = vmatpush1.msra.mxu0 0.0
    %834 = vmatprep.subr.mxu0 0.0
    %835 = vmatpush1.msra.mxu0 0.0
    %836 = vmatprep.subr.mxu0 0.0
    %837 = vmatpush1.msra.mxu0 0.0
    %838 = vmatprep.subr.mxu0 0.0
    %839 = vmatpush1.msra.mxu0 0.0
    %840 = vmatprep.subr.mxu0 0.0
    %841 = vmatpush1.msra.mxu0 0.0
    %842 = vmatprep.subr.mxu0 0.0
    %843 = vmatpush1.msra.mxu0 0.0
    %844 = vmatprep.subr.mxu0 0.0
    %845 = vmatpush1.msra.mxu0 0.0
    %846 = vmatprep.subr.mxu0 0.0
    %847 = vmatpush1.msra.mxu0 0.0
    %848 = vmatprep.subr.mxu0 0.0
    %849 = vmatpush1.msra.mxu0 0.0
    %850 = vmatprep.subr.mxu0 0.0
    %851 = vmatpush1.msra.mxu0 0.0
    %852 = vmatprep.subr.mxu0 0.0
    %853 = vmatpush1.msra.mxu0 0.0
    %854 = vmatprep.subr.mxu0 0.0
    %855 = vmatpush1.msra.mxu0 0.0
    %856 = vmatprep.subr.mxu0 0.0
    %857 = vmatpush1.msra.mxu0 0.0
    %858 = vmatprep.subr.mxu0 0.0
    %859 = vmatpush1.msra.mxu0 0.0
    %860 = vmatprep.subr.mxu0 0.0
    %861 = vmatpush1.msra.mxu0 0.0
    %862 = vmatprep.subr.mxu0 0.0
    %863 = vmatpush1.msra.mxu0 0.0
    %864 = vmatprep.subr.mxu0 0.0
    %865 = vmatpush1.msra.mxu0 0.0
    %866 = vmatprep.subr.mxu0 0.0
    %867 = vmatpush1.msra.mxu0 0.0
    %868 = vmatprep.subr.mxu0 0.0
    %869 = vmatpush1.msra.mxu0 0.0
    %870 = vmatprep.subr.mxu0 0.0
    %871 = vmatpush1.msra.mxu0 0.0
    %872 = vmatprep.subr.mxu0 0.0
    %873 = vmatpush1.msra.mxu0 0.0
    %874 = vmatprep.subr.mxu0 0.0
    %875 = vmatpush1.msra.mxu0 0.0
    %876 = vmatprep.subr.mxu0 0.0
    %877 = vmatpush1.msra.mxu0 0.0
    %878 = vmatprep.subr.mxu0 0.0
    %879 = vmatpush1.msra.mxu0 0.0
    %880 = vmatprep.subr.mxu0 0.0
    %881 = vmatpush1.msra.mxu0 0.0
    %882 = vmatprep.subr.mxu0 0.0
    %883 = vmatpush1.msra.mxu0 0.0
    %884 = vmatprep.subr.mxu0 0.0
    %885 = vmatpush1.msra.mxu0 0.0
    %886 = vmatprep.subr.mxu0 0.0
    %887 = vmatpush1.msra.mxu0 0.0
    %888 = vmatprep.mubr.f32.mxu0 0.0
    %889 = vmatmul.mubr.f32.gmra.mrb[0].mxu0 %v807
    %v890 = vpop.f32.mrb[0].mxu0
    %v891 = vadd.f32 0.0, %v890
    %v892 = vpop.f32.mrb[0].mxu0
    %893 = vmatprep.mubr.f32.mxu0 0.0
    %894 = vmatmul.mubr.f32.gmra.mrb[0].mxu0 %v810
    %v895 = vpop.f32.mrb[0].mxu0
    %v896 = vadd.f32 0.0, %v895
    %v897 = vpop.f32.mrb[0].mxu0
    %898 = vmatprep.mubr.f32.mxu0 0.0
    %899 = vmatmul.mubr.f32.gmra.mrb[0].mxu0 %v813
    %v900 = vpop.f32.mrb[0].mxu0
    %v901 = vadd.f32 0.0, %v900
    %v902 = vpop.f32.mrb[0].mxu0
    %903 = vmatprep.mubr.f32.mxu0 0.0
    %904 = vmatmul.mubr.f32.gmra.mrb[0].mxu0 %v816
    %v905 = vpop.f32.mrb[0].mxu0
    %v906 = vadd.f32 0.0, %v905
    %v907 = vpop.f32.mrb[0].mxu0
    %908 = vmatprep.mubr.f32.mxu0 0.0
    %909 = vmatmul.mubr.f32.gmra.mrb[0].mxu0 %v819
    %v910 = vpop.f32.mrb[0].mxu0
    %v911 = vadd.f32 0.0, %v910
    %v912 = vpop.f32.mrb[0].mxu0
    %913 = vmatprep.mubr.f32.mxu0 0.0
    %914 = vmatmul.mubr.f32.gmra.mrb[0].mxu0 %v822
    %v915 = vpop.f32.mrb[0].mxu0
    %v916 = vadd.f32 0.0, %v915
    %v917 = vpop.f32.mrb[0].mxu0
    %918 = vdwg.mxu0
    %925 = vrot.lane.b32.xlu0 %v891, 32
    %v926 = vpop.permute.xlu0 %925
    %927 = vrot.lane.b32.xlu0 %v896, 32
    %v928 = vpop.permute.xlu0 %927
    %929 = vrot.lane.b32.xlu0 %v901, 32
    %v930 = vpop.permute.xlu0 %929
    %931 = vrot.lane.b32.xlu0 %v906, 32
    %v932 = vpop.permute.xlu0 %931
    %933 = vrot.lane.b32.xlu0 %v911, 32
    %v934 = vpop.permute.xlu0 %933
    %935 = vrot.lane.b32.xlu0 %v916, 32
    %v936 = vpop.permute.xlu0 %935
    %v943 = vadd.f32 %v790, %v926
    %v944 = vadd.f32 %v791, %v928
    %v945 = vadd.f32 %v792, %v930
    %v946 = vadd.f32 %v793, %v932
    %v947 = vadd.f32 %v794, %v934
    %v948 = vadd.f32 %v795, %v936
    %vm949 = vcmp.gt.f32.partialorder %v943, 0.0
    %vm950 = vcmp.gt.f32.partialorder %v944, 0.0
    %vm951 = vcmp.gt.f32.partialorder %v945, 0.0
    %vm952 = vcmp.gt.f32.partialorder %v946, 0.0
    %vm953 = vcmp.gt.f32.partialorder %v947, 0.0
    %vm954 = vcmp.gt.f32.partialorder %v948, 0.0
    %v955 = vmul.f32 %v943, 0.2
    %v956 = vmul.f32 %v944, 0.2
    %v957 = vmul.f32 %v945, 0.2
    %v958 = vmul.f32 %v946, 0.2
    %v959 = vmul.f32 %v947, 0.2
    %v960 = vmul.f32 %v948, 0.2
    %v961 = vsel %vm949, %v943, %v955
    %v962 = vsel %vm950, %v944, %v956
    %v963 = vsel %vm951, %v945, %v957
    %v964 = vsel %vm952, %v946, %v958
    %v965 = vsel %vm953, %v947, %v959
    %v966 = vsel %vm954, %v948, %v960
    %vm967 = vcmask 294144
    %v968 = vsel %vm967, %v961, -inf
    %v969 = vsel %vm967, %v962, -inf
    %v970 = vsel %vm967, %v963, -inf
    %v971 = vsel %vm967, %v964, -inf
    %v972 = vsel %vm967, %v965, -inf
    %v973 = vmax.f32 %v968, %v972
    %v974 = vsel %vm967, %v966, -inf
    %v975 = vmax.f32 %v969, %v974
    %v976 = vmax.f32 %v973, %v975
    %v977 = vmax.f32 %v970, %v971
    %v978 = vmax.f32 %v976, %v977
    %979 = vmax.xlane.f32.xlu0 %v978
    %v980 = vpop.xlane.xlu0 %979
    %v981 = vrot.slane %v980, 4
    %v982 = vmax.f32 %v980, %v981
    %v983 = vrot.slane %v982, 2
    %v984 = vmax.f32 %v982, %v983
    %v985 = vrot.slane %v984, 1
    %v986 = vmax.f32 %v984, %v985
    %s987 = vtos %v986
    %v988 = vstv %s987
    %v989 = vsub.f32 %v961, %v988
    %v990 = vsub.f32 %v962, %v988
    %v991 = vsub.f32 %v963, %v988
    %v992 = vsub.f32 %v964, %v988
    %v993 = vsub.f32 %v965, %v988
    %v994 = vsub.f32 %v966, %v988
    %v995 = vmul.f32 %v989, 1.442695
    %v996 = vpow.pop %v995
    %v997 = vmul.f32 %v990, 1.442695
    %v998 = vpow.pop %v997
    %v999 = vmul.f32 %v991, 1.442695
    %v1000 = vpow.pop %v999
    %v1001 = vmul.f32 %v992, 1.442695
    %v1002 = vpow.pop %v1001
    %v1003 = vmul.f32 %v993, 1.442695
    %v1004 = vpow.pop %v1003
    %v1005 = vmul.f32 %v994, 1.442695
    %v1006 = vpow.pop %v1005
    %1013 = vrot.lane.b32.xlu0 %v996, 96
    %v1014 = vpop.permute.xlu0 %1013
    %1015 = vrot.lane.b32.xlu0 %v998, 96
    %v1016 = vpop.permute.xlu0 %1015
    %1017 = vrot.lane.b32.xlu0 %v1000, 96
    %v1018 = vpop.permute.xlu0 %1017
    %1019 = vrot.lane.b32.xlu0 %v1002, 96
    %v1020 = vpop.permute.xlu0 %1019
    %1021 = vrot.lane.b32.xlu0 %v1004, 96
    %v1022 = vpop.permute.xlu0 %1021
    %1023 = vrot.lane.b32.xlu0 %v1006, 96
    %v1024 = vpop.permute.xlu0 %1023
    %vm1025 = vcmask 31744
    %v1026 = vsel %vm1025, %v1014, 0
    %v1028 = vsel %vm1025, %v1016, 0
    %v1030 = vsel %vm1025, %v1018, 0
    %v1032 = vsel %vm1025, %v1020, 0
    %v1034 = vsel %vm1025, %v1022, 0
    %v1036 = vsel %vm1025, %v1024, 0
    %v1039 = vsel %vm476, %v258, 0
    %1041 = vmatprep.subr.mxu0 0.0
    %1042 = vmatpush1.msra.mxu0 %v1039
    %1043 = vmatprep.subr.mxu0 0.0
    %1044 = vmatpush1.msra.mxu0 0.0
    %1045 = vmatprep.subr.mxu0 0.0
    %1046 = vmatpush1.msra.mxu0 0.0
    %1047 = vmatprep.subr.mxu0 0.0
    %1048 = vmatpush1.msra.mxu0 0.0
    %1049 = vmatprep.subr.mxu0 0.0
    %1050 = vmatpush1.msra.mxu0 0.0
    %1051 = vmatprep.subr.mxu0 0.0
    %1052 = vmatpush1.msra.mxu0 0.0
    %1053 = vmatprep.subr.mxu0 0.0
    %1054 = vmatpush1.msra.mxu0 0.0
    %1055 = vmatprep.subr.mxu0 0.0
    %1056 = vmatpush1.msra.mxu0 0.0
    %1057 = vmatprep.subr.mxu0 0.0
    %1058 = vmatpush1.msra.mxu0 0.0
    %1059 = vmatprep.subr.mxu0 0.0
    %1060 = vmatpush1.msra.mxu0 0.0
    %1061 = vmatprep.subr.mxu0 0.0
    %1062 = vmatpush1.msra.mxu0 0.0
    %1063 = vmatprep.subr.mxu0 0.0
    %1064 = vmatpush1.msra.mxu0 0.0
    %1065 = vmatprep.subr.mxu0 0.0
    %1066 = vmatpush1.msra.mxu0 0.0
    %1067 = vmatprep.subr.mxu0 0.0
    %1068 = vmatpush1.msra.mxu0 0.0
    %1069 = vmatprep.subr.mxu0 0.0
    %1070 = vmatpush1.msra.mxu0 0.0
    %1071 = vmatprep.subr.mxu0 0.0
    %1072 = vmatpush1.msra.mxu0 0.0
    %1073 = vmatprep.subr.mxu0 0.0
    %1074 = vmatpush1.msra.mxu0 0.0
    %1075 = vmatprep.subr.mxu0 0.0
    %1076 = vmatpush1.msra.mxu0 0.0
    %1077 = vmatprep.subr.mxu0 0.0
    %1078 = vmatpush1.msra.mxu0 0.0
    %1079 = vmatprep.subr.mxu0 0.0
    %1080 = vmatpush1.msra.mxu0 0.0
    %1081 = vmatprep.subr.mxu0 0.0
    %1082 = vmatpush1.msra.mxu0 0.0
    %1083 = vmatprep.subr.mxu0 0.0
    %1084 = vmatpush1.msra.mxu0 0.0
    %1085 = vmatprep.subr.mxu0 0.0
    %1086 = vmatpush1.msra.mxu0 0.0
    %1087 = vmatprep.subr.mxu0 0.0
    %1088 = vmatpush1.msra.mxu0 0.0
    %1089 = vmatprep.subr.mxu0 0.0
    %1090 = vmatpush1.msra.mxu0 0.0
    %1091 = vmatprep.subr.mxu0 0.0
    %1092 = vmatpush1.msra.mxu0 0.0
    %1093 = vmatprep.subr.mxu0 0.0
    %1094 = vmatpush1.msra.mxu0 0.0
    %1095 = vmatprep.subr.mxu0 0.0
    %1096 = vmatpush1.msra.mxu0 0.0
    %1097 = vmatprep.subr.mxu0 0.0
    %1098 = vmatpush1.msra.mxu0 0.0
    %1099 = vmatprep.subr.mxu0 0.0
    %1100 = vmatpush1.msra.mxu0 0.0
    %1101 = vmatprep.subr.mxu0 0.0
    %1102 = vmatpush1.msra.mxu0 0.0
    %1103 = vmatprep.subr.mxu0 0.0
    %1104 = vmatpush1.msra.mxu0 0.0
    %1105 = vmatprep.mubr.f32.mxu0 0.0
    %1106 = vmatmul.mubr.f32.gmra.mrb[0].mxu0 %v1026
    %v1107 = vpop.f32.mrb[0].mxu0
    %v1108 = vadd.f32 0.0, %v1107
    %v1109 = vpop.f32.mrb[0].mxu0
    %1110 = vmatprep.mubr.f32.mxu0 0.0
    %1111 = vmatmul.mubr.f32.gmra.mrb[0].mxu0 %v1028
    %v1112 = vpop.f32.mrb[0].mxu0
    %v1113 = vadd.f32 0.0, %v1112
    %v1114 = vpop.f32.mrb[0].mxu0
    %1115 = vmatprep.mubr.f32.mxu0 0.0
    %1116 = vmatmul.mubr.f32.gmra.mrb[0].mxu0 %v1030
    %v1117 = vpop.f32.mrb[0].mxu0
    %v1118 = vadd.f32 0.0, %v1117
    %v1119 = vpop.f32.mrb[0].mxu0
    %1120 = vmatprep.mubr.f32.mxu0 0.0
    %1121 = vmatmul.mubr.f32.gmra.mrb[0].mxu0 %v1032
    %v1122 = vpop.f32.mrb[0].mxu0
    %v1123 = vadd.f32 0.0, %v1122
    %v1124 = vpop.f32.mrb[0].mxu0
    %1125 = vmatprep.mubr.f32.mxu0 0.0
    %1126 = vmatmul.mubr.f32.gmra.mrb[0].mxu0 %v1034
    %v1127 = vpop.f32.mrb[0].mxu0
    %v1128 = vadd.f32 0.0, %v1127
    %v1129 = vpop.f32.mrb[0].mxu0
    %1130 = vmatprep.mubr.f32.mxu0 0.0
    %1131 = vmatmul.mubr.f32.gmra.mrb[0].mxu0 %v1036
    %v1132 = vpop.f32.mrb[0].mxu0
    %v1133 = vadd.f32 0.0, %v1132
    %v1134 = vpop.f32.mrb[0].mxu0
    %1135 = vdwg.mxu0
    %v1136 = vmul.f32 %v790, %v1108
    %v1137 = vmul.f32 %v791, %v1113
    %v1138 = vmul.f32 %v792, %v1118
    %v1139 = vmul.f32 %v793, %v1123
    %v1140 = vmul.f32 %v794, %v1128
    %v1141 = vmul.f32 %v795, %v1133
    %vm1142 = vcmask 392192
    %v1144 = vsel %vm1142, %v205, 0
    %v1147 = vsel %vm1142, %v206, 0
    %1149 = vmatprep.subr.mxu0 0.0
    %1150 = vmatpush1.msra.mxu0 %v1136
    %1151 = vmatprep.subr.mxu0 0.0
    %1152 = vmatpush1.msra.mxu0 %v1137
    %1153 = vmatprep.subr.mxu0 0.0
    %1154 = vmatpush1.msra.mxu0 %v1138
    %1155 = vmatprep.subr.mxu0 0.0
    %1156 = vmatpush1.msra.mxu0 %v1139
    %1157 = vmatprep.subr.mxu0 0.0
    %1158 = vmatpush1.msra.mxu0 %v1140
    %1159 = vmatprep.subr.mxu0 0.0
    %1160 = vmatpush1.msra.mxu0 %v1141
    %1161 = vmatprep.subr.mxu0 0.0
    %1162 = vmatpush1.msra.mxu0 0.0
    %1163 = vmatprep.subr.mxu0 0.0
    %1164 = vmatpush1.msra.mxu0 0.0
    %1165 = vmatprep.subr.mxu0 0.0
    %1166 = vmatpush1.msra.mxu0 0.0
    %1167 = vmatprep.subr.mxu0 0.0
    %1168 = vmatpush1.msra.mxu0 0.0
    %1169 = vmatprep.subr.mxu0 0.0
    %1170 = vmatpush1.msra.mxu0 0.0
    %1171 = vmatprep.subr.mxu0 0.0
    %1172 = vmatpush1.msra.mxu0 0.0
    %1173 = vmatprep.subr.mxu0 0.0
    %1174 = vmatpush1.msra.mxu0 0.0
    %1175 = vmatprep.subr.mxu0 0.0
    %1176 = vmatpush1.msra.mxu0 0.0
    %1177 = vmatprep.subr.mxu0 0.0
    %1178 = vmatpush1.msra.mxu0 0.0
    %1179 = vmatprep.subr.mxu0 0.0
    %1180 = vmatpush1.msra.mxu0 0.0
    %1181 = vmatprep.subr.mxu0 0.0
    %1182 = vmatpush1.msra.mxu0 0.0
    %1183 = vmatprep.subr.mxu0 0.0
    %1184 = vmatpush1.msra.mxu0 0.0
    %1185 = vmatprep.subr.mxu0 0.0
    %1186 = vmatpush1.msra.mxu0 0.0
    %1187 = vmatprep.subr.mxu0 0.0
    %1188 = vmatpush1.msra.mxu0 0.0
    %1189 = vmatprep.subr.mxu0 0.0
    %1190 = vmatpush1.msra.mxu0 0.0
    %1191 = vmatprep.subr.mxu0 0.0
    %1192 = vmatpush1.msra.mxu0 0.0
    %1193 = vmatprep.subr.mxu0 0.0
    %1194 = vmatpush1.msra.mxu0 0.0
    %1195 = vmatprep.subr.mxu0 0.0
    %1196 = vmatpush1.msra.mxu0 0.0
    %1197 = vmatprep.subr.mxu0 0.0
    %1198 = vmatpush1.msra.mxu0 0.0
    %1199 = vmatprep.subr.mxu0 0.0
    %1200 = vmatpush1.msra.mxu0 0.0
    %1201 = vmatprep.subr.mxu0 0.0
    %1202 = vmatpush1.msra.mxu0 0.0
    %1203 = vmatprep.subr.mxu0 0.0
    %1204 = vmatpush1.msra.mxu0 0.0
    %1205 = vmatprep.subr.mxu0 0.0
    %1206 = vmatpush1.msra.mxu0 0.0
    %1207 = vmatprep.subr.mxu0 0.0
    %1208 = vmatpush1.msra.mxu0 0.0
    %1209 = vmatprep.subr.mxu0 0.0
    %1210 = vmatpush1.msra.mxu0 0.0
    %1211 = vmatprep.subr.mxu0 0.0
    %1212 = vmatpush1.msra.mxu0 0.0
    %1213 = vmatprep.mubr.f32.mxu0 0.0
    %1214 = vmatmul.mubr.f32.gmra.mrb[0].mxu0 %v1144
    %v1215 = vpop.f32.mrb[0].mxu0
    %v1216 = vadd.f32 0.0, %v1215
    %v1217 = vpop.f32.mrb[0].mxu0
    %1218 = vmatprep.mubr.f32.mxu0 0.0
    %1219 = vmatmul.mubr.f32.gmra.mrb[0].mxu0 %v1147
    %v1220 = vpop.f32.mrb[0].mxu0
    %v1221 = vadd.f32 0.0, %v1220
    %v1222 = vpop.f32.mrb[0].mxu0
    %1223 = vdwg.mxu0
    %1230 = vmatprep.subr.mxu0 0.0
    %1231 = vmatpush1.msra.mxu0 %v1014
    %1232 = vmatprep.subr.mxu0 0.0
    %1233 = vmatpush1.msra.mxu0 %v1016
    %1234 = vmatprep.subr.mxu0 0.0
    %1235 = vmatpush1.msra.mxu0 %v1018
    %1236 = vmatprep.subr.mxu0 0.0
    %1237 = vmatpush1.msra.mxu0 %v1020
    %1238 = vmatprep.subr.mxu0 0.0
    %1239 = vmatpush1.msra.mxu0 %v1022
    %1240 = vmatprep.subr.mxu0 0.0
    %1241 = vmatpush1.msra.mxu0 %v1024
    %1242 = vmatprep.subr.mxu0 0.0
    %1243 = vmatpush1.msra.mxu0 0.0
    %1244 = vmatprep.subr.mxu0 0.0
    %1245 = vmatpush1.msra.mxu0 0.0
    %1246 = vmatprep.subr.mxu0 0.0
    %1247 = vmatpush1.msra.mxu0 0.0
    %1248 = vmatprep.subr.mxu0 0.0
    %1249 = vmatpush1.msra.mxu0 0.0
    %1250 = vmatprep.subr.mxu0 0.0
    %1251 = vmatpush1.msra.mxu0 0.0
    %1252 = vmatprep.subr.mxu0 0.0
    %1253 = vmatpush1.msra.mxu0 0.0
    %1254 = vmatprep.subr.mxu0 0.0
    %1255 = vmatpush1.msra.mxu0 0.0
    %1256 = vmatprep.subr.mxu0 0.0
    %1257 = vmatpush1.msra.mxu0 0.0
    %1258 = vmatprep.subr.mxu0 0.0
    %1259 = vmatpush1.msra.mxu0 0.0
    %1260 = vmatprep.subr.mxu0 0.0
    %1261 = vmatpush1.msra.mxu0 0.0
    %1262 = vmatprep.subr.mxu0 0.0
    %1263 = vmatpush1.msra.mxu0 0.0
    %1264 = vmatprep.subr.mxu0 0.0
    %1265 = vmatpush1.msra.mxu0 0.0
    %1266 = vmatprep.subr.mxu0 0.0
    %1267 = vmatpush1.msra.mxu0 0.0
    %1268 = vmatprep.subr.mxu0 0.0
    %1269 = vmatpush1.msra.mxu0 0.0
    %1270 = vmatprep.subr.mxu0 0.0
    %1271 = vmatpush1.msra.mxu0 0.0
    %1272 = vmatprep.subr.mxu0 0.0
    %1273 = vmatpush1.msra.mxu0 0.0
    %1274 = vmatprep.subr.mxu0 0.0
    %1275 = vmatpush1.msra.mxu0 0.0
    %1276 = vmatprep.subr.mxu0 0.0
    %1277 = vmatpush1.msra.mxu0 0.0
    %1278 = vmatprep.subr.mxu0 0.0
    %1279 = vmatpush1.msra.mxu0 0.0
    %1280 = vmatprep.subr.mxu0 0.0
    %1281 = vmatpush1.msra.mxu0 0.0
    %1282 = vmatprep.subr.mxu0 0.0
    %1283 = vmatpush1.msra.mxu0 0.0
    %1284 = vmatprep.subr.mxu0 0.0
    %1285 = vmatpush1.msra.mxu0 0.0
    %1286 = vmatprep.subr.mxu0 0.0
    %1287 = vmatpush1.msra.mxu0 0.0
    %1288 = vmatprep.subr.mxu0 0.0
    %1289 = vmatpush1.msra.mxu0 0.0
    %1290 = vmatprep.subr.mxu0 0.0
    %1291 = vmatpush1.msra.mxu0 0.0
    %1292 = vmatprep.subr.mxu0 0.0
    %1293 = vmatpush1.msra.mxu0 0.0
    %1294 = vmatprep.mubr.f32.mxu0 0.0
    %1295 = vmatmul.mubr.f32.gmra.mrb[0].mxu0 %v1144
    %v1296 = vpop.f32.mrb[0].mxu0
    %v1297 = vadd.f32 1e-16, %v1296
    %v1298 = vpop.f32.mrb[0].mxu0
    %1299 = vmatprep.mubr.f32.mxu0 0.0
    %1300 = vmatmul.mubr.f32.gmra.mrb[0].mxu0 %v1147
    %v1301 = vpop.f32.mrb[0].mxu0
    %v1302 = vadd.f32 1e-16, %v1301
    %v1303 = vpop.f32.mrb[0].mxu0
    %1304 = vdwg.mxu0
    %v1305 = vrcp.pop %v1297
    %v1306 = vrcp.pop %v1302
    %1307 = vmatprep.subr.mxu0 0.0
    %1308 = vmatpush1.msra.mxu0 %v1305
    %1309 = vmatprep.subr.mxu0 0.0
    %1310 = vmatpush1.msra.mxu0 %v1306
    %1311 = vmatprep.subr.mxu0 0.0
    %1312 = vmatpush1.msra.mxu0 0.0
    %1313 = vmatprep.subr.mxu0 0.0
    %1314 = vmatpush1.msra.mxu0 0.0
    %1315 = vmatprep.subr.mxu0 0.0
    %1316 = vmatpush1.msra.mxu0 0.0
    %1317 = vmatprep.subr.mxu0 0.0
    %1318 = vmatpush1.msra.mxu0 0.0
    %1319 = vmatprep.subr.mxu0 0.0
    %1320 = vmatpush1.msra.mxu0 0.0
    %1321 = vmatprep.subr.mxu0 0.0
    %1322 = vmatpush1.msra.mxu0 0.0
    %1323 = vmatprep.subr.mxu0 0.0
    %1324 = vmatpush1.msra.mxu0 0.0
    %1325 = vmatprep.subr.mxu0 0.0
    %1326 = vmatpush1.msra.mxu0 0.0
    %1327 = vmatprep.subr.mxu0 0.0
    %1328 = vmatpush1.msra.mxu0 0.0
    %1329 = vmatprep.subr.mxu0 0.0
    %1330 = vmatpush1.msra.mxu0 0.0
    %1331 = vmatprep.subr.mxu0 0.0
    %1332 = vmatpush1.msra.mxu0 0.0
    %1333 = vmatprep.subr.mxu0 0.0
    %1334 = vmatpush1.msra.mxu0 0.0
    %1335 = vmatprep.subr.mxu0 0.0
    %1336 = vmatpush1.msra.mxu0 0.0
    %1337 = vmatprep.subr.mxu0 0.0
    %1338 = vmatpush1.msra.mxu0 0.0
    %1339 = vmatprep.subr.mxu0 0.0
    %1340 = vmatpush1.msra.mxu0 0.0
    %1341 = vmatprep.subr.mxu0 0.0
    %1342 = vmatpush1.msra.mxu0 0.0
    %1343 = vmatprep.subr.mxu0 0.0
    %1344 = vmatpush1.msra.mxu0 0.0
    %1345 = vmatprep.subr.mxu0 0.0
    %1346 = vmatpush1.msra.mxu0 0.0
    %1347 = vmatprep.subr.mxu0 0.0
    %1348 = vmatpush1.msra.mxu0 0.0
    %1349 = vmatprep.subr.mxu0 0.0
    %1350 = vmatpush1.msra.mxu0 0.0
    %1351 = vmatprep.subr.mxu0 0.0
    %1352 = vmatpush1.msra.mxu0 0.0
    %1353 = vmatprep.subr.mxu0 0.0
    %1354 = vmatpush1.msra.mxu0 0.0
    %1355 = vmatprep.subr.mxu0 0.0
    %1356 = vmatpush1.msra.mxu0 0.0
    %1357 = vmatprep.subr.mxu0 0.0
    %1358 = vmatpush1.msra.mxu0 0.0
    %1359 = vmatprep.subr.mxu0 0.0
    %1360 = vmatpush1.msra.mxu0 0.0
    %1361 = vmatprep.subr.mxu0 0.0
    %1362 = vmatpush1.msra.mxu0 0.0
    %1363 = vmatprep.subr.mxu0 0.0
    %1364 = vmatpush1.msra.mxu0 0.0
    %1365 = vmatprep.subr.mxu0 0.0
    %1366 = vmatpush1.msra.mxu0 0.0
    %1367 = vmatprep.subr.mxu0 0.0
    %1368 = vmatpush1.msra.mxu0 0.0
    %1369 = vmatprep.subr.mxu0 0.0
    %1370 = vmatpush1.msra.mxu0 0.0
    %1371 = vmatprep.mubr.f32.mxu0 0.0
    %1372 = vmatmul.mubr.f32.gmra.mrb[0].mxu0 %v807
    %v1373 = vpop.f32.mrb[0].mxu0
    %v1374 = vadd.f32 0.0, %v1373
    %v1375 = vpop.f32.mrb[0].mxu0
    %1376 = vmatprep.mubr.f32.mxu0 0.0
    %1377 = vmatmul.mubr.f32.gmra.mrb[0].mxu0 %v810
    %v1378 = vpop.f32.mrb[0].mxu0
    %v1379 = vadd.f32 0.0, %v1378
    %v1380 = vpop.f32.mrb[0].mxu0
    %1381 = vmatprep.mubr.f32.mxu0 0.0
    %1382 = vmatmul.mubr.f32.gmra.mrb[0].mxu0 %v813
    %v1383 = vpop.f32.mrb[0].mxu0
    %v1384 = vadd.f32 0.0, %v1383
    %v1385 = vpop.f32.mrb[0].mxu0
    %1386 = vmatprep.mubr.f32.mxu0 0.0
    %1387 = vmatmul.mubr.f32.gmra.mrb[0].mxu0 %v816
    %v1388 = vpop.f32.mrb[0].mxu0
    %v1389 = vadd.f32 0.0, %v1388
    %v1390 = vpop.f32.mrb[0].mxu0
    %1391 = vmatprep.mubr.f32.mxu0 0.0
    %1392 = vmatmul.mubr.f32.gmra.mrb[0].mxu0 %v819
    %v1393 = vpop.f32.mrb[0].mxu0
    %v1394 = vadd.f32 0.0, %v1393
    %v1395 = vpop.f32.mrb[0].mxu0
    %1396 = vmatprep.mubr.f32.mxu0 0.0
    %1397 = vmatmul.mubr.f32.gmra.mrb[0].mxu0 %v822
    %v1398 = vpop.f32.mrb[0].mxu0
    %v1399 = vadd.f32 0.0, %v1398
    %v1400 = vpop.f32.mrb[0].mxu0
    %1401 = vdwg.mxu0
    %1408 = vrot.lane.b32.xlu0 %v1374, 32
    %v1409 = vpop.permute.xlu0 %1408
    %1410 = vrot.lane.b32.xlu0 %v1379, 32
    %v1411 = vpop.permute.xlu0 %1410
    %1412 = vrot.lane.b32.xlu0 %v1384, 32
    %v1413 = vpop.permute.xlu0 %1412
    %1414 = vrot.lane.b32.xlu0 %v1389, 32
    %v1415 = vpop.permute.xlu0 %1414
    %1416 = vrot.lane.b32.xlu0 %v1394, 32
    %v1417 = vpop.permute.xlu0 %1416
    %1418 = vrot.lane.b32.xlu0 %v1399, 32
    %v1419 = vpop.permute.xlu0 %1418
    %v1426 = vmul.f32 %v996, %v1409
    %v1427 = vmul.f32 %v998, %v1411
    %v1428 = vmul.f32 %v1000, %v1413
    %v1429 = vmul.f32 %v1002, %v1415
    %v1430 = vmul.f32 %v1004, %v1417
    %v1431 = vmul.f32 %v1006, %v1419
    %1438 = vrot.lane.b32.xlu0 %v1426, 96
    %v1439 = vpop.permute.xlu0 %1438
    %1440 = vrot.lane.b32.xlu0 %v1427, 96
    %v1441 = vpop.permute.xlu0 %1440
    %1442 = vrot.lane.b32.xlu0 %v1428, 96
    %v1443 = vpop.permute.xlu0 %1442
    %1444 = vrot.lane.b32.xlu0 %v1429, 96
    %v1445 = vpop.permute.xlu0 %1444
    %1446 = vrot.lane.b32.xlu0 %v1430, 96
    %v1447 = vpop.permute.xlu0 %1446
    %1448 = vrot.lane.b32.xlu0 %v1431, 96
    %v1449 = vpop.permute.xlu0 %1448
    %1456 = vst.msk [vmem:[%s20] sm:$0xff] %vm1025, %v1439
    %1457 = vst.msk [vmem:[%s20 + $0x8] sm:$0xff] %vm1025, %v1441
    %1458 = vst.msk [vmem:[%s20 + $0x10] sm:$0xff] %vm1025, %v1443
    %1459 = vst.msk [vmem:[%s20 + $0x18] sm:$0xff] %vm1025, %v1445
    %1460 = vst.msk [vmem:[%s20 + $0x20] sm:$0xff] %vm1025, %v1447
    %1461 = vst.msk [vmem:[%s20 + $0x28] sm:$0xff] %vm1025, %v1449
    %v1463 = vsel %vm1025, %v1305, 0
    %v1466 = vsel %vm1025, %v1306, 0
    %1468 = vmatprep.subr.mxu0 0.0
    %1469 = vmatpush1.msra.mxu0 %v1039
    %1470 = vmatprep.subr.mxu0 0.0
    %1471 = vmatpush1.msra.mxu0 0.0
    %1472 = vmatprep.subr.mxu0 0.0
    %1473 = vmatpush1.msra.mxu0 0.0
    %1474 = vmatprep.subr.mxu0 0.0
    %1475 = vmatpush1.msra.mxu0 0.0
    %1476 = vmatprep.subr.mxu0 0.0
    %1477 = vmatpush1.msra.mxu0 0.0
    %1478 = vmatprep.subr.mxu0 0.0
    %1479 = vmatpush1.msra.mxu0 0.0
    %1480 = vmatprep.subr.mxu0 0.0
    %1481 = vmatpush1.msra.mxu0 0.0
    %1482 = vmatprep.subr.mxu0 0.0
    %1483 = vmatpush1.msra.mxu0 0.0
    %1484 = vmatprep.subr.mxu0 0.0
    %1485 = vmatpush1.msra.mxu0 0.0
    %1486 = vmatprep.subr.mxu0 0.0
    %1487 = vmatpush1.msra.mxu0 0.0
    %1488 = vmatprep.subr.mxu0 0.0
    %1489 = vmatpush1.msra.mxu0 0.0
    %1490 = vmatprep.subr.mxu0 0.0
    %1491 = vmatpush1.msra.mxu0 0.0
    %1492 = vmatprep.subr.mxu0 0.0
    %1493 = vmatpush1.msra.mxu0 0.0
    %1494 = vmatprep.subr.mxu0 0.0
    %1495 = vmatpush1.msra.mxu0 0.0
    %1496 = vmatprep.subr.mxu0 0.0
    %1497 = vmatpush1.msra.mxu0 0.0
    %1498 = vmatprep.subr.mxu0 0.0
    %1499 = vmatpush1.msra.mxu0 0.0
    %1500 = vmatprep.subr.mxu0 0.0
    %1501 = vmatpush1.msra.mxu0 0.0
    %1502 = vmatprep.subr.mxu0 0.0
    %1503 = vmatpush1.msra.mxu0 0.0
    %1504 = vmatprep.subr.mxu0 0.0
    %1505 = vmatpush1.msra.mxu0 0.0
    %1506 = vmatprep.subr.mxu0 0.0
    %1507 = vmatpush1.msra.mxu0 0.0
    %1508 = vmatprep.subr.mxu0 0.0
    %1509 = vmatpush1.msra.mxu0 0.0
    %1510 = vmatprep.subr.mxu0 0.0
    %1511 = vmatpush1.msra.mxu0 0.0
    %1512 = vmatprep.subr.mxu0 0.0
    %1513 = vmatpush1.msra.mxu0 0.0
    %1514 = vmatprep.subr.mxu0 0.0
    %1515 = vmatpush1.msra.mxu0 0.0
    %1516 = vmatprep.subr.mxu0 0.0
    %1517 = vmatpush1.msra.mxu0 0.0
    %1518 = vmatprep.subr.mxu0 0.0
    %1519 = vmatpush1.msra.mxu0 0.0
    %1520 = vmatprep.subr.mxu0 0.0
    %1521 = vmatpush1.msra.mxu0 0.0
    %1522 = vmatprep.subr.mxu0 0.0
    %1523 = vmatpush1.msra.mxu0 0.0
    %1524 = vmatprep.subr.mxu0 0.0
    %1525 = vmatpush1.msra.mxu0 0.0
    %1526 = vmatprep.subr.mxu0 0.0
    %1527 = vmatpush1.msra.mxu0 0.0
    %1528 = vmatprep.subr.mxu0 0.0
    %1529 = vmatpush1.msra.mxu0 0.0
    %1530 = vmatprep.subr.mxu0 0.0
    %1531 = vmatpush1.msra.mxu0 0.0
    %1532 = vmatprep.mubr.f32.mxu0 0.0
    %1533 = vmatmul.mubr.f32.gmra.mrb[0].mxu0 %v1463
    %v1534 = vpop.f32.mrb[0].mxu0
    %v1535 = vadd.f32 0.0, %v1534
    %v1536 = vpop.f32.mrb[0].mxu0
    %1537 = vmatprep.mubr.f32.mxu0 0.0
    %1538 = vmatmul.mubr.f32.gmra.mrb[0].mxu0 %v1466
    %v1539 = vpop.f32.mrb[0].mxu0
    %v1540 = vadd.f32 0.0, %v1539
    %v1541 = vpop.f32.mrb[0].mxu0
    %1542 = vdwg.mxu0
    %v1543 = vmul.f32 %v1216, %v1535
    %v1544 = vmul.f32 %v1221, %v1540
    %v1545 = vld [vmem:[#allocation17] sm:$0x1]
    %v1547 = vlaneseq
    %v1548 = vshrl.u32 %v1547, 7
    %v1549 = vsub.s32 0, %v1548
    %v1550 = vrot.slane %v1545, %v1549
    %v1552 = vadd.f32 %v1543, %v1550
    %v1553 = vadd.f32 %v1544, %v1550
    %v1554 = vmax.f32 %v1552, 0.0
    %v1555 = vmax.f32 %v1553, 0.0
    %s1556 = scalar_lea.vmem [#allocation14], 1
    %v1557 = vld [vmem:[%s1556] sm:$0x1]
    %v1559 = vlaneseq
    %v1560 = vshrl.u32 %v1559, 7
    %v1561 = vsub.s32 0, %v1560
    %v1562 = vrot.slane %v1557, %v1561
    %v1564 = vmul.f32 %v1554, %v1562
    %v1565 = vmul.f32 %v1555, %v1562
    %s1566 = scalar_lea.vmem [#allocation15], 1
    %v1567 = vld [vmem:[%s1566] sm:$0x1]
    %v1569 = vlaneseq
    %v1570 = vshrl.u32 %v1569, 7
    %v1571 = vsub.s32 0, %v1570
    %v1572 = vrot.slane %v1567, %v1571
    %v1574 = vadd.f32 %v1564, %v1572
    %v1575 = vadd.f32 %v1565, %v1572
    %v1576 = vpack.c.bf16 %v1575, %v1574
    %s1577 = scalar_lea.vmem %s9, 16
    %v1578 = vld [vmem:[%s1577] sm:$0xf]
    %v1579 = vld [vmem:[%s1577 + $0x4] sm:$0xf]
    %v1580 = vld [vmem:[%s1577 + $0x8] sm:$0xf]
    %v1581 = vld [vmem:[%s1577 + $0xc] sm:$0xf]
    %v1586 = vunpack.c.l.b16 %v1578
    %v1587 = vunpack.c.l.b16 %v1579
    %v1588 = vunpack.c.l.b16 %v1580
    %v1589 = vunpack.c.l.b16 %v1581
    %v1590 = vpack.c.b16 %v1587, %v1586
    %v1591 = vpack.c.b16 %v1589, %v1588
    %v1595 = vsel %vm370, %v1576, 0
    %1597 = vmatprep.subr.bf16.mxu0 0
    %1598 = vmatpush1.bf16.msra.mxu0 %v1590
    %1599 = vmatprep.subr.bf16.mxu0 0
    %1600 = vmatpush1.bf16.msra.mxu0 %v1591
    %1601 = vmatprep.subr.bf16.mxu0 0
    %1602 = vmatpush1.bf16.msra.mxu0 0
    %1603 = vmatprep.subr.bf16.mxu0 0
    %1604 = vmatpush1.bf16.msra.mxu0 0
    %1605 = vmatprep.subr.bf16.mxu0 0
    %1606 = vmatpush1.bf16.msra.mxu0 0
    %1607 = vmatprep.subr.bf16.mxu0 0
    %1608 = vmatpush1.bf16.msra.mxu0 0
    %1609 = vmatprep.subr.bf16.mxu0 0
    %1610 = vmatpush1.bf16.msra.mxu0 0
    %1611 = vmatprep.subr.bf16.mxu0 0
    %1612 = vmatpush1.bf16.msra.mxu0 0
    %1613 = vmatprep.subr.bf16.mxu0 0
    %1614 = vmatpush1.bf16.msra.mxu0 0
    %1615 = vmatprep.subr.bf16.mxu0 0
    %1616 = vmatpush1.bf16.msra.mxu0 0
    %1617 = vmatprep.subr.bf16.mxu0 0
    %1618 = vmatpush1.bf16.msra.mxu0 0
    %1619 = vmatprep.subr.bf16.mxu0 0
    %1620 = vmatpush1.bf16.msra.mxu0 0
    %1621 = vmatprep.subr.bf16.mxu0 0
    %1622 = vmatpush1.bf16.msra.mxu0 0
    %1623 = vmatprep.subr.bf16.mxu0 0
    %1624 = vmatpush1.bf16.msra.mxu0 0
    %1625 = vmatprep.subr.bf16.mxu0 0
    %1626 = vmatpush1.bf16.msra.mxu0 0
    %1627 = vmatprep.subr.bf16.mxu0 0
    %1628 = vmatpush1.bf16.msra.mxu0 0
    %1629 = vmatprep.mubr.bf16.mxu0 0
    %1630 = vmatmul.mubr.bf16.gmra.mrb[0].mxu0 %v1595
    %v1631 = vpop.f32.mrb[0].mxu0
    %v1632 = vadd.f32 0.0, %v1631
    %v1633 = vpop.f32.mrb[0].mxu0
    %v1634 = vpop.f32.mrb[0].mxu0
    %v1635 = vadd.f32 0.0, %v1634
    %v1636 = vpop.f32.mrb[0].mxu0
    %1637 = vdwg.mxu0
    %1638 = vst.msk [vmem:[#allocation2] sm:$0xff] %vm415, %v1632
    %1639 = vst.msk [vmem:[#allocation2 + $0x8] sm:$0xff] %vm415, %v1635
    %s1640 = sld [smem:[#allocation4]]
    %s1641 = scalar_lea.vmem [#allocation2], %s1640
    %v1642 = vld [vmem:[%s1641] sm:$0x1]
    %s1643 = sld [smem:[#allocation4 + %s421]]
    %s1644 = scalar_lea.vmem [#allocation2], %s1643
    %v1645 = vld [vmem:[%s1644] sm:$0x1]
    %s1646 = sld [smem:[#allocation4 + %s425]]
    %s1647 = scalar_lea.vmem [#allocation2], %s1646
    %v1648 = vld [vmem:[%s1647] sm:$0x1]
    %s1649 = sld [smem:[#allocation4 + %s429]]
    %s1650 = scalar_lea.vmem [#allocation2], %s1649
    %v1651 = vld [vmem:[%s1650] sm:$0x1]
    %s1652 = sld [smem:[#allocation4 + %s433]]
    %s1653 = scalar_lea.vmem [#allocation2], %s1652
    %v1654 = vld [vmem:[%s1653] sm:$0x1]
    %s1655 = sld [smem:[#allocation4 + %s437]]
    %s1656 = scalar_lea.vmem [#allocation2], %s1655
    %v1657 = vld [vmem:[%s1656] sm:$0x1]
    %s1658 = sld [smem:[#allocation4 + %s441]]
    %s1659 = scalar_lea.vmem [#allocation2], %s1658
    %v1660 = vld [vmem:[%s1659] sm:$0x1]
    %s1661 = sld [smem:[#allocation4 + %s445]]
    %s1662 = scalar_lea.vmem [#allocation2], %s1661
    %v1663 = vld [vmem:[%s1662] sm:$0x1]
    %v1665 = vrot.slane %v1645, 7
    %v1668 = vrot.slane %v1648, 6
    %v1671 = vrot.slane %v1651, 5
    %v1674 = vrot.slane %v1654, 4
    %v1677 = vrot.slane %v1657, 3
    %v1680 = vrot.slane %v1660, 2
    %v1683 = vrot.slane %v1663, 1
    %v1685 = vsel %vm470, %v1642, %v1665
    %v1686 = vsel %vm472, %v1685, %v1668
    %v1687 = vsel %vm474, %v1686, %v1671
    %v1688 = vsel %vm476, %v1687, %v1674
    %v1689 = vsel %vm478, %v1688, %v1677
    %v1690 = vsel %vm480, %v1689, %v1680
    %v1691 = vsel %vm482, %v1690, %v1683
    %1692 = vst.msk [vmem:[#allocation3] sm:$0xff] %vm415, %v1691
    %s1693 = sld [smem:[#allocation4 + $0x8]]
    %s1694 = scalar_lea.vmem [#allocation2], %s1693
    %v1695 = vld [vmem:[%s1694] sm:$0x1]
    %s1696 = sld [smem:[#allocation4 + %s488]]
    %s1697 = scalar_lea.vmem [#allocation2], %s1696
    %v1698 = vld [vmem:[%s1697] sm:$0x1]
    %s1699 = sld [smem:[#allocation4 + %s492]]
    %s1700 = scalar_lea.vmem [#allocation2], %s1699
    %v1701 = vld [vmem:[%s1700] sm:$0x1]
    %s1702 = sld [smem:[#allocation4 + %s496]]
    %s1703 = scalar_lea.vmem [#allocation2], %s1702
    %v1704 = vld [vmem:[%s1703] sm:$0x1]
    %s1705 = sld [smem:[#allocation4 + %s500]]
    %s1706 = scalar_lea.vmem [#allocation2], %s1705
    %v1707 = vld [vmem:[%s1706] sm:$0x1]
    %s1708 = sld [smem:[#allocation4 + %s504]]
    %s1709 = scalar_lea.vmem [#allocation2], %s1708
    %v1710 = vld [vmem:[%s1709] sm:$0x1]
    %s1711 = sld [smem:[#allocation4 + %s508]]
    %s1712 = scalar_lea.vmem [#allocation2], %s1711
    %v1713 = vld [vmem:[%s1712] sm:$0x1]
    %s1714 = sld [smem:[#allocation4 + %s512]]
    %s1715 = scalar_lea.vmem [#allocation2], %s1714
    %v1716 = vld [vmem:[%s1715] sm:$0x1]
    %v1718 = vrot.slane %v1698, 7
    %v1721 = vrot.slane %v1701, 6
    %v1724 = vrot.slane %v1704, 5
    %v1727 = vrot.slane %v1707, 4
    %v1730 = vrot.slane %v1710, 3
    %v1733 = vrot.slane %v1713, 2
    %v1736 = vrot.slane %v1716, 1
    %v1738 = vsel %vm470, %v1695, %v1718
    %v1739 = vsel %vm472, %v1738, %v1721
    %v1740 = vsel %vm474, %v1739, %v1724
    %v1741 = vsel %vm476, %v1740, %v1727
    %v1742 = vsel %vm478, %v1741, %v1730
    %v1743 = vsel %vm480, %v1742, %v1733
    %v1744 = vsel %vm482, %v1743, %v1736
    %1745 = vst.msk [vmem:[%s544] sm:$0xff] %vm415, %v1744
    %s1746 = sld [smem:[#allocation4 + $0x10]]
    %s1747 = scalar_lea.vmem [#allocation2], %s1746
    %v1748 = vld [vmem:[%s1747] sm:$0x1]
    %s1749 = sld [smem:[#allocation4 + %s549]]
    %s1750 = scalar_lea.vmem [#allocation2], %s1749
    %v1751 = vld [vmem:[%s1750] sm:$0x1]
    %s1752 = sld [smem:[#allocation4 + %s553]]
    %s1753 = scalar_lea.vmem [#allocation2], %s1752
    %v1754 = vld [vmem:[%s1753] sm:$0x1]
    %s1755 = sld [smem:[#allocation4 + %s557]]
    %s1756 = scalar_lea.vmem [#allocation2], %s1755
    %v1757 = vld [vmem:[%s1756] sm:$0x1]
    %s1758 = sld [smem:[#allocation4 + %s561]]
    %s1759 = scalar_lea.vmem [#allocation2], %s1758
    %v1760 = vld [vmem:[%s1759] sm:$0x1]
    %s1761 = sld [smem:[#allocation4 + %s565]]
    %s1762 = scalar_lea.vmem [#allocation2], %s1761
    %v1763 = vld [vmem:[%s1762] sm:$0x1]
    %s1764 = sld [smem:[#allocation4 + %s569]]
    %s1765 = scalar_lea.vmem [#allocation2], %s1764
    %v1766 = vld [vmem:[%s1765] sm:$0x1]
    %s1767 = sld [smem:[#allocation4 + %s573]]
    %s1768 = scalar_lea.vmem [#allocation2], %s1767
    %v1769 = vld [vmem:[%s1768] sm:$0x1]
    %v1771 = vrot.slane %v1751, 7
    %v1774 = vrot.slane %v1754, 6
    %v1777 = vrot.slane %v1757, 5
    %v1780 = vrot.slane %v1760, 4
    %v1783 = vrot.slane %v1763, 3
    %v1786 = vrot.slane %v1766, 2
    %v1789 = vrot.slane %v1769, 1
    %v1791 = vsel %vm470, %v1748, %v1771
    %v1792 = vsel %vm472, %v1791, %v1774
    %v1793 = vsel %vm474, %v1792, %v1777
    %v1794 = vsel %vm476, %v1793, %v1780
    %v1795 = vsel %vm478, %v1794, %v1783
    %v1796 = vsel %vm480, %v1795, %v1786
    %v1797 = vsel %vm482, %v1796, %v1789
    %1798 = vst.msk [vmem:[%s605] sm:$0xff] %vm415, %v1797
    %s1799 = sld [smem:[#allocation4 + $0x18]]
    %s1800 = scalar_lea.vmem [#allocation2], %s1799
    %v1801 = vld [vmem:[%s1800] sm:$0x1]
    %s1802 = sld [smem:[#allocation4 + %s610]]
    %s1803 = scalar_lea.vmem [#allocation2], %s1802
    %v1804 = vld [vmem:[%s1803] sm:$0x1]
    %s1805 = sld [smem:[#allocation4 + %s614]]
    %s1806 = scalar_lea.vmem [#allocation2], %s1805
    %v1807 = vld [vmem:[%s1806] sm:$0x1]
    %s1808 = sld [smem:[#allocation4 + %s618]]
    %s1809 = scalar_lea.vmem [#allocation2], %s1808
    %v1810 = vld [vmem:[%s1809] sm:$0x1]
    %s1811 = sld [smem:[#allocation4 + %s622]]
    %s1812 = scalar_lea.vmem [#allocation2], %s1811
    %v1813 = vld [vmem:[%s1812] sm:$0x1]
    %s1814 = sld [smem:[#allocation4 + %s626]]
    %s1815 = scalar_lea.vmem [#allocation2], %s1814
    %v1816 = vld [vmem:[%s1815] sm:$0x1]
    %s1817 = sld [smem:[#allocation4 + %s630]]
    %s1818 = scalar_lea.vmem [#allocation2], %s1817
    %v1819 = vld [vmem:[%s1818] sm:$0x1]
    %s1820 = sld [smem:[#allocation4 + %s634]]
    %s1821 = scalar_lea.vmem [#allocation2], %s1820
    %v1822 = vld [vmem:[%s1821] sm:$0x1]
    %v1824 = vrot.slane %v1804, 7
    %v1827 = vrot.slane %v1807, 6
    %v1830 = vrot.slane %v1810, 5
    %v1833 = vrot.slane %v1813, 4
    %v1836 = vrot.slane %v1816, 3
    %v1839 = vrot.slane %v1819, 2
    %v1842 = vrot.slane %v1822, 1
    %v1844 = vsel %vm470, %v1801, %v1824
    %v1845 = vsel %vm472, %v1844, %v1827
    %v1846 = vsel %vm474, %v1845, %v1830
    %v1847 = vsel %vm476, %v1846, %v1833
    %v1848 = vsel %vm478, %v1847, %v1836
    %v1849 = vsel %vm480, %v1848, %v1839
    %v1850 = vsel %vm482, %v1849, %v1842
    %1851 = vst.msk [vmem:[%s666] sm:$0xff] %vm415, %v1850
    %s1852 = sld [smem:[#allocation4 + $0x20]]
    %s1853 = scalar_lea.vmem [#allocation2], %s1852
    %v1854 = vld [vmem:[%s1853] sm:$0x1]
    %s1855 = sld [smem:[#allocation4 + %s671]]
    %s1856 = scalar_lea.vmem [#allocation2], %s1855
    %v1857 = vld [vmem:[%s1856] sm:$0x1]
    %s1858 = sld [smem:[#allocation4 + %s675]]
    %s1859 = scalar_lea.vmem [#allocation2], %s1858
    %v1860 = vld [vmem:[%s1859] sm:$0x1]
    %s1861 = sld [smem:[#allocation4 + %s679]]
    %s1862 = scalar_lea.vmem [#allocation2], %s1861
    %v1863 = vld [vmem:[%s1862] sm:$0x1]
    %s1864 = sld [smem:[#allocation4 + %s683]]
    %s1865 = scalar_lea.vmem [#allocation2], %s1864
    %v1866 = vld [vmem:[%s1865] sm:$0x1]
    %s1867 = sld [smem:[#allocation4 + %s687]]
    %s1868 = scalar_lea.vmem [#allocation2], %s1867
    %v1869 = vld [vmem:[%s1868] sm:$0x1]
    %s1870 = sld [smem:[#allocation4 + %s691]]
    %s1871 = scalar_lea.vmem [#allocation2], %s1870
    %v1872 = vld [vmem:[%s1871] sm:$0x1]
    %s1873 = sld [smem:[#allocation4 + %s695]]
    %s1874 = scalar_lea.vmem [#allocation2], %s1873
    %v1875 = vld [vmem:[%s1874] sm:$0x1]
    %v1877 = vrot.slane %v1857, 7
    %v1880 = vrot.slane %v1860, 6
    %v1883 = vrot.slane %v1863, 5
    %v1886 = vrot.slane %v1866, 4
    %v1889 = vrot.slane %v1869, 3
    %v1892 = vrot.slane %v1872, 2
    %v1895 = vrot.slane %v1875, 1
    %v1897 = vsel %vm470, %v1854, %v1877
    %v1898 = vsel %vm472, %v1897, %v1880
    %v1899 = vsel %vm474, %v1898, %v1883
    %v1900 = vsel %vm476, %v1899, %v1886
    %v1901 = vsel %vm478, %v1900, %v1889
    %v1902 = vsel %vm480, %v1901, %v1892
    %v1903 = vsel %vm482, %v1902, %v1895
    %1904 = vst.msk [vmem:[%s727] sm:$0xff] %vm415, %v1903
    %s1905 = sld [smem:[#allocation4 + $0x28]]
    %s1906 = scalar_lea.vmem [#allocation2], %s1905
    %v1907 = vld [vmem:[%s1906] sm:$0x1]
    %s1908 = sld [smem:[#allocation4 + %s732]]
    %s1909 = scalar_lea.vmem [#allocation2], %s1908
    %v1910 = vld [vmem:[%s1909] sm:$0x1]
    %s1911 = sld [smem:[#allocation4 + %s736]]
    %s1912 = scalar_lea.vmem [#allocation2], %s1911
    %v1913 = vld [vmem:[%s1912] sm:$0x1]
    %s1914 = sld [smem:[#allocation4 + %s740]]
    %s1915 = scalar_lea.vmem [#allocation2], %s1914
    %v1916 = vld [vmem:[%s1915] sm:$0x1]
    %s1917 = sld [smem:[#allocation4 + %s744]]
    %s1918 = scalar_lea.vmem [#allocation2], %s1917
    %v1919 = vld [vmem:[%s1918] sm:$0x1]
    %s1920 = sld [smem:[#allocation4 + %s748]]
    %s1921 = scalar_lea.vmem [#allocation2], %s1920
    %v1922 = vld [vmem:[%s1921] sm:$0x1]
    %s1923 = sld [smem:[#allocation4 + %s752]]
    %s1924 = scalar_lea.vmem [#allocation2], %s1923
    %v1925 = vld [vmem:[%s1924] sm:$0x1]
    %s1926 = sld [smem:[#allocation4 + %s756]]
    %s1927 = scalar_lea.vmem [#allocation2], %s1926
    %v1928 = vld [vmem:[%s1927] sm:$0x1]
    %v1930 = vrot.slane %v1910, 7
    %v1933 = vrot.slane %v1913, 6
    %v1936 = vrot.slane %v1916, 5
    %v1939 = vrot.slane %v1919, 4
    %v1942 = vrot.slane %v1922, 3
    %v1945 = vrot.slane %v1925, 2
    %v1948 = vrot.slane %v1928, 1
    %v1950 = vsel %vm470, %v1907, %v1930
    %v1951 = vsel %vm472, %v1950, %v1933
    %v1952 = vsel %vm474, %v1951, %v1936
    %v1953 = vsel %vm476, %v1952, %v1939
    %v1954 = vsel %vm478, %v1953, %v1942
    %v1955 = vsel %vm480, %v1954, %v1945
    %v1956 = vsel %vm482, %v1955, %v1948
    %1957 = vst.msk [vmem:[%s788] sm:$0xff] %vm415, %v1956
    %v1958 = vld [vmem:[#allocation3] sm:$0xff]
    %v1959 = vld [vmem:[#allocation3 + $0x8] sm:$0xff]
    %v1960 = vld [vmem:[#allocation3 + $0x10] sm:$0xff]
    %v1961 = vld [vmem:[#allocation3 + $0x18] sm:$0xff]
    %v1962 = vld [vmem:[#allocation3 + $0x20] sm:$0xff]
    %v1963 = vld [vmem:[#allocation3 + $0x28] sm:$0xff]
    %v1964 = vld [vmem:[#allocation2] sm:$0xff]
    %v1965 = vld [vmem:[#allocation2 + $0x8] sm:$0xff]
    %1968 = vrot.lane.b32.xlu0 %v1964, 92
    %v1969 = vpop.permute.xlu0 %1968
    %1970 = vrot.lane.b32.xlu0 %v1965, 92
    %v1971 = vpop.permute.xlu0 %1970
    %1974 = vmatprep.subr.mxu0 0.0
    %1975 = vmatpush1.msra.mxu0 %v1969
    %1976 = vmatprep.subr.mxu0 0.0
    %1977 = vmatpush1.msra.mxu0 %v1971
    %1978 = vmatprep.subr.mxu0 0.0
    %1979 = vmatpush1.msra.mxu0 0.0
    %1980 = vmatprep.subr.mxu0 0.0
    %1981 = vmatpush1.msra.mxu0 0.0
    %1982 = vmatprep.subr.mxu0 0.0
    %1983 = vmatpush1.msra.mxu0 0.0
    %1984 = vmatprep.subr.mxu0 0.0
    %1985 = vmatpush1.msra.mxu0 0.0
    %1986 = vmatprep.subr.mxu0 0.0
    %1987 = vmatpush1.msra.mxu0 0.0
    %1988 = vmatprep.subr.mxu0 0.0
    %1989 = vmatpush1.msra.mxu0 0.0
    %1990 = vmatprep.subr.mxu0 0.0
    %1991 = vmatpush1.msra.mxu0 0.0
    %1992 = vmatprep.subr.mxu0 0.0
    %1993 = vmatpush1.msra.mxu0 0.0
    %1994 = vmatprep.subr.mxu0 0.0
    %1995 = vmatpush1.msra.mxu0 0.0
    %1996 = vmatprep.subr.mxu0 0.0
    %1997 = vmatpush1.msra.mxu0 0.0
    %1998 = vmatprep.subr.mxu0 0.0
    %1999 = vmatpush1.msra.mxu0 0.0
    %2000 = vmatprep.subr.mxu0 0.0
    %2001 = vmatpush1.msra.mxu0 0.0
    %2002 = vmatprep.subr.mxu0 0.0
    %2003 = vmatpush1.msra.mxu0 0.0
    %2004 = vmatprep.subr.mxu0 0.0
    %2005 = vmatpush1.msra.mxu0 0.0
    %2006 = vmatprep.subr.mxu0 0.0
    %2007 = vmatpush1.msra.mxu0 0.0
    %2008 = vmatprep.subr.mxu0 0.0
    %2009 = vmatpush1.msra.mxu0 0.0
    %2010 = vmatprep.subr.mxu0 0.0
    %2011 = vmatpush1.msra.mxu0 0.0
    %2012 = vmatprep.subr.mxu0 0.0
    %2013 = vmatpush1.msra.mxu0 0.0
    %2014 = vmatprep.subr.mxu0 0.0
    %2015 = vmatpush1.msra.mxu0 0.0
    %2016 = vmatprep.subr.mxu0 0.0
    %2017 = vmatpush1.msra.mxu0 0.0
    %2018 = vmatprep.subr.mxu0 0.0
    %2019 = vmatpush1.msra.mxu0 0.0
    %2020 = vmatprep.subr.mxu0 0.0
    %2021 = vmatpush1.msra.mxu0 0.0
    %2022 = vmatprep.subr.mxu0 0.0
    %2023 = vmatpush1.msra.mxu0 0.0
    %2024 = vmatprep.subr.mxu0 0.0
    %2025 = vmatpush1.msra.mxu0 0.0
    %2026 = vmatprep.subr.mxu0 0.0
    %2027 = vmatpush1.msra.mxu0 0.0
    %2028 = vmatprep.subr.mxu0 0.0
    %2029 = vmatpush1.msra.mxu0 0.0
    %2030 = vmatprep.subr.mxu0 0.0
    %2031 = vmatpush1.msra.mxu0 0.0
    %2032 = vmatprep.subr.mxu0 0.0
    %2033 = vmatpush1.msra.mxu0 0.0
    %2034 = vmatprep.subr.mxu0 0.0
    %2035 = vmatpush1.msra.mxu0 0.0
    %2036 = vmatprep.subr.mxu0 0.0
    %2037 = vmatpush1.msra.mxu0 0.0
    %2038 = vmatprep.mubr.f32.mxu0 0.0
    %2039 = vmatmul.mubr.f32.gmra.mrb[0].mxu0 %v807
    %v2040 = vpop.f32.mrb[0].mxu0
    %v2041 = vadd.f32 0.0, %v2040
    %v2042 = vpop.f32.mrb[0].mxu0
    %2043 = vmatprep.mubr.f32.mxu0 0.0
    %2044 = vmatmul.mubr.f32.gmra.mrb[0].mxu0 %v810
    %v2045 = vpop.f32.mrb[0].mxu0
    %v2046 = vadd.f32 0.0, %v2045
    %v2047 = vpop.f32.mrb[0].mxu0
    %2048 = vmatprep.mubr.f32.mxu0 0.0
    %2049 = vmatmul.mubr.f32.gmra.mrb[0].mxu0 %v813
    %v2050 = vpop.f32.mrb[0].mxu0
    %v2051 = vadd.f32 0.0, %v2050
    %v2052 = vpop.f32.mrb[0].mxu0
    %2053 = vmatprep.mubr.f32.mxu0 0.0
    %2054 = vmatmul.mubr.f32.gmra.mrb[0].mxu0 %v816
    %v2055 = vpop.f32.mrb[0].mxu0
    %v2056 = vadd.f32 0.0, %v2055
    %v2057 = vpop.f32.mrb[0].mxu0
    %2058 = vmatprep.mubr.f32.mxu0 0.0
    %2059 = vmatmul.mubr.f32.gmra.mrb[0].mxu0 %v819
    %v2060 = vpop.f32.mrb[0].mxu0
    %v2061 = vadd.f32 0.0, %v2060
    %v2062 = vpop.f32.mrb[0].mxu0
    %2063 = vmatprep.mubr.f32.mxu0 0.0
    %2064 = vmatmul.mubr.f32.gmra.mrb[0].mxu0 %v822
    %v2065 = vpop.f32.mrb[0].mxu0
    %v2066 = vadd.f32 0.0, %v2065
    %v2067 = vpop.f32.mrb[0].mxu0
    %2068 = vdwg.mxu0
    %2075 = vrot.lane.b32.xlu0 %v2041, 32
    %v2076 = vpop.permute.xlu0 %2075
    %2077 = vrot.lane.b32.xlu0 %v2046, 32
    %v2078 = vpop.permute.xlu0 %2077
    %2079 = vrot.lane.b32.xlu0 %v2051, 32
    %v2080 = vpop.permute.xlu0 %2079
    %2081 = vrot.lane.b32.xlu0 %v2056, 32
    %v2082 = vpop.permute.xlu0 %2081
    %2083 = vrot.lane.b32.xlu0 %v2061, 32
    %v2084 = vpop.permute.xlu0 %2083
    %2085 = vrot.lane.b32.xlu0 %v2066, 32
    %v2086 = vpop.permute.xlu0 %2085
    %v2093 = vadd.f32 %v1958, %v2076
    %v2094 = vadd.f32 %v1959, %v2078
    %v2095 = vadd.f32 %v1960, %v2080
    %v2096 = vadd.f32 %v1961, %v2082
    %v2097 = vadd.f32 %v1962, %v2084
    %v2098 = vadd.f32 %v1963, %v2086
    %vm2099 = vcmp.gt.f32.partialorder %v2093, 0.0
    %vm2100 = vcmp.gt.f32.partialorder %v2094, 0.0
    %vm2101 = vcmp.gt.f32.partialorder %v2095, 0.0
    %vm2102 = vcmp.gt.f32.partialorder %v2096, 0.0
    %vm2103 = vcmp.gt.f32.partialorder %v2097, 0.0
    %vm2104 = vcmp.gt.f32.partialorder %v2098, 0.0
    %v2105 = vmul.f32 %v2093, 0.2
    %v2106 = vmul.f32 %v2094, 0.2
    %v2107 = vmul.f32 %v2095, 0.2
    %v2108 = vmul.f32 %v2096, 0.2
    %v2109 = vmul.f32 %v2097, 0.2
    %v2110 = vmul.f32 %v2098, 0.2
    %v2111 = vsel %vm2099, %v2093, %v2105
    %v2112 = vsel %vm2100, %v2094, %v2106
    %v2113 = vsel %vm2101, %v2095, %v2107
    %v2114 = vsel %vm2102, %v2096, %v2108
    %v2115 = vsel %vm2103, %v2097, %v2109
    %v2116 = vsel %vm2104, %v2098, %v2110
    %v2117 = vsel %vm967, %v2111, -inf
    %v2118 = vsel %vm967, %v2112, -inf
    %v2119 = vsel %vm967, %v2113, -inf
    %v2120 = vsel %vm967, %v2114, -inf
    %v2121 = vsel %vm967, %v2115, -inf
    %v2122 = vmax.f32 %v2117, %v2121
    %v2123 = vsel %vm967, %v2116, -inf
    %v2124 = vmax.f32 %v2118, %v2123
    %v2125 = vmax.f32 %v2122, %v2124
    %v2126 = vmax.f32 %v2119, %v2120
    %v2127 = vmax.f32 %v2125, %v2126
    %2128 = vmax.xlane.f32.xlu0 %v2127
    %v2129 = vpop.xlane.xlu0 %2128
    %v2130 = vrot.slane %v2129, 4
    %v2131 = vmax.f32 %v2129, %v2130
    %v2132 = vrot.slane %v2131, 2
    %v2133 = vmax.f32 %v2131, %v2132
    %v2134 = vrot.slane %v2133, 1
    %v2135 = vmax.f32 %v2133, %v2134
    %s2136 = vtos %v2135
    %v2137 = vstv %s2136
    %v2138 = vsub.f32 %v2111, %v2137
    %v2139 = vsub.f32 %v2112, %v2137
    %v2140 = vsub.f32 %v2113, %v2137
    %v2141 = vsub.f32 %v2114, %v2137
    %v2142 = vsub.f32 %v2115, %v2137
    %v2143 = vsub.f32 %v2116, %v2137
    %v2144 = vmul.f32 %v2138, 1.442695
    %v2145 = vpow.pop %v2144
    %v2146 = vmul.f32 %v2139, 1.442695
    %v2147 = vpow.pop %v2146
    %v2148 = vmul.f32 %v2140, 1.442695
    %v2149 = vpow.pop %v2148
    %v2150 = vmul.f32 %v2141, 1.442695
    %v2151 = vpow.pop %v2150
    %v2152 = vmul.f32 %v2142, 1.442695
    %v2153 = vpow.pop %v2152
    %v2154 = vmul.f32 %v2143, 1.442695
    %v2155 = vpow.pop %v2154
    %2162 = vrot.lane.b32.xlu0 %v2145, 96
    %v2163 = vpop.permute.xlu0 %2162
    %2164 = vrot.lane.b32.xlu0 %v2147, 96
    %v2165 = vpop.permute.xlu0 %2164
    %2166 = vrot.lane.b32.xlu0 %v2149, 96
    %v2167 = vpop.permute.xlu0 %2166
    %2168 = vrot.lane.b32.xlu0 %v2151, 96
    %v2169 = vpop.permute.xlu0 %2168
    %2170 = vrot.lane.b32.xlu0 %v2153, 96
    %v2171 = vpop.permute.xlu0 %2170
    %2172 = vrot.lane.b32.xlu0 %v2155, 96
    %v2173 = vpop.permute.xlu0 %2172
    %v2174 = vsel %vm1025, %v2163, 0
    %v2176 = vsel %vm1025, %v2165, 0
    %v2178 = vsel %vm1025, %v2167, 0
    %v2180 = vsel %vm1025, %v2169, 0
    %v2182 = vsel %vm1025, %v2171, 0
    %v2184 = vsel %vm1025, %v2173, 0
    %2186 = vmatprep.subr.mxu0 0.0
    %2187 = vmatpush1.msra.mxu0 %v1039
    %2188 = vmatprep.subr.mxu0 0.0
    %2189 = vmatpush1.msra.mxu0 0.0
    %2190 = vmatprep.subr.mxu0 0.0
    %2191 = vmatpush1.msra.mxu0 0.0
    %2192 = vmatprep.subr.mxu0 0.0
    %2193 = vmatpush1.msra.mxu0 0.0
    %2194 = vmatprep.subr.mxu0 0.0
    %2195 = vmatpush1.msra.mxu0 0.0
    %2196 = vmatprep.subr.mxu0 0.0
    %2197 = vmatpush1.msra.mxu0 0.0
    %2198 = vmatprep.subr.mxu0 0.0
    %2199 = vmatpush1.msra.mxu0 0.0
    %2200 = vmatprep.subr.mxu0 0.0
    %2201 = vmatpush1.msra.mxu0 0.0
    %2202 = vmatprep.subr.mxu0 0.0
    %2203 = vmatpush1.msra.mxu0 0.0
    %2204 = vmatprep.subr.mxu0 0.0
    %2205 = vmatpush1.msra.mxu0 0.0
    %2206 = vmatprep.subr.mxu0 0.0
    %2207 = vmatpush1.msra.mxu0 0.0
    %2208 = vmatprep.subr.mxu0 0.0
    %2209 = vmatpush1.msra.mxu0 0.0
    %2210 = vmatprep.subr.mxu0 0.0
    %2211 = vmatpush1.msra.mxu0 0.0
    %2212 = vmatprep.subr.mxu0 0.0
    %2213 = vmatpush1.msra.mxu0 0.0
    %2214 = vmatprep.subr.mxu0 0.0
    %2215 = vmatpush1.msra.mxu0 0.0
    %2216 = vmatprep.subr.mxu0 0.0
    %2217 = vmatpush1.msra.mxu0 0.0
    %2218 = vmatprep.subr.mxu0 0.0
    %2219 = vmatpush1.msra.mxu0 0.0
    %2220 = vmatprep.subr.mxu0 0.0
    %2221 = vmatpush1.msra.mxu0 0.0
    %2222 = vmatprep.subr.mxu0 0.0
    %2223 = vmatpush1.msra.mxu0 0.0
    %2224 = vmatprep.subr.mxu0 0.0
    %2225 = vmatpush1.msra.mxu0 0.0
    %2226 = vmatprep.subr.mxu0 0.0
    %2227 = vmatpush1.msra.mxu0 0.0
    %2228 = vmatprep.subr.mxu0 0.0
    %2229 = vmatpush1.msra.mxu0 0.0
    %2230 = vmatprep.subr.mxu0 0.0
    %2231 = vmatpush1.msra.mxu0 0.0
    %2232 = vmatprep.subr.mxu0 0.0
    %2233 = vmatpush1.msra.mxu0 0.0
    %2234 = vmatprep.subr.mxu0 0.0
    %2235 = vmatpush1.msra.mxu0 0.0
    %2236 = vmatprep.subr.mxu0 0.0
    %2237 = vmatpush1.msra.mxu0 0.0
    %2238 = vmatprep.subr.mxu0 0.0
    %2239 = vmatpush1.msra.mxu0 0.0
    %2240 = vmatprep.subr.mxu0 0.0
    %2241 = vmatpush1.msra.mxu0 0.0
    %2242 = vmatprep.subr.mxu0 0.0
    %2243 = vmatpush1.msra.mxu0 0.0
    %2244 = vmatprep.subr.mxu0 0.0
    %2245 = vmatpush1.msra.mxu0 0.0
    %2246 = vmatprep.subr.mxu0 0.0
    %2247 = vmatpush1.msra.mxu0 0.0
    %2248 = vmatprep.subr.mxu0 0.0
    %2249 = vmatpush1.msra.mxu0 0.0
    %2250 = vmatprep.mubr.f32.mxu0 0.0
    %2251 = vmatmul.mubr.f32.gmra.mrb[0].mxu0 %v2174
    %v2252 = vpop.f32.mrb[0].mxu0
    %v2253 = vadd.f32 0.0, %v2252
    %v2254 = vpop.f32.mrb[0].mxu0
    %2255 = vmatprep.mubr.f32.mxu0 0.0
    %2256 = vmatmul.mubr.f32.gmra.mrb[0].mxu0 %v2176
    %v2257 = vpop.f32.mrb[0].mxu0
    %v2258 = vadd.f32 0.0, %v2257
    %v2259 = vpop.f32.mrb[0].mxu0
    %2260 = vmatprep.mubr.f32.mxu0 0.0
    %2261 = vmatmul.mubr.f32.gmra.mrb[0].mxu0 %v2178
    %v2262 = vpop.f32.mrb[0].mxu0
    %v2263 = vadd.f32 0.0, %v2262
    %v2264 = vpop.f32.mrb[0].mxu0
    %2265 = vmatprep.mubr.f32.mxu0 0.0
    %2266 = vmatmul.mubr.f32.gmra.mrb[0].mxu0 %v2180
    %v2267 = vpop.f32.mrb[0].mxu0
    %v2268 = vadd.f32 0.0, %v2267
    %v2269 = vpop.f32.mrb[0].mxu0
    %2270 = vmatprep.mubr.f32.mxu0 0.0
    %2271 = vmatmul.mubr.f32.gmra.mrb[0].mxu0 %v2182
    %v2272 = vpop.f32.mrb[0].mxu0
    %v2273 = vadd.f32 0.0, %v2272
    %v2274 = vpop.f32.mrb[0].mxu0
    %2275 = vmatprep.mubr.f32.mxu0 0.0
    %2276 = vmatmul.mubr.f32.gmra.mrb[0].mxu0 %v2184
    %v2277 = vpop.f32.mrb[0].mxu0
    %v2278 = vadd.f32 0.0, %v2277
    %v2279 = vpop.f32.mrb[0].mxu0
    %2280 = vdwg.mxu0
    %v2281 = vmul.f32 %v1958, %v2253
    %v2282 = vmul.f32 %v1959, %v2258
    %v2283 = vmul.f32 %v1960, %v2263
    %v2284 = vmul.f32 %v1961, %v2268
    %v2285 = vmul.f32 %v1962, %v2273
    %v2286 = vmul.f32 %v1963, %v2278
    %2287 = vmatprep.subr.mxu0 0.0
    %2288 = vmatpush1.msra.mxu0 %v2281
    %2289 = vmatprep.subr.mxu0 0.0
    %2290 = vmatpush1.msra.mxu0 %v2282
    %2291 = vmatprep.subr.mxu0 0.0
    %2292 = vmatpush1.msra.mxu0 %v2283
    %2293 = vmatprep.subr.mxu0 0.0
    %2294 = vmatpush1.msra.mxu0 %v2284
    %2295 = vmatprep.subr.mxu0 0.0
    %2296 = vmatpush1.msra.mxu0 %v2285
    %2297 = vmatprep.subr.mxu0 0.0
    %2298 = vmatpush1.msra.mxu0 %v2286
    %2299 = vmatprep.subr.mxu0 0.0
    %2300 = vmatpush1.msra.mxu0 0.0
    %2301 = vmatprep.subr.mxu0 0.0
    %2302 = vmatpush1.msra.mxu0 0.0
    %2303 = vmatprep.subr.mxu0 0.0
    %2304 = vmatpush1.msra.mxu0 0.0
    %2305 = vmatprep.subr.mxu0 0.0
    %2306 = vmatpush1.msra.mxu0 0.0
    %2307 = vmatprep.subr.mxu0 0.0
    %2308 = vmatpush1.msra.mxu0 0.0
    %2309 = vmatprep.subr.mxu0 0.0
    %2310 = vmatpush1.msra.mxu0 0.0
    %2311 = vmatprep.subr.mxu0 0.0
    %2312 = vmatpush1.msra.mxu0 0.0
    %2313 = vmatprep.subr.mxu0 0.0
    %2314 = vmatpush1.msra.mxu0 0.0
    %2315 = vmatprep.subr.mxu0 0.0
    %2316 = vmatpush1.msra.mxu0 0.0
    %2317 = vmatprep.subr.mxu0 0.0
    %2318 = vmatpush1.msra.mxu0 0.0
    %2319 = vmatprep.subr.mxu0 0.0
    %2320 = vmatpush1.msra.mxu0 0.0
    %2321 = vmatprep.subr.mxu0 0.0
    %2322 = vmatpush1.msra.mxu0 0.0
    %2323 = vmatprep.subr.mxu0 0.0
    %2324 = vmatpush1.msra.mxu0 0.0
    %2325 = vmatprep.subr.mxu0 0.0
    %2326 = vmatpush1.msra.mxu0 0.0
    %2327 = vmatprep.subr.mxu0 0.0
    %2328 = vmatpush1.msra.mxu0 0.0
    %2329 = vmatprep.subr.mxu0 0.0
    %2330 = vmatpush1.msra.mxu0 0.0
    %2331 = vmatprep.subr.mxu0 0.0
    %2332 = vmatpush1.msra.mxu0 0.0
    %2333 = vmatprep.subr.mxu0 0.0
    %2334 = vmatpush1.msra.mxu0 0.0
    %2335 = vmatprep.subr.mxu0 0.0
    %2336 = vmatpush1.msra.mxu0 0.0
    %2337 = vmatprep.subr.mxu0 0.0
    %2338 = vmatpush1.msra.mxu0 0.0
    %2339 = vmatprep.subr.mxu0 0.0
    %2340 = vmatpush1.msra.mxu0 0.0
    %2341 = vmatprep.subr.mxu0 0.0
    %2342 = vmatpush1.msra.mxu0 0.0
    %2343 = vmatprep.subr.mxu0 0.0
    %2344 = vmatpush1.msra.mxu0 0.0
    %2345 = vmatprep.subr.mxu0 0.0
    %2346 = vmatpush1.msra.mxu0 0.0
    %2347 = vmatprep.subr.mxu0 0.0
    %2348 = vmatpush1.msra.mxu0 0.0
    %2349 = vmatprep.subr.mxu0 0.0
    %2350 = vmatpush1.msra.mxu0 0.0
    %2351 = vmatprep.mubr.f32.mxu0 0.0
    %2352 = vmatmul.mubr.f32.gmra.mrb[0].mxu0 %v1144
    %v2353 = vpop.f32.mrb[0].mxu0
    %v2354 = vadd.f32 0.0, %v2353
    %v2355 = vpop.f32.mrb[0].mxu0
    %2356 = vmatprep.mubr.f32.mxu0 0.0
    %2357 = vmatmul.mubr.f32.gmra.mrb[0].mxu0 %v1147
    %v2358 = vpop.f32.mrb[0].mxu0
    %v2359 = vadd.f32 0.0, %v2358
    %v2360 = vpop.f32.mrb[0].mxu0
    %2361 = vdwg.mxu0
    %2368 = vmatprep.subr.mxu0 0.0
    %2369 = vmatpush1.msra.mxu0 %v2163
    %2370 = vmatprep.subr.mxu0 0.0
    %2371 = vmatpush1.msra.mxu0 %v2165
    %2372 = vmatprep.subr.mxu0 0.0
    %2373 = vmatpush1.msra.mxu0 %v2167
    %2374 = vmatprep.subr.mxu0 0.0
    %2375 = vmatpush1.msra.mxu0 %v2169
    %2376 = vmatprep.subr.mxu0 0.0
    %2377 = vmatpush1.msra.mxu0 %v2171
    %2378 = vmatprep.subr.mxu0 0.0
    %2379 = vmatpush1.msra.mxu0 %v2173
    %2380 = vmatprep.subr.mxu0 0.0
    %2381 = vmatpush1.msra.mxu0 0.0
    %2382 = vmatprep.subr.mxu0 0.0
    %2383 = vmatpush1.msra.mxu0 0.0
    %2384 = vmatprep.subr.mxu0 0.0
    %2385 = vmatpush1.msra.mxu0 0.0
    %2386 = vmatprep.subr.mxu0 0.0
    %2387 = vmatpush1.msra.mxu0 0.0
    %2388 = vmatprep.subr.mxu0 0.0
    %2389 = vmatpush1.msra.mxu0 0.0
    %2390 = vmatprep.subr.mxu0 0.0
    %2391 = vmatpush1.msra.mxu0 0.0
    %2392 = vmatprep.subr.mxu0 0.0
    %2393 = vmatpush1.msra.mxu0 0.0
    %2394 = vmatprep.subr.mxu0 0.0
    %2395 = vmatpush1.msra.mxu0 0.0
    %2396 = vmatprep.subr.mxu0 0.0
    %2397 = vmatpush1.msra.mxu0 0.0
    %2398 = vmatprep.subr.mxu0 0.0
    %2399 = vmatpush1.msra.mxu0 0.0
    %2400 = vmatprep.subr.mxu0 0.0
    %2401 = vmatpush1.msra.mxu0 0.0
    %2402 = vmatprep.subr.mxu0 0.0
    %2403 = vmatpush1.msra.mxu0 0.0
    %2404 = vmatprep.subr.mxu0 0.0
    %2405 = vmatpush1.msra.mxu0 0.0
    %2406 = vmatprep.subr.mxu0 0.0
    %2407 = vmatpush1.msra.mxu0 0.0
    %2408 = vmatprep.subr.mxu0 0.0
    %2409 = vmatpush1.msra.mxu0 0.0
    %2410 = vmatprep.subr.mxu0 0.0
    %2411 = vmatpush1.msra.mxu0 0.0
    %2412 = vmatprep.subr.mxu0 0.0
    %2413 = vmatpush1.msra.mxu0 0.0
    %2414 = vmatprep.subr.mxu0 0.0
    %2415 = vmatpush1.msra.mxu0 0.0
    %2416 = vmatprep.subr.mxu0 0.0
    %2417 = vmatpush1.msra.mxu0 0.0
    %2418 = vmatprep.subr.mxu0 0.0
    %2419 = vmatpush1.msra.mxu0 0.0
    %2420 = vmatprep.subr.mxu0 0.0
    %2421 = vmatpush1.msra.mxu0 0.0
    %2422 = vmatprep.subr.mxu0 0.0
    %2423 = vmatpush1.msra.mxu0 0.0
    %2424 = vmatprep.subr.mxu0 0.0
    %2425 = vmatpush1.msra.mxu0 0.0
    %2426 = vmatprep.subr.mxu0 0.0
    %2427 = vmatpush1.msra.mxu0 0.0
    %2428 = vmatprep.subr.mxu0 0.0
    %2429 = vmatpush1.msra.mxu0 0.0
    %2430 = vmatprep.subr.mxu0 0.0
    %2431 = vmatpush1.msra.mxu0 0.0
    %2432 = vmatprep.mubr.f32.mxu0 0.0
    %2433 = vmatmul.mubr.f32.gmra.mrb[0].mxu0 %v1144
    %v2434 = vpop.f32.mrb[0].mxu0
    %v2435 = vadd.f32 1e-16, %v2434
    %v2436 = vpop.f32.mrb[0].mxu0
    %2437 = vmatprep.mubr.f32.mxu0 0.0
    %2438 = vmatmul.mubr.f32.gmra.mrb[0].mxu0 %v1147
    %v2439 = vpop.f32.mrb[0].mxu0
    %v2440 = vadd.f32 1e-16, %v2439
    %v2441 = vpop.f32.mrb[0].mxu0
    %2442 = vdwg.mxu0
    %v2443 = vrcp.pop %v2435
    %v2444 = vrcp.pop %v2440
    %2445 = vmatprep.subr.mxu0 0.0
    %2446 = vmatpush1.msra.mxu0 %v2443
    %2447 = vmatprep.subr.mxu0 0.0
    %2448 = vmatpush1.msra.mxu0 %v2444
    %2449 = vmatprep.subr.mxu0 0.0
    %2450 = vmatpush1.msra.mxu0 0.0
    %2451 = vmatprep.subr.mxu0 0.0
    %2452 = vmatpush1.msra.mxu0 0.0
    %2453 = vmatprep.subr.mxu0 0.0
    %2454 = vmatpush1.msra.mxu0 0.0
    %2455 = vmatprep.subr.mxu0 0.0
    %2456 = vmatpush1.msra.mxu0 0.0
    %2457 = vmatprep.subr.mxu0 0.0
    %2458 = vmatpush1.msra.mxu0 0.0
    %2459 = vmatprep.subr.mxu0 0.0
    %2460 = vmatpush1.msra.mxu0 0.0
    %2461 = vmatprep.subr.mxu0 0.0
    %2462 = vmatpush1.msra.mxu0 0.0
    %2463 = vmatprep.subr.mxu0 0.0
    %2464 = vmatpush1.msra.mxu0 0.0
    %2465 = vmatprep.subr.mxu0 0.0
    %2466 = vmatpush1.msra.mxu0 0.0
    %2467 = vmatprep.subr.mxu0 0.0
    %2468 = vmatpush1.msra.mxu0 0.0
    %2469 = vmatprep.subr.mxu0 0.0
    %2470 = vmatpush1.msra.mxu0 0.0
    %2471 = vmatprep.subr.mxu0 0.0
    %2472 = vmatpush1.msra.mxu0 0.0
    %2473 = vmatprep.subr.mxu0 0.0
    %2474 = vmatpush1.msra.mxu0 0.0
    %2475 = vmatprep.subr.mxu0 0.0
    %2476 = vmatpush1.msra.mxu0 0.0
    %2477 = vmatprep.subr.mxu0 0.0
    %2478 = vmatpush1.msra.mxu0 0.0
    %2479 = vmatprep.subr.mxu0 0.0
    %2480 = vmatpush1.msra.mxu0 0.0
    %2481 = vmatprep.subr.mxu0 0.0
    %2482 = vmatpush1.msra.mxu0 0.0
    %2483 = vmatprep.subr.mxu0 0.0
    %2484 = vmatpush1.msra.mxu0 0.0
    %2485 = vmatprep.subr.mxu0 0.0
    %2486 = vmatpush1.msra.mxu0 0.0
    %2487 = vmatprep.subr.mxu0 0.0
    %2488 = vmatpush1.msra.mxu0 0.0
    %2489 = vmatprep.subr.mxu0 0.0
    %2490 = vmatpush1.msra.mxu0 0.0
    %2491 = vmatprep.subr.mxu0 0.0
    %2492 = vmatpush1.msra.mxu0 0.0
    %2493 = vmatprep.subr.mxu0 0.0
    %2494 = vmatpush1.msra.mxu0 0.0
    %2495 = vmatprep.subr.mxu0 0.0
    %2496 = vmatpush1.msra.mxu0 0.0
    %2497 = vmatprep.subr.mxu0 0.0
    %2498 = vmatpush1.msra.mxu0 0.0
    %2499 = vmatprep.subr.mxu0 0.0
    %2500 = vmatpush1.msra.mxu0 0.0
    %2501 = vmatprep.subr.mxu0 0.0
    %2502 = vmatpush1.msra.mxu0 0.0
    %2503 = vmatprep.subr.mxu0 0.0
    %2504 = vmatpush1.msra.mxu0 0.0
    %2505 = vmatprep.subr.mxu0 0.0
    %2506 = vmatpush1.msra.mxu0 0.0
    %2507 = vmatprep.subr.mxu0 0.0
    %2508 = vmatpush1.msra.mxu0 0.0
    %2509 = vmatprep.mubr.f32.mxu0 0.0
    %2510 = vmatmul.mubr.f32.gmra.mrb[0].mxu0 %v807
    %v2511 = vpop.f32.mrb[0].mxu0
    %v2512 = vadd.f32 0.0, %v2511
    %v2513 = vpop.f32.mrb[0].mxu0
    %2514 = vmatprep.mubr.f32.mxu0 0.0
    %2515 = vmatmul.mubr.f32.gmra.mrb[0].mxu0 %v810
    %v2516 = vpop.f32.mrb[0].mxu0
    %v2517 = vadd.f32 0.0, %v2516
    %v2518 = vpop.f32.mrb[0].mxu0
    %2519 = vmatprep.mubr.f32.mxu0 0.0
    %2520 = vmatmul.mubr.f32.gmra.mrb[0].mxu0 %v813
    %v2521 = vpop.f32.mrb[0].mxu0
    %v2522 = vadd.f32 0.0, %v2521
    %v2523 = vpop.f32.mrb[0].mxu0
    %2524 = vmatprep.mubr.f32.mxu0 0.0
    %2525 = vmatmul.mubr.f32.gmra.mrb[0].mxu0 %v816
    %v2526 = vpop.f32.mrb[0].mxu0
    %v2527 = vadd.f32 0.0, %v2526
    %v2528 = vpop.f32.mrb[0].mxu0
    %2529 = vmatprep.mubr.f32.mxu0 0.0
    %2530 = vmatmul.mubr.f32.gmra.mrb[0].mxu0 %v819
    %v2531 = vpop.f32.mrb[0].mxu0
    %v2532 = vadd.f32 0.0, %v2531
    %v2533 = vpop.f32.mrb[0].mxu0
    %2534 = vmatprep.mubr.f32.mxu0 0.0
    %2535 = vmatmul.mubr.f32.gmra.mrb[0].mxu0 %v822
    %v2536 = vpop.f32.mrb[0].mxu0
    %v2537 = vadd.f32 0.0, %v2536
    %v2538 = vpop.f32.mrb[0].mxu0
    %2539 = vdwg.mxu0
    %2546 = vrot.lane.b32.xlu0 %v2512, 32
    %v2547 = vpop.permute.xlu0 %2546
    %2548 = vrot.lane.b32.xlu0 %v2517, 32
    %v2549 = vpop.permute.xlu0 %2548
    %2550 = vrot.lane.b32.xlu0 %v2522, 32
    %v2551 = vpop.permute.xlu0 %2550
    %2552 = vrot.lane.b32.xlu0 %v2527, 32
    %v2553 = vpop.permute.xlu0 %2552
    %2554 = vrot.lane.b32.xlu0 %v2532, 32
    %v2555 = vpop.permute.xlu0 %2554
    %2556 = vrot.lane.b32.xlu0 %v2537, 32
    %v2557 = vpop.permute.xlu0 %2556
    %v2564 = vmul.f32 %v2145, %v2547
    %v2565 = vmul.f32 %v2147, %v2549
    %v2566 = vmul.f32 %v2149, %v2551
    %v2567 = vmul.f32 %v2151, %v2553
    %v2568 = vmul.f32 %v2153, %v2555
    %v2569 = vmul.f32 %v2155, %v2557
    %2576 = vrot.lane.b32.xlu0 %v2564, 96
    %v2577 = vpop.permute.xlu0 %2576
    %2578 = vrot.lane.b32.xlu0 %v2565, 96
    %v2579 = vpop.permute.xlu0 %2578
    %2580 = vrot.lane.b32.xlu0 %v2566, 96
    %v2581 = vpop.permute.xlu0 %2580
    %2582 = vrot.lane.b32.xlu0 %v2567, 96
    %v2583 = vpop.permute.xlu0 %2582
    %2584 = vrot.lane.b32.xlu0 %v2568, 96
    %v2585 = vpop.permute.xlu0 %2584
    %2586 = vrot.lane.b32.xlu0 %v2569, 96
    %v2587 = vpop.permute.xlu0 %2586
    %s2594 = scalar_lea.vmem %s20, 48
    %2595 = vst.msk [vmem:[%s2594] sm:$0xff] %vm1025, %v2577
    %2596 = vst.msk [vmem:[%s2594 + $0x8] sm:$0xff] %vm1025, %v2579
    %2597 = vst.msk [vmem:[%s2594 + $0x10] sm:$0xff] %vm1025, %v2581
    %2598 = vst.msk [vmem:[%s2594 + $0x18] sm:$0xff] %vm1025, %v2583
    %2599 = vst.msk [vmem:[%s2594 + $0x20] sm:$0xff] %vm1025, %v2585
    %2600 = vst.msk [vmem:[%s2594 + $0x28] sm:$0xff] %vm1025, %v2587
    %v2602 = vsel %vm1025, %v2443, 0
    %v2605 = vsel %vm1025, %v2444, 0
    %2607 = vmatprep.subr.mxu0 0.0
    %2608 = vmatpush1.msra.mxu0 %v1039
    %2609 = vmatprep.subr.mxu0 0.0
    %2610 = vmatpush1.msra.mxu0 0.0
    %2611 = vmatprep.subr.mxu0 0.0
    %2612 = vmatpush1.msra.mxu0 0.0
    %2613 = vmatprep.subr.mxu0 0.0
    %2614 = vmatpush1.msra.mxu0 0.0
    %2615 = vmatprep.subr.mxu0 0.0
    %2616 = vmatpush1.msra.mxu0 0.0
    %2617 = vmatprep.subr.mxu0 0.0
    %2618 = vmatpush1.msra.mxu0 0.0
    %2619 = vmatprep.subr.mxu0 0.0
    %2620 = vmatpush1.msra.mxu0 0.0
    %2621 = vmatprep.subr.mxu0 0.0
    %2622 = vmatpush1.msra.mxu0 0.0
    %2623 = vmatprep.subr.mxu0 0.0
    %2624 = vmatpush1.msra.mxu0 0.0
    %2625 = vmatprep.subr.mxu0 0.0
    %2626 = vmatpush1.msra.mxu0 0.0
    %2627 = vmatprep.subr.mxu0 0.0
    %2628 = vmatpush1.msra.mxu0 0.0
    %2629 = vmatprep.subr.mxu0 0.0
    %2630 = vmatpush1.msra.mxu0 0.0
    %2631 = vmatprep.subr.mxu0 0.0
    %2632 = vmatpush1.msra.mxu0 0.0
    %2633 = vmatprep.subr.mxu0 0.0
    %2634 = vmatpush1.msra.mxu0 0.0
    %2635 = vmatprep.subr.mxu0 0.0
    %2636 = vmatpush1.msra.mxu0 0.0
    %2637 = vmatprep.subr.mxu0 0.0
    %2638 = vmatpush1.msra.mxu0 0.0
    %2639 = vmatprep.subr.mxu0 0.0
    %2640 = vmatpush1.msra.mxu0 0.0
    %2641 = vmatprep.subr.mxu0 0.0
    %2642 = vmatpush1.msra.mxu0 0.0
    %2643 = vmatprep.subr.mxu0 0.0
    %2644 = vmatpush1.msra.mxu0 0.0
    %2645 = vmatprep.subr.mxu0 0.0
    %2646 = vmatpush1.msra.mxu0 0.0
    %2647 = vmatprep.subr.mxu0 0.0
    %2648 = vmatpush1.msra.mxu0 0.0
    %2649 = vmatprep.subr.mxu0 0.0
    %2650 = vmatpush1.msra.mxu0 0.0
    %2651 = vmatprep.subr.mxu0 0.0
    %2652 = vmatpush1.msra.mxu0 0.0
    %2653 = vmatprep.subr.mxu0 0.0
    %2654 = vmatpush1.msra.mxu0 0.0
    %2655 = vmatprep.subr.mxu0 0.0
    %2656 = vmatpush1.msra.mxu0 0.0
    %2657 = vmatprep.subr.mxu0 0.0
    %2658 = vmatpush1.msra.mxu0 0.0
    %2659 = vmatprep.subr.mxu0 0.0
    %2660 = vmatpush1.msra.mxu0 0.0
    %2661 = vmatprep.subr.mxu0 0.0
    %2662 = vmatpush1.msra.mxu0 0.0
    %2663 = vmatprep.subr.mxu0 0.0
    %2664 = vmatpush1.msra.mxu0 0.0
    %2665 = vmatprep.subr.mxu0 0.0
    %2666 = vmatpush1.msra.mxu0 0.0
    %2667 = vmatprep.subr.mxu0 0.0
    %2668 = vmatpush1.msra.mxu0 0.0
    %2669 = vmatprep.subr.mxu0 0.0
    %2670 = vmatpush1.msra.mxu0 0.0
    %2671 = vmatprep.mubr.f32.mxu0 0.0
    %2672 = vmatmul.mubr.f32.gmra.mrb[0].mxu0 %v2602
    %v2673 = vpop.f32.mrb[0].mxu0
    %v2674 = vadd.f32 0.0, %v2673
    %v2675 = vpop.f32.mrb[0].mxu0
    %2676 = vmatprep.mubr.f32.mxu0 0.0
    %2677 = vmatmul.mubr.f32.gmra.mrb[0].mxu0 %v2605
    %v2678 = vpop.f32.mrb[0].mxu0
    %v2679 = vadd.f32 0.0, %v2678
    %v2680 = vpop.f32.mrb[0].mxu0
    %2681 = vdwg.mxu0
    %v2682 = vmul.f32 %v2354, %v2674
    %v2683 = vmul.f32 %v2359, %v2679
    %s2684 = scalar_lea.vmem [#allocation17], 1
    %v2685 = vld [vmem:[%s2684] sm:$0x1]
    %v2687 = vlaneseq
    %v2688 = vshrl.u32 %v2687, 7
    %v2689 = vsub.s32 0, %v2688
    %v2690 = vrot.slane %v2685, %v2689
    %v2692 = vadd.f32 %v2682, %v2690
    %v2693 = vadd.f32 %v2683, %v2690
    %v2694 = vmax.f32 %v2692, 0.0
    %v2695 = vmax.f32 %v2693, 0.0
    %s2696 = scalar_lea.vmem [#allocation14], 2
    %v2697 = vld [vmem:[%s2696] sm:$0x1]
    %v2699 = vlaneseq
    %v2700 = vshrl.u32 %v2699, 7
    %v2701 = vsub.s32 0, %v2700
    %v2702 = vrot.slane %v2697, %v2701
    %v2704 = vmul.f32 %v2694, %v2702
    %v2705 = vmul.f32 %v2695, %v2702
    %s2706 = scalar_lea.vmem [#allocation15], 2
    %v2707 = vld [vmem:[%s2706] sm:$0x1]
    %v2709 = vlaneseq
    %v2710 = vshrl.u32 %v2709, 7
    %v2711 = vsub.s32 0, %v2710
    %v2712 = vrot.slane %v2707, %v2711
    %v2714 = vadd.f32 %v2704, %v2712
    %v2715 = vadd.f32 %v2705, %v2712
    %v2716 = vpack.c.bf16 %v2715, %v2714
    %s2717 = scalar_lea.vmem %s9, 32
    %v2718 = vld [vmem:[%s2717] sm:$0xf]
    %v2719 = vld [vmem:[%s2717 + $0x4] sm:$0xf]
    %v2720 = vld [vmem:[%s2717 + $0x8] sm:$0xf]
    %v2721 = vld [vmem:[%s2717 + $0xc] sm:$0xf]
    %v2726 = vunpack.c.l.b16 %v2718
    %v2727 = vunpack.c.l.b16 %v2719
    %v2728 = vunpack.c.l.b16 %v2720
    %v2729 = vunpack.c.l.b16 %v2721
    %v2730 = vpack.c.b16 %v2727, %v2726
    %v2731 = vpack.c.b16 %v2729, %v2728
    %v2735 = vsel %vm370, %v2716, 0
    %2737 = vmatprep.subr.bf16.mxu0 0
    %2738 = vmatpush1.bf16.msra.mxu0 %v2730
    %2739 = vmatprep.subr.bf16.mxu0 0
    %2740 = vmatpush1.bf16.msra.mxu0 %v2731
    %2741 = vmatprep.subr.bf16.mxu0 0
    %2742 = vmatpush1.bf16.msra.mxu0 0
    %2743 = vmatprep.subr.bf16.mxu0 0
    %2744 = vmatpush1.bf16.msra.mxu0 0
    %2745 = vmatprep.subr.bf16.mxu0 0
    %2746 = vmatpush1.bf16.msra.mxu0 0
    %2747 = vmatprep.subr.bf16.mxu0 0
    %2748 = vmatpush1.bf16.msra.mxu0 0
    %2749 = vmatprep.subr.bf16.mxu0 0
    %2750 = vmatpush1.bf16.msra.mxu0 0
    %2751 = vmatprep.subr.bf16.mxu0 0
    %2752 = vmatpush1.bf16.msra.mxu0 0
    %2753 = vmatprep.subr.bf16.mxu0 0
    %2754 = vmatpush1.bf16.msra.mxu0 0
    %2755 = vmatprep.subr.bf16.mxu0 0
    %2756 = vmatpush1.bf16.msra.mxu0 0
    %2757 = vmatprep.subr.bf16.mxu0 0
    %2758 = vmatpush1.bf16.msra.mxu0 0
    %2759 = vmatprep.subr.bf16.mxu0 0
    %2760 = vmatpush1.bf16.msra.mxu0 0
    %2761 = vmatprep.subr.bf16.mxu0 0
    %2762 = vmatpush1.bf16.msra.mxu0 0
    %2763 = vmatprep.subr.bf16.mxu0 0
    %2764 = vmatpush1.bf16.msra.mxu0 0
    %2765 = vmatprep.subr.bf16.mxu0 0
    %2766 = vmatpush1.bf16.msra.mxu0 0
    %2767 = vmatprep.subr.bf16.mxu0 0
    %2768 = vmatpush1.bf16.msra.mxu0 0
    %2769 = vmatprep.mubr.bf16.mxu0 0
    %2770 = vmatmul.mubr.bf16.gmra.mrb[0].mxu0 %v2735
    %v2771 = vpop.f32.mrb[0].mxu0
    %v2772 = vadd.f32 0.0, %v2771
    %v2773 = vpop.f32.mrb[0].mxu0
    %v2774 = vpop.f32.mrb[0].mxu0
    %v2775 = vadd.f32 0.0, %v2774
    %v2776 = vpop.f32.mrb[0].mxu0
    %2777 = vdwg.mxu0
    %2778 = vst.msk [vmem:[#allocation2] sm:$0xff] %vm415, %v2772
    %2779 = vst.msk [vmem:[#allocation2 + $0x8] sm:$0xff] %vm415, %v2775
    %s2780 = sld [smem:[#allocation4]]
    %s2781 = scalar_lea.vmem [#allocation2], %s2780
    %v2782 = vld [vmem:[%s2781] sm:$0x1]
    %s2783 = sld [smem:[#allocation4 + %s421]]
    %s2784 = scalar_lea.vmem [#allocation2], %s2783
    %v2785 = vld [vmem:[%s2784] sm:$0x1]
    %s2786 = sld [smem:[#allocation4 + %s425]]
    %s2787 = scalar_lea.vmem [#allocation2], %s2786
    %v2788 = vld [vmem:[%s2787] sm:$0x1]
    %s2789 = sld [smem:[#allocation4 + %s429]]
    %s2790 = scalar_lea.vmem [#allocation2], %s2789
    %v2791 = vld [vmem:[%s2790] sm:$0x1]
    %s2792 = sld [smem:[#allocation4 + %s433]]
    %s2793 = scalar_lea.vmem [#allocation2], %s2792
    %v2794 = vld [vmem:[%s2793] sm:$0x1]
    %s2795 = sld [smem:[#allocation4 + %s437]]
    %s2796 = scalar_lea.vmem [#allocation2], %s2795
    %v2797 = vld [vmem:[%s2796] sm:$0x1]
    %s2798 = sld [smem:[#allocation4 + %s441]]
    %s2799 = scalar_lea.vmem [#allocation2], %s2798
    %v2800 = vld [vmem:[%s2799] sm:$0x1]
    %s2801 = sld [smem:[#allocation4 + %s445]]
    %s2802 = scalar_lea.vmem [#allocation2], %s2801
    %v2803 = vld [vmem:[%s2802] sm:$0x1]
    %v2805 = vrot.slane %v2785, 7
    %v2808 = vrot.slane %v2788, 6
    %v2811 = vrot.slane %v2791, 5
    %v2814 = vrot.slane %v2794, 4
    %v2817 = vrot.slane %v2797, 3
    %v2820 = vrot.slane %v2800, 2
    %v2823 = vrot.slane %v2803, 1
    %v2825 = vsel %vm470, %v2782, %v2805
    %v2826 = vsel %vm472, %v2825, %v2808
    %v2827 = vsel %vm474, %v2826, %v2811
    %v2828 = vsel %vm476, %v2827, %v2814
    %v2829 = vsel %vm478, %v2828, %v2817
    %v2830 = vsel %vm480, %v2829, %v2820
    %v2831 = vsel %vm482, %v2830, %v2823
    %2832 = vst.msk [vmem:[#allocation3] sm:$0xff] %vm415, %v2831
    %s2833 = sld [smem:[#allocation4 + $0x8]]
    %s2834 = scalar_lea.vmem [#allocation2], %s2833
    %v2835 = vld [vmem:[%s2834] sm:$0x1]
    %s2836 = sld [smem:[#allocation4 + %s488]]
    %s2837 = scalar_lea.vmem [#allocation2], %s2836
    %v2838 = vld [vmem:[%s2837] sm:$0x1]
    %s2839 = sld [smem:[#allocation4 + %s492]]
    %s2840 = scalar_lea.vmem [#allocation2], %s2839
    %v2841 = vld [vmem:[%s2840] sm:$0x1]
    %s2842 = sld [smem:[#allocation4 + %s496]]
    %s2843 = scalar_lea.vmem [#allocation2], %s2842
    %v2844 = vld [vmem:[%s2843] sm:$0x1]
    %s2845 = sld [smem:[#allocation4 + %s500]]
    %s2846 = scalar_lea.vmem [#allocation2], %s2845
    %v2847 = vld [vmem:[%s2846] sm:$0x1]
    %s2848 = sld [smem:[#allocation4 + %s504]]
    %s2849 = scalar_lea.vmem [#allocation2], %s2848
    %v2850 = vld [vmem:[%s2849] sm:$0x1]
    %s2851 = sld [smem:[#allocation4 + %s508]]
    %s2852 = scalar_lea.vmem [#allocation2], %s2851
    %v2853 = vld [vmem:[%s2852] sm:$0x1]
    %s2854 = sld [smem:[#allocation4 + %s512]]
    %s2855 = scalar_lea.vmem [#allocation2], %s2854
    %v2856 = vld [vmem:[%s2855] sm:$0x1]
    %v2858 = vrot.slane %v2838, 7
    %v2861 = vrot.slane %v2841, 6
    %v2864 = vrot.slane %v2844, 5
    %v2867 = vrot.slane %v2847, 4
    %v2870 = vrot.slane %v2850, 3
    %v2873 = vrot.slane %v2853, 2
    %v2876 = vrot.slane %v2856, 1
    %v2878 = vsel %vm470, %v2835, %v2858
    %v2879 = vsel %vm472, %v2878, %v2861
    %v2880 = vsel %vm474, %v2879, %v2864
    %v2881 = vsel %vm476, %v2880, %v2867
    %v2882 = vsel %vm478, %v2881, %v2870
    %v2883 = vsel %vm480, %v2882, %v2873
    %v2884 = vsel %vm482, %v2883, %v2876
    %2885 = vst.msk [vmem:[%s544] sm:$0xff] %vm415, %v2884
    %s2886 = sld [smem:[#allocation4 + $0x10]]
    %s2887 = scalar_lea.vmem [#allocation2], %s2886
    %v2888 = vld [vmem:[%s2887] sm:$0x1]
    %s2889 = sld [smem:[#allocation4 + %s549]]
    %s2890 = scalar_lea.vmem [#allocation2], %s2889
    %v2891 = vld [vmem:[%s2890] sm:$0x1]
    %s2892 = sld [smem:[#allocation4 + %s553]]
    %s2893 = scalar_lea.vmem [#allocation2], %s2892
    %v2894 = vld [vmem:[%s2893] sm:$0x1]
    %s2895 = sld [smem:[#allocation4 + %s557]]
    %s2896 = scalar_lea.vmem [#allocation2], %s2895
    %v2897 = vld [vmem:[%s2896] sm:$0x1]
    %s2898 = sld [smem:[#allocation4 + %s561]]
    %s2899 = scalar_lea.vmem [#allocation2], %s2898
    %v2900 = vld [vmem:[%s2899] sm:$0x1]
    %s2901 = sld [smem:[#allocation4 + %s565]]
    %s2902 = scalar_lea.vmem [#allocation2], %s2901
    %v2903 = vld [vmem:[%s2902] sm:$0x1]
    %s2904 = sld [smem:[#allocation4 + %s569]]
    %s2905 = scalar_lea.vmem [#allocation2], %s2904
    %v2906 = vld [vmem:[%s2905] sm:$0x1]
    %s2907 = sld [smem:[#allocation4 + %s573]]
    %s2908 = scalar_lea.vmem [#allocation2], %s2907
    %v2909 = vld [vmem:[%s2908] sm:$0x1]
    %v2911 = vrot.slane %v2891, 7
    %v2914 = vrot.slane %v2894, 6
    %v2917 = vrot.slane %v2897, 5
    %v2920 = vrot.slane %v2900, 4
    %v2923 = vrot.slane %v2903, 3
    %v2926 = vrot.slane %v2906, 2
    %v2929 = vrot.slane %v2909, 1
    %v2931 = vsel %vm470, %v2888, %v2911
    %v2932 = vsel %vm472, %v2931, %v2914
    %v2933 = vsel %vm474, %v2932, %v2917
    %v2934 = vsel %vm476, %v2933, %v2920
    %v2935 = vsel %vm478, %v2934, %v2923
    %v2936 = vsel %vm480, %v2935, %v2926
    %v2937 = vsel %vm482, %v2936, %v2929
    %2938 = vst.msk [vmem:[%s605] sm:$0xff] %vm415, %v2937
    %s2939 = sld [smem:[#allocation4 + $0x18]]
    %s2940 = scalar_lea.vmem [#allocation2], %s2939
    %v2941 = vld [vmem:[%s2940] sm:$0x1]
    %s2942 = sld [smem:[#allocation4 + %s610]]
    %s2943 = scalar_lea.vmem [#allocation2], %s2942
    %v2944 = vld [vmem:[%s2943] sm:$0x1]
    %s2945 = sld [smem:[#allocation4 + %s614]]
    %s2946 = scalar_lea.vmem [#allocation2], %s2945
    %v2947 = vld [vmem:[%s2946] sm:$0x1]
    %s2948 = sld [smem:[#allocation4 + %s618]]
    %s2949 = scalar_lea.vmem [#allocation2], %s2948
    %v2950 = vld [vmem:[%s2949] sm:$0x1]
    %s2951 = sld [smem:[#allocation4 + %s622]]
    %s2952 = scalar_lea.vmem [#allocation2], %s2951
    %v2953 = vld [vmem:[%s2952] sm:$0x1]
    %s2954 = sld [smem:[#allocation4 + %s626]]
    %s2955 = scalar_lea.vmem [#allocation2], %s2954
    %v2956 = vld [vmem:[%s2955] sm:$0x1]
    %s2957 = sld [smem:[#allocation4 + %s630]]
    %s2958 = scalar_lea.vmem [#allocation2], %s2957
    %v2959 = vld [vmem:[%s2958] sm:$0x1]
    %s2960 = sld [smem:[#allocation4 + %s634]]
    %s2961 = scalar_lea.vmem [#allocation2], %s2960
    %v2962 = vld [vmem:[%s2961] sm:$0x1]
    %v2964 = vrot.slane %v2944, 7
    %v2967 = vrot.slane %v2947, 6
    %v2970 = vrot.slane %v2950, 5
    %v2973 = vrot.slane %v2953, 4
    %v2976 = vrot.slane %v2956, 3
    %v2979 = vrot.slane %v2959, 2
    %v2982 = vrot.slane %v2962, 1
    %v2984 = vsel %vm470, %v2941, %v2964
    %v2985 = vsel %vm472, %v2984, %v2967
    %v2986 = vsel %vm474, %v2985, %v2970
    %v2987 = vsel %vm476, %v2986, %v2973
    %v2988 = vsel %vm478, %v2987, %v2976
    %v2989 = vsel %vm480, %v2988, %v2979
    %v2990 = vsel %vm482, %v2989, %v2982
    %2991 = vst.msk [vmem:[%s666] sm:$0xff] %vm415, %v2990
    %s2992 = sld [smem:[#allocation4 + $0x20]]
    %s2993 = scalar_lea.vmem [#allocation2], %s2992
    %v2994 = vld [vmem:[%s2993] sm:$0x1]
    %s2995 = sld [smem:[#allocation4 + %s671]]
    %s2996 = scalar_lea.vmem [#allocation2], %s2995
    %v2997 = vld [vmem:[%s2996] sm:$0x1]
    %s2998 = sld [smem:[#allocation4 + %s675]]
    %s2999 = scalar_lea.vmem [#allocation2], %s2998
    %v3000 = vld [vmem:[%s2999] sm:$0x1]
    %s3001 = sld [smem:[#allocation4 + %s679]]
    %s3002 = scalar_lea.vmem [#allocation2], %s3001
    %v3003 = vld [vmem:[%s3002] sm:$0x1]
    %s3004 = sld [smem:[#allocation4 + %s683]]
    %s3005 = scalar_lea.vmem [#allocation2], %s3004
    %v3006 = vld [vmem:[%s3005] sm:$0x1]
    %s3007 = sld [smem:[#allocation4 + %s687]]
    %s3008 = scalar_lea.vmem [#allocation2], %s3007
    %v3009 = vld [vmem:[%s3008] sm:$0x1]
    %s3010 = sld [smem:[#allocation4 + %s691]]
    %s3011 = scalar_lea.vmem [#allocation2], %s3010
    %v3012 = vld [vmem:[%s3011] sm:$0x1]
    %s3013 = sld [smem:[#allocation4 + %s695]]
    %s3014 = scalar_lea.vmem [#allocation2], %s3013
    %v3015 = vld [vmem:[%s3014] sm:$0x1]
    %v3017 = vrot.slane %v2997, 7
    %v3020 = vrot.slane %v3000, 6
    %v3023 = vrot.slane %v3003, 5
    %v3026 = vrot.slane %v3006, 4
    %v3029 = vrot.slane %v3009, 3
    %v3032 = vrot.slane %v3012, 2
    %v3035 = vrot.slane %v3015, 1
    %v3037 = vsel %vm470, %v2994, %v3017
    %v3038 = vsel %vm472, %v3037, %v3020
    %v3039 = vsel %vm474, %v3038, %v3023
    %v3040 = vsel %vm476, %v3039, %v3026
    %v3041 = vsel %vm478, %v3040, %v3029
    %v3042 = vsel %vm480, %v3041, %v3032
    %v3043 = vsel %vm482, %v3042, %v3035
    %3044 = vst.msk [vmem:[%s727] sm:$0xff] %vm415, %v3043
    %s3045 = sld [smem:[#allocation4 + $0x28]]
    %s3046 = scalar_lea.vmem [#allocation2], %s3045
    %v3047 = vld [vmem:[%s3046] sm:$0x1]
    %s3048 = sld [smem:[#allocation4 + %s732]]
    %s3049 = scalar_lea.vmem [#allocation2], %s3048
    %v3050 = vld [vmem:[%s3049] sm:$0x1]
    %s3051 = sld [smem:[#allocation4 + %s736]]
    %s3052 = scalar_lea.vmem [#allocation2], %s3051
    %v3053 = vld [vmem:[%s3052] sm:$0x1]
    %s3054 = sld [smem:[#allocation4 + %s740]]
    %s3055 = scalar_lea.vmem [#allocation2], %s3054
    %v3056 = vld [vmem:[%s3055] sm:$0x1]
    %s3057 = sld [smem:[#allocation4 + %s744]]
    %s3058 = scalar_lea.vmem [#allocation2], %s3057
    %v3059 = vld [vmem:[%s3058] sm:$0x1]
    %s3060 = sld [smem:[#allocation4 + %s748]]
    %s3061 = scalar_lea.vmem [#allocation2], %s3060
    %v3062 = vld [vmem:[%s3061] sm:$0x1]
    %s3063 = sld [smem:[#allocation4 + %s752]]
    %s3064 = scalar_lea.vmem [#allocation2], %s3063
    %v3065 = vld [vmem:[%s3064] sm:$0x1]
    %s3066 = sld [smem:[#allocation4 + %s756]]
    %s3067 = scalar_lea.vmem [#allocation2], %s3066
    %v3068 = vld [vmem:[%s3067] sm:$0x1]
    %v3070 = vrot.slane %v3050, 7
    %v3073 = vrot.slane %v3053, 6
    %v3076 = vrot.slane %v3056, 5
    %v3079 = vrot.slane %v3059, 4
    %v3082 = vrot.slane %v3062, 3
    %v3085 = vrot.slane %v3065, 2
    %v3088 = vrot.slane %v3068, 1
    %v3090 = vsel %vm470, %v3047, %v3070
    %v3091 = vsel %vm472, %v3090, %v3073
    %v3092 = vsel %vm474, %v3091, %v3076
    %v3093 = vsel %vm476, %v3092, %v3079
    %v3094 = vsel %vm478, %v3093, %v3082
    %v3095 = vsel %vm480, %v3094, %v3085
    %v3096 = vsel %vm482, %v3095, %v3088
    %3097 = vst.msk [vmem:[%s788] sm:$0xff] %vm415, %v3096
    %v3098 = vld [vmem:[#allocation3] sm:$0xff]
    %v3099 = vld [vmem:[#allocation3 + $0x8] sm:$0xff]
    %v3100 = vld [vmem:[#allocation3 + $0x10] sm:$0xff]
    %v3101 = vld [vmem:[#allocation3 + $0x18] sm:$0xff]
    %v3102 = vld [vmem:[#allocation3 + $0x20] sm:$0xff]
    %v3103 = vld [vmem:[#allocation3 + $0x28] sm:$0xff]
    %v3104 = vld [vmem:[#allocation2] sm:$0xff]
    %v3105 = vld [vmem:[#allocation2 + $0x8] sm:$0xff]
    %3108 = vrot.lane.b32.xlu0 %v3104, 92
    %v3109 = vpop.permute.xlu0 %3108
    %3110 = vrot.lane.b32.xlu0 %v3105, 92
    %v3111 = vpop.permute.xlu0 %3110
    %3114 = vmatprep.subr.mxu0 0.0
    %3115 = vmatpush1.msra.mxu0 %v3109
    %3116 = vmatprep.subr.mxu0 0.0
    %3117 = vmatpush1.msra.mxu0 %v3111
    %3118 = vmatprep.subr.mxu0 0.0
    %3119 = vmatpush1.msra.mxu0 0.0
    %3120 = vmatprep.subr.mxu0 0.0
    %3121 = vmatpush1.msra.mxu0 0.0
    %3122 = vmatprep.subr.mxu0 0.0
    %3123 = vmatpush1.msra.mxu0 0.0
    %3124 = vmatprep.subr.mxu0 0.0
    %3125 = vmatpush1.msra.mxu0 0.0
    %3126 = vmatprep.subr.mxu0 0.0
    %3127 = vmatpush1.msra.mxu0 0.0
    %3128 = vmatprep.subr.mxu0 0.0
    %3129 = vmatpush1.msra.mxu0 0.0
    %3130 = vmatprep.subr.mxu0 0.0
    %3131 = vmatpush1.msra.mxu0 0.0
    %3132 = vmatprep.subr.mxu0 0.0
    %3133 = vmatpush1.msra.mxu0 0.0
    %3134 = vmatprep.subr.mxu0 0.0
    %3135 = vmatpush1.msra.mxu0 0.0
    %3136 = vmatprep.subr.mxu0 0.0
    %3137 = vmatpush1.msra.mxu0 0.0
    %3138 = vmatprep.subr.mxu0 0.0
    %3139 = vmatpush1.msra.mxu0 0.0
    %3140 = vmatprep.subr.mxu0 0.0
    %3141 = vmatpush1.msra.mxu0 0.0
    %3142 = vmatprep.subr.mxu0 0.0
    %3143 = vmatpush1.msra.mxu0 0.0
    %3144 = vmatprep.subr.mxu0 0.0
    %3145 = vmatpush1.msra.mxu0 0.0
    %3146 = vmatprep.subr.mxu0 0.0
    %3147 = vmatpush1.msra.mxu0 0.0
    %3148 = vmatprep.subr.mxu0 0.0
    %3149 = vmatpush1.msra.mxu0 0.0
    %3150 = vmatprep.subr.mxu0 0.0
    %3151 = vmatpush1.msra.mxu0 0.0
    %3152 = vmatprep.subr.mxu0 0.0
    %3153 = vmatpush1.msra.mxu0 0.0
    %3154 = vmatprep.subr.mxu0 0.0
    %3155 = vmatpush1.msra.mxu0 0.0
    %3156 = vmatprep.subr.mxu0 0.0
    %3157 = vmatpush1.msra.mxu0 0.0
    %3158 = vmatprep.subr.mxu0 0.0
    %3159 = vmatpush1.msra.mxu0 0.0
    %3160 = vmatprep.subr.mxu0 0.0
    %3161 = vmatpush1.msra.mxu0 0.0
    %3162 = vmatprep.subr.mxu0 0.0
    %3163 = vmatpush1.msra.mxu0 0.0
    %3164 = vmatprep.subr.mxu0 0.0
    %3165 = vmatpush1.msra.mxu0 0.0
    %3166 = vmatprep.subr.mxu0 0.0
    %3167 = vmatpush1.msra.mxu0 0.0
    %3168 = vmatprep.subr.mxu0 0.0
    %3169 = vmatpush1.msra.mxu0 0.0
    %3170 = vmatprep.subr.mxu0 0.0
    %3171 = vmatpush1.msra.mxu0 0.0
    %3172 = vmatprep.subr.mxu0 0.0
    %3173 = vmatpush1.msra.mxu0 0.0
    %3174 = vmatprep.subr.mxu0 0.0
    %3175 = vmatpush1.msra.mxu0 0.0
    %3176 = vmatprep.subr.mxu0 0.0
    %3177 = vmatpush1.msra.mxu0 0.0
    %3178 = vmatprep.mubr.f32.mxu0 0.0
    %3179 = vmatmul.mubr.f32.gmra.mrb[0].mxu0 %v807
    %v3180 = vpop.f32.mrb[0].mxu0
    %v3181 = vadd.f32 0.0, %v3180
    %v3182 = vpop.f32.mrb[0].mxu0
    %3183 = vmatprep.mubr.f32.mxu0 0.0
    %3184 = vmatmul.mubr.f32.gmra.mrb[0].mxu0 %v810
    %v3185 = vpop.f32.mrb[0].mxu0
    %v3186 = vadd.f32 0.0, %v3185
    %v3187 = vpop.f32.mrb[0].mxu0
    %3188 = vmatprep.mubr.f32.mxu0 0.0
    %3189 = vmatmul.mubr.f32.gmra.mrb[0].mxu0 %v813
    %v3190 = vpop.f32.mrb[0].mxu0
    %v3191 = vadd.f32 0.0, %v3190
    %v3192 = vpop.f32.mrb[0].mxu0
    %3193 = vmatprep.mubr.f32.mxu0 0.0
    %3194 = vmatmul.mubr.f32.gmra.mrb[0].mxu0 %v816
    %v3195 = vpop.f32.mrb[0].mxu0
    %v3196 = vadd.f32 0.0, %v3195
    %v3197 = vpop.f32.mrb[0].mxu0
    %3198 = vmatprep.mubr.f32.mxu0 0.0
    %3199 = vmatmul.mubr.f32.gmra.mrb[0].mxu0 %v819
    %v3200 = vpop.f32.mrb[0].mxu0
    %v3201 = vadd.f32 0.0, %v3200
    %v3202 = vpop.f32.mrb[0].mxu0
    %3203 = vmatprep.mubr.f32.mxu0 0.0
    %3204 = vmatmul.mubr.f32.gmra.mrb[0].mxu0 %v822
    %v3205 = vpop.f32.mrb[0].mxu0
    %v3206 = vadd.f32 0.0, %v3205
    %v3207 = vpop.f32.mrb[0].mxu0
    %3208 = vdwg.mxu0
    %3215 = vrot.lane.b32.xlu0 %v3181, 32
    %v3216 = vpop.permute.xlu0 %3215
    %3217 = vrot.lane.b32.xlu0 %v3186, 32
    %v3218 = vpop.permute.xlu0 %3217
    %3219 = vrot.lane.b32.xlu0 %v3191, 32
    %v3220 = vpop.permute.xlu0 %3219
    %3221 = vrot.lane.b32.xlu0 %v3196, 32
    %v3222 = vpop.permute.xlu0 %3221
    %3223 = vrot.lane.b32.xlu0 %v3201, 32
    %v3224 = vpop.permute.xlu0 %3223
    %3225 = vrot.lane.b32.xlu0 %v3206, 32
    %v3226 = vpop.permute.xlu0 %3225
    %v3233 = vadd.f32 %v3098, %v3216
    %v3234 = vadd.f32 %v3099, %v3218
    %v3235 = vadd.f32 %v3100, %v3220
    %v3236 = vadd.f32 %v3101, %v3222
    %v3237 = vadd.f32 %v3102, %v3224
    %v3238 = vadd.f32 %v3103, %v3226
    %vm3239 = vcmp.gt.f32.partialorder %v3233, 0.0
    %vm3240 = vcmp.gt.f32.partialorder %v3234, 0.0
    %vm3241 = vcmp.gt.f32.partialorder %v3235, 0.0
    %vm3242 = vcmp.gt.f32.partialorder %v3236, 0.0
    %vm3243 = vcmp.gt.f32.partialorder %v3237, 0.0
    %vm3244 = vcmp.gt.f32.partialorder %v3238, 0.0
    %v3245 = vmul.f32 %v3233, 0.2
    %v3246 = vmul.f32 %v3234, 0.2
    %v3247 = vmul.f32 %v3235, 0.2
    %v3248 = vmul.f32 %v3236, 0.2
    %v3249 = vmul.f32 %v3237, 0.2
    %v3250 = vmul.f32 %v3238, 0.2
    %v3251 = vsel %vm3239, %v3233, %v3245
    %v3252 = vsel %vm3240, %v3234, %v3246
    %v3253 = vsel %vm3241, %v3235, %v3247
    %v3254 = vsel %vm3242, %v3236, %v3248
    %v3255 = vsel %vm3243, %v3237, %v3249
    %v3256 = vsel %vm3244, %v3238, %v3250
    %v3257 = vsel %vm967, %v3251, -inf
    %v3258 = vsel %vm967, %v3252, -inf
    %v3259 = vsel %vm967, %v3253, -inf
    %v3260 = vsel %vm967, %v3254, -inf
    %v3261 = vsel %vm967, %v3255, -inf
    %v3262 = vmax.f32 %v3257, %v3261
    %v3263 = vsel %vm967, %v3256, -inf
    %v3264 = vmax.f32 %v3258, %v3263
    %v3265 = vmax.f32 %v3262, %v3264
    %v3266 = vmax.f32 %v3259, %v3260
    %v3267 = vmax.f32 %v3265, %v3266
    %3268 = vmax.xlane.f32.xlu0 %v3267
    %v3269 = vpop.xlane.xlu0 %3268
    %v3270 = vrot.slane %v3269, 4
    %v3271 = vmax.f32 %v3269, %v3270
    %v3272 = vrot.slane %v3271, 2
    %v3273 = vmax.f32 %v3271, %v3272
    %v3274 = vrot.slane %v3273, 1
    %v3275 = vmax.f32 %v3273, %v3274
    %s3276 = vtos %v3275
    %v3277 = vstv %s3276
    %v3278 = vsub.f32 %v3251, %v3277
    %v3279 = vsub.f32 %v3252, %v3277
    %v3280 = vsub.f32 %v3253, %v3277
    %v3281 = vsub.f32 %v3254, %v3277
    %v3282 = vsub.f32 %v3255, %v3277
    %v3283 = vsub.f32 %v3256, %v3277
    %v3284 = vmul.f32 %v3278, 1.442695
    %v3285 = vpow.pop %v3284
    %v3286 = vmul.f32 %v3279, 1.442695
    %v3287 = vpow.pop %v3286
    %v3288 = vmul.f32 %v3280, 1.442695
    %v3289 = vpow.pop %v3288
    %v3290 = vmul.f32 %v3281, 1.442695
    %v3291 = vpow.pop %v3290
    %v3292 = vmul.f32 %v3282, 1.442695
    %v3293 = vpow.pop %v3292
    %v3294 = vmul.f32 %v3283, 1.442695
    %v3295 = vpow.pop %v3294
    %3302 = vrot.lane.b32.xlu0 %v3285, 96
    %v3303 = vpop.permute.xlu0 %3302
    %3304 = vrot.lane.b32.xlu0 %v3287, 96
    %v3305 = vpop.permute.xlu0 %3304
    %3306 = vrot.lane.b32.xlu0 %v3289, 96
    %v3307 = vpop.permute.xlu0 %3306
    %3308 = vrot.lane.b32.xlu0 %v3291, 96
    %v3309 = vpop.permute.xlu0 %3308
    %3310 = vrot.lane.b32.xlu0 %v3293, 96
    %v3311 = vpop.permute.xlu0 %3310
    %3312 = vrot.lane.b32.xlu0 %v3295, 96
    %v3313 = vpop.permute.xlu0 %3312
    %v3314 = vsel %vm1025, %v3303, 0
    %v3316 = vsel %vm1025, %v3305, 0
    %v3318 = vsel %vm1025, %v3307, 0
    %v3320 = vsel %vm1025, %v3309, 0
    %v3322 = vsel %vm1025, %v3311, 0
    %v3324 = vsel %vm1025, %v3313, 0
    %3326 = vmatprep.subr.mxu0 0.0
    %3327 = vmatpush1.msra.mxu0 %v1039
    %3328 = vmatprep.subr.mxu0 0.0
    %3329 = vmatpush1.msra.mxu0 0.0
    %3330 = vmatprep.subr.mxu0 0.0
    %3331 = vmatpush1.msra.mxu0 0.0
    %3332 = vmatprep.subr.mxu0 0.0
    %3333 = vmatpush1.msra.mxu0 0.0
    %3334 = vmatprep.subr.mxu0 0.0
    %3335 = vmatpush1.msra.mxu0 0.0
    %3336 = vmatprep.subr.mxu0 0.0
    %3337 = vmatpush1.msra.mxu0 0.0
    %3338 = vmatprep.subr.mxu0 0.0
    %3339 = vmatpush1.msra.mxu0 0.0
    %3340 = vmatprep.subr.mxu0 0.0
    %3341 = vmatpush1.msra.mxu0 0.0
    %3342 = vmatprep.subr.mxu0 0.0
    %3343 = vmatpush1.msra.mxu0 0.0
    %3344 = vmatprep.subr.mxu0 0.0
    %3345 = vmatpush1.msra.mxu0 0.0
    %3346 = vmatprep.subr.mxu0 0.0
    %3347 = vmatpush1.msra.mxu0 0.0
    %3348 = vmatprep.subr.mxu0 0.0
    %3349 = vmatpush1.msra.mxu0 0.0
    %3350 = vmatprep.subr.mxu0 0.0
    %3351 = vmatpush1.msra.mxu0 0.0
    %3352 = vmatprep.subr.mxu0 0.0
    %3353 = vmatpush1.msra.mxu0 0.0
    %3354 = vmatprep.subr.mxu0 0.0
    %3355 = vmatpush1.msra.mxu0 0.0
    %3356 = vmatprep.subr.mxu0 0.0
    %3357 = vmatpush1.msra.mxu0 0.0
    %3358 = vmatprep.subr.mxu0 0.0
    %3359 = vmatpush1.msra.mxu0 0.0
    %3360 = vmatprep.subr.mxu0 0.0
    %3361 = vmatpush1.msra.mxu0 0.0
    %3362 = vmatprep.subr.mxu0 0.0
    %3363 = vmatpush1.msra.mxu0 0.0
    %3364 = vmatprep.subr.mxu0 0.0
    %3365 = vmatpush1.msra.mxu0 0.0
    %3366 = vmatprep.subr.mxu0 0.0
    %3367 = vmatpush1.msra.mxu0 0.0
    %3368 = vmatprep.subr.mxu0 0.0
    %3369 = vmatpush1.msra.mxu0 0.0
    %3370 = vmatprep.subr.mxu0 0.0
    %3371 = vmatpush1.msra.mxu0 0.0
    %3372 = vmatprep.subr.mxu0 0.0
    %3373 = vmatpush1.msra.mxu0 0.0
    %3374 = vmatprep.subr.mxu0 0.0
    %3375 = vmatpush1.msra.mxu0 0.0
    %3376 = vmatprep.subr.mxu0 0.0
    %3377 = vmatpush1.msra.mxu0 0.0
    %3378 = vmatprep.subr.mxu0 0.0
    %3379 = vmatpush1.msra.mxu0 0.0
    %3380 = vmatprep.subr.mxu0 0.0
    %3381 = vmatpush1.msra.mxu0 0.0
    %3382 = vmatprep.subr.mxu0 0.0
    %3383 = vmatpush1.msra.mxu0 0.0
    %3384 = vmatprep.subr.mxu0 0.0
    %3385 = vmatpush1.msra.mxu0 0.0
    %3386 = vmatprep.subr.mxu0 0.0
    %3387 = vmatpush1.msra.mxu0 0.0
    %3388 = vmatprep.subr.mxu0 0.0
    %3389 = vmatpush1.msra.mxu0 0.0
    %3390 = vmatprep.mubr.f32.mxu0 0.0
    %3391 = vmatmul.mubr.f32.gmra.mrb[0].mxu0 %v3314
    %v3392 = vpop.f32.mrb[0].mxu0
    %v3393 = vadd.f32 0.0, %v3392
    %v3394 = vpop.f32.mrb[0].mxu0
    %3395 = vmatprep.mubr.f32.mxu0 0.0
    %3396 = vmatmul.mubr.f32.gmra.mrb[0].mxu0 %v3316
    %v3397 = vpop.f32.mrb[0].mxu0
    %v3398 = vadd.f32 0.0, %v3397
    %v3399 = vpop.f32.mrb[0].mxu0
    %3400 = vmatprep.mubr.f32.mxu0 0.0
    %3401 = vmatmul.mubr.f32.gmra.mrb[0].mxu0 %v3318
    %v3402 = vpop.f32.mrb[0].mxu0
    %v3403 = vadd.f32 0.0, %v3402
    %v3404 = vpop.f32.mrb[0].mxu0
    %3405 = vmatprep.mubr.f32.mxu0 0.0
    %3406 = vmatmul.mubr.f32.gmra.mrb[0].mxu0 %v3320
    %v3407 = vpop.f32.mrb[0].mxu0
    %v3408 = vadd.f32 0.0, %v3407
    %v3409 = vpop.f32.mrb[0].mxu0
    %3410 = vmatprep.mubr.f32.mxu0 0.0
    %3411 = vmatmul.mubr.f32.gmra.mrb[0].mxu0 %v3322
    %v3412 = vpop.f32.mrb[0].mxu0
    %v3413 = vadd.f32 0.0, %v3412
    %v3414 = vpop.f32.mrb[0].mxu0
    %3415 = vmatprep.mubr.f32.mxu0 0.0
    %3416 = vmatmul.mubr.f32.gmra.mrb[0].mxu0 %v3324
    %v3417 = vpop.f32.mrb[0].mxu0
    %v3418 = vadd.f32 0.0, %v3417
    %v3419 = vpop.f32.mrb[0].mxu0
    %3420 = vdwg.mxu0
    %v3421 = vmul.f32 %v3098, %v3393
    %v3422 = vmul.f32 %v3099, %v3398
    %v3423 = vmul.f32 %v3100, %v3403
    %v3424 = vmul.f32 %v3101, %v3408
    %v3425 = vmul.f32 %v3102, %v3413
    %v3426 = vmul.f32 %v3103, %v3418
    %3427 = vmatprep.subr.mxu0 0.0
    %3428 = vmatpush1.msra.mxu0 %v3421
    %3429 = vmatprep.subr.mxu0 0.0
    %3430 = vmatpush1.msra.mxu0 %v3422
    %3431 = vmatprep.subr.mxu0 0.0
    %3432 = vmatpush1.msra.mxu0 %v3423
    %3433 = vmatprep.subr.mxu0 0.0
    %3434 = vmatpush1.msra.mxu0 %v3424
    %3435 = vmatprep.subr.mxu0 0.0
    %3436 = vmatpush1.msra.mxu0 %v3425
    %3437 = vmatprep.subr.mxu0 0.0
    %3438 = vmatpush1.msra.mxu0 %v3426
    %3439 = vmatprep.subr.mxu0 0.0
    %3440 = vmatpush1.msra.mxu0 0.0
    %3441 = vmatprep.subr.mxu0 0.0
    %3442 = vmatpush1.msra.mxu0 0.0
    %3443 = vmatprep.subr.mxu0 0.0
    %3444 = vmatpush1.msra.mxu0 0.0
    %3445 = vmatprep.subr.mxu0 0.0
    %3446 = vmatpush1.msra.mxu0 0.0
    %3447 = vmatprep.subr.mxu0 0.0
    %3448 = vmatpush1.msra.mxu0 0.0
    %3449 = vmatprep.subr.mxu0 0.0
    %3450 = vmatpush1.msra.mxu0 0.0
    %3451 = vmatprep.subr.mxu0 0.0
    %3452 = vmatpush1.msra.mxu0 0.0
    %3453 = vmatprep.subr.mxu0 0.0
    %3454 = vmatpush1.msra.mxu0 0.0
    %3455 = vmatprep.subr.mxu0 0.0
    %3456 = vmatpush1.msra.mxu0 0.0
    %3457 = vmatprep.subr.mxu0 0.0
    %3458 = vmatpush1.msra.mxu0 0.0
    %3459 = vmatprep.subr.mxu0 0.0
    %3460 = vmatpush1.msra.mxu0 0.0
    %3461 = vmatprep.subr.mxu0 0.0
    %3462 = vmatpush1.msra.mxu0 0.0
    %3463 = vmatprep.subr.mxu0 0.0
    %3464 = vmatpush1.msra.mxu0 0.0
    %3465 = vmatprep.subr.mxu0 0.0
    %3466 = vmatpush1.msra.mxu0 0.0
    %3467 = vmatprep.subr.mxu0 0.0
    %3468 = vmatpush1.msra.mxu0 0.0
    %3469 = vmatprep.subr.mxu0 0.0
    %3470 = vmatpush1.msra.mxu0 0.0
    %3471 = vmatprep.subr.mxu0 0.0
    %3472 = vmatpush1.msra.mxu0 0.0
    %3473 = vmatprep.subr.mxu0 0.0
    %3474 = vmatpush1.msra.mxu0 0.0
    %3475 = vmatprep.subr.mxu0 0.0
    %3476 = vmatpush1.msra.mxu0 0.0
    %3477 = vmatprep.subr.mxu0 0.0
    %3478 = vmatpush1.msra.mxu0 0.0
    %3479 = vmatprep.subr.mxu0 0.0
    %3480 = vmatpush1.msra.mxu0 0.0
    %3481 = vmatprep.subr.mxu0 0.0
    %3482 = vmatpush1.msra.mxu0 0.0
    %3483 = vmatprep.subr.mxu0 0.0
    %3484 = vmatpush1.msra.mxu0 0.0
    %3485 = vmatprep.subr.mxu0 0.0
    %3486 = vmatpush1.msra.mxu0 0.0
    %3487 = vmatprep.subr.mxu0 0.0
    %3488 = vmatpush1.msra.mxu0 0.0
    %3489 = vmatprep.subr.mxu0 0.0
    %3490 = vmatpush1.msra.mxu0 0.0
    %3491 = vmatprep.mubr.f32.mxu0 0.0
    %3492 = vmatmul.mubr.f32.gmra.mrb[0].mxu0 %v1144
    %v3493 = vpop.f32.mrb[0].mxu0
    %v3494 = vadd.f32 0.0, %v3493
    %v3495 = vpop.f32.mrb[0].mxu0
    %3496 = vmatprep.mubr.f32.mxu0 0.0
    %3497 = vmatmul.mubr.f32.gmra.mrb[0].mxu0 %v1147
    %v3498 = vpop.f32.mrb[0].mxu0
    %v3499 = vadd.f32 0.0, %v3498
    %v3500 = vpop.f32.mrb[0].mxu0
    %3501 = vdwg.mxu0
    %3508 = vmatprep.subr.mxu0 0.0
    %3509 = vmatpush1.msra.mxu0 %v3303
    %3510 = vmatprep.subr.mxu0 0.0
    %3511 = vmatpush1.msra.mxu0 %v3305
    %3512 = vmatprep.subr.mxu0 0.0
    %3513 = vmatpush1.msra.mxu0 %v3307
    %3514 = vmatprep.subr.mxu0 0.0
    %3515 = vmatpush1.msra.mxu0 %v3309
    %3516 = vmatprep.subr.mxu0 0.0
    %3517 = vmatpush1.msra.mxu0 %v3311
    %3518 = vmatprep.subr.mxu0 0.0
    %3519 = vmatpush1.msra.mxu0 %v3313
    %3520 = vmatprep.subr.mxu0 0.0
    %3521 = vmatpush1.msra.mxu0 0.0
    %3522 = vmatprep.subr.mxu0 0.0
    %3523 = vmatpush1.msra.mxu0 0.0
    %3524 = vmatprep.subr.mxu0 0.0
    %3525 = vmatpush1.msra.mxu0 0.0
    %3526 = vmatprep.subr.mxu0 0.0
    %3527 = vmatpush1.msra.mxu0 0.0
    %3528 = vmatprep.subr.mxu0 0.0
    %3529 = vmatpush1.msra.mxu0 0.0
    %3530 = vmatprep.subr.mxu0 0.0
    %3531 = vmatpush1.msra.mxu0 0.0
    %3532 = vmatprep.subr.mxu0 0.0
    %3533 = vmatpush1.msra.mxu0 0.0
    %3534 = vmatprep.subr.mxu0 0.0
    %3535 = vmatpush1.msra.mxu0 0.0
    %3536 = vmatprep.subr.mxu0 0.0
    %3537 = vmatpush1.msra.mxu0 0.0
    %3538 = vmatprep.subr.mxu0 0.0
    %3539 = vmatpush1.msra.mxu0 0.0
    %3540 = vmatprep.subr.mxu0 0.0
    %3541 = vmatpush1.msra.mxu0 0.0
    %3542 = vmatprep.subr.mxu0 0.0
    %3543 = vmatpush1.msra.mxu0 0.0
    %3544 = vmatprep.subr.mxu0 0.0
    %3545 = vmatpush1.msra.mxu0 0.0
    %3546 = vmatprep.subr.mxu0 0.0
    %3547 = vmatpush1.msra.mxu0 0.0
    %3548 = vmatprep.subr.mxu0 0.0
    %3549 = vmatpush1.msra.mxu0 0.0
    %3550 = vmatprep.subr.mxu0 0.0
    %3551 = vmatpush1.msra.mxu0 0.0
    %3552 = vmatprep.subr.mxu0 0.0
    %3553 = vmatpush1.msra.mxu0 0.0
    %3554 = vmatprep.subr.mxu0 0.0
    %3555 = vmatpush1.msra.mxu0 0.0
    %3556 = vmatprep.subr.mxu0 0.0
    %3557 = vmatpush1.msra.mxu0 0.0
    %3558 = vmatprep.subr.mxu0 0.0
    %3559 = vmatpush1.msra.mxu0 0.0
    %3560 = vmatprep.subr.mxu0 0.0
    %3561 = vmatpush1.msra.mxu0 0.0
    %3562 = vmatprep.subr.mxu0 0.0
    %3563 = vmatpush1.msra.mxu0 0.0
    %3564 = vmatprep.subr.mxu0 0.0
    %3565 = vmatpush1.msra.mxu0 0.0
    %3566 = vmatprep.subr.mxu0 0.0
    %3567 = vmatpush1.msra.mxu0 0.0
    %3568 = vmatprep.subr.mxu0 0.0
    %3569 = vmatpush1.msra.mxu0 0.0
    %3570 = vmatprep.subr.mxu0 0.0
    %3571 = vmatpush1.msra.mxu0 0.0
    %3572 = vmatprep.mubr.f32.mxu0 0.0
    %3573 = vmatmul.mubr.f32.gmra.mrb[0].mxu0 %v1144
    %v3574 = vpop.f32.mrb[0].mxu0
    %v3575 = vadd.f32 1e-16, %v3574
    %v3576 = vpop.f32.mrb[0].mxu0
    %3577 = vmatprep.mubr.f32.mxu0 0.0
    %3578 = vmatmul.mubr.f32.gmra.mrb[0].mxu0 %v1147
    %v3579 = vpop.f32.mrb[0].mxu0
    %v3580 = vadd.f32 1e-16, %v3579
    %v3581 = vpop.f32.mrb[0].mxu0
    %3582 = vdwg.mxu0
    %v3583 = vrcp.pop %v3575
    %v3584 = vrcp.pop %v3580
    %3585 = vmatprep.subr.mxu0 0.0
    %3586 = vmatpush1.msra.mxu0 %v3583
    %3587 = vmatprep.subr.mxu0 0.0
    %3588 = vmatpush1.msra.mxu0 %v3584
    %3589 = vmatprep.subr.mxu0 0.0
    %3590 = vmatpush1.msra.mxu0 0.0
    %3591 = vmatprep.subr.mxu0 0.0
    %3592 = vmatpush1.msra.mxu0 0.0
    %3593 = vmatprep.subr.mxu0 0.0
    %3594 = vmatpush1.msra.mxu0 0.0
    %3595 = vmatprep.subr.mxu0 0.0
    %3596 = vmatpush1.msra.mxu0 0.0
    %3597 = vmatprep.subr.mxu0 0.0
    %3598 = vmatpush1.msra.mxu0 0.0
    %3599 = vmatprep.subr.mxu0 0.0
    %3600 = vmatpush1.msra.mxu0 0.0
    %3601 = vmatprep.subr.mxu0 0.0
    %3602 = vmatpush1.msra.mxu0 0.0
    %3603 = vmatprep.subr.mxu0 0.0
    %3604 = vmatpush1.msra.mxu0 0.0
    %3605 = vmatprep.subr.mxu0 0.0
    %3606 = vmatpush1.msra.mxu0 0.0
    %3607 = vmatprep.subr.mxu0 0.0
    %3608 = vmatpush1.msra.mxu0 0.0
    %3609 = vmatprep.subr.mxu0 0.0
    %3610 = vmatpush1.msra.mxu0 0.0
    %3611 = vmatprep.subr.mxu0 0.0
    %3612 = vmatpush1.msra.mxu0 0.0
    %3613 = vmatprep.subr.mxu0 0.0
    %3614 = vmatpush1.msra.mxu0 0.0
    %3615 = vmatprep.subr.mxu0 0.0
    %3616 = vmatpush1.msra.mxu0 0.0
    %3617 = vmatprep.subr.mxu0 0.0
    %3618 = vmatpush1.msra.mxu0 0.0
    %3619 = vmatprep.subr.mxu0 0.0
    %3620 = vmatpush1.msra.mxu0 0.0
    %3621 = vmatprep.subr.mxu0 0.0
    %3622 = vmatpush1.msra.mxu0 0.0
    %3623 = vmatprep.subr.mxu0 0.0
    %3624 = vmatpush1.msra.mxu0 0.0
    %3625 = vmatprep.subr.mxu0 0.0
    %3626 = vmatpush1.msra.mxu0 0.0
    %3627 = vmatprep.subr.mxu0 0.0
    %3628 = vmatpush1.msra.mxu0 0.0
    %3629 = vmatprep.subr.mxu0 0.0
    %3630 = vmatpush1.msra.mxu0 0.0
    %3631 = vmatprep.subr.mxu0 0.0
    %3632 = vmatpush1.msra.mxu0 0.0
    %3633 = vmatprep.subr.mxu0 0.0
    %3634 = vmatpush1.msra.mxu0 0.0
    %3635 = vmatprep.subr.mxu0 0.0
    %3636 = vmatpush1.msra.mxu0 0.0
    %3637 = vmatprep.subr.mxu0 0.0
    %3638 = vmatpush1.msra.mxu0 0.0
    %3639 = vmatprep.subr.mxu0 0.0
    %3640 = vmatpush1.msra.mxu0 0.0
    %3641 = vmatprep.subr.mxu0 0.0
    %3642 = vmatpush1.msra.mxu0 0.0
    %3643 = vmatprep.subr.mxu0 0.0
    %3644 = vmatpush1.msra.mxu0 0.0
    %3645 = vmatprep.subr.mxu0 0.0
    %3646 = vmatpush1.msra.mxu0 0.0
    %3647 = vmatprep.subr.mxu0 0.0
    %3648 = vmatpush1.msra.mxu0 0.0
    %3649 = vmatprep.mubr.f32.mxu0 0.0
    %3650 = vmatmul.mubr.f32.gmra.mrb[0].mxu0 %v807
    %v3651 = vpop.f32.mrb[0].mxu0
    %v3652 = vadd.f32 0.0, %v3651
    %v3653 = vpop.f32.mrb[0].mxu0
    %3654 = vmatprep.mubr.f32.mxu0 0.0
    %3655 = vmatmul.mubr.f32.gmra.mrb[0].mxu0 %v810
    %v3656 = vpop.f32.mrb[0].mxu0
    %v3657 = vadd.f32 0.0, %v3656
    %v3658 = vpop.f32.mrb[0].mxu0
    %3659 = vmatprep.mubr.f32.mxu0 0.0
    %3660 = vmatmul.mubr.f32.gmra.mrb[0].mxu0 %v813
    %v3661 = vpop.f32.mrb[0].mxu0
    %v3662 = vadd.f32 0.0, %v3661
    %v3663 = vpop.f32.mrb[0].mxu0
    %3664 = vmatprep.mubr.f32.mxu0 0.0
    %3665 = vmatmul.mubr.f32.gmra.mrb[0].mxu0 %v816
    %v3666 = vpop.f32.mrb[0].mxu0
    %v3667 = vadd.f32 0.0, %v3666
    %v3668 = vpop.f32.mrb[0].mxu0
    %3669 = vmatprep.mubr.f32.mxu0 0.0
    %3670 = vmatmul.mubr.f32.gmra.mrb[0].mxu0 %v819
    %v3671 = vpop.f32.mrb[0].mxu0
    %v3672 = vadd.f32 0.0, %v3671
    %v3673 = vpop.f32.mrb[0].mxu0
    %3674 = vmatprep.mubr.f32.mxu0 0.0
    %3675 = vmatmul.mubr.f32.gmra.mrb[0].mxu0 %v822
    %v3676 = vpop.f32.mrb[0].mxu0
    %v3677 = vadd.f32 0.0, %v3676
    %v3678 = vpop.f32.mrb[0].mxu0
    %3679 = vdwg.mxu0
    %3686 = vrot.lane.b32.xlu0 %v3652, 32
    %v3687 = vpop.permute.xlu0 %3686
    %3688 = vrot.lane.b32.xlu0 %v3657, 32
    %v3689 = vpop.permute.xlu0 %3688
    %3690 = vrot.lane.b32.xlu0 %v3662, 32
    %v3691 = vpop.permute.xlu0 %3690
    %3692 = vrot.lane.b32.xlu0 %v3667, 32
    %v3693 = vpop.permute.xlu0 %3692
    %3694 = vrot.lane.b32.xlu0 %v3672, 32
    %v3695 = vpop.permute.xlu0 %3694
    %3696 = vrot.lane.b32.xlu0 %v3677, 32
    %v3697 = vpop.permute.xlu0 %3696
    %v3704 = vmul.f32 %v3285, %v3687
    %v3705 = vmul.f32 %v3287, %v3689
    %v3706 = vmul.f32 %v3289, %v3691
    %v3707 = vmul.f32 %v3291, %v3693
    %v3708 = vmul.f32 %v3293, %v3695
    %v3709 = vmul.f32 %v3295, %v3697
    %3716 = vrot.lane.b32.xlu0 %v3704, 96
    %v3717 = vpop.permute.xlu0 %3716
    %3718 = vrot.lane.b32.xlu0 %v3705, 96
    %v3719 = vpop.permute.xlu0 %3718
    %3720 = vrot.lane.b32.xlu0 %v3706, 96
    %v3721 = vpop.permute.xlu0 %3720
    %3722 = vrot.lane.b32.xlu0 %v3707, 96
    %v3723 = vpop.permute.xlu0 %3722
    %3724 = vrot.lane.b32.xlu0 %v3708, 96
    %v3725 = vpop.permute.xlu0 %3724
    %3726 = vrot.lane.b32.xlu0 %v3709, 96
    %v3727 = vpop.permute.xlu0 %3726
    %s3734 = scalar_lea.vmem %s20, 96
    %3735 = vst.msk [vmem:[%s3734] sm:$0xff] %vm1025, %v3717
    %3736 = vst.msk [vmem:[%s3734 + $0x8] sm:$0xff] %vm1025, %v3719
    %3737 = vst.msk [vmem:[%s3734 + $0x10] sm:$0xff] %vm1025, %v3721
    %3738 = vst.msk [vmem:[%s3734 + $0x18] sm:$0xff] %vm1025, %v3723
    %3739 = vst.msk [vmem:[%s3734 + $0x20] sm:$0xff] %vm1025, %v3725
    %3740 = vst.msk [vmem:[%s3734 + $0x28] sm:$0xff] %vm1025, %v3727
    %v3742 = vsel %vm1025, %v3583, 0
    %v3745 = vsel %vm1025, %v3584, 0
    %3747 = vmatprep.subr.mxu0 0.0
    %3748 = vmatpush1.msra.mxu0 %v1039
    %3749 = vmatprep.subr.mxu0 0.0
    %3750 = vmatpush1.msra.mxu0 0.0
    %3751 = vmatprep.subr.mxu0 0.0
    %3752 = vmatpush1.msra.mxu0 0.0
    %3753 = vmatprep.subr.mxu0 0.0
    %3754 = vmatpush1.msra.mxu0 0.0
    %3755 = vmatprep.subr.mxu0 0.0
    %3756 = vmatpush1.msra.mxu0 0.0
    %3757 = vmatprep.subr.mxu0 0.0
    %3758 = vmatpush1.msra.mxu0 0.0
    %3759 = vmatprep.subr.mxu0 0.0
    %3760 = vmatpush1.msra.mxu0 0.0
    %3761 = vmatprep.subr.mxu0 0.0
    %3762 = vmatpush1.msra.mxu0 0.0
    %3763 = vmatprep.subr.mxu0 0.0
    %3764 = vmatpush1.msra.mxu0 0.0
    %3765 = vmatprep.subr.mxu0 0.0
    %3766 = vmatpush1.msra.mxu0 0.0
    %3767 = vmatprep.subr.mxu0 0.0
    %3768 = vmatpush1.msra.mxu0 0.0
    %3769 = vmatprep.subr.mxu0 0.0
    %3770 = vmatpush1.msra.mxu0 0.0
    %3771 = vmatprep.subr.mxu0 0.0
    %3772 = vmatpush1.msra.mxu0 0.0
    %3773 = vmatprep.subr.mxu0 0.0
    %3774 = vmatpush1.msra.mxu0 0.0
    %3775 = vmatprep.subr.mxu0 0.0
    %3776 = vmatpush1.msra.mxu0 0.0
    %3777 = vmatprep.subr.mxu0 0.0
    %3778 = vmatpush1.msra.mxu0 0.0
    %3779 = vmatprep.subr.mxu0 0.0
    %3780 = vmatpush1.msra.mxu0 0.0
    %3781 = vmatprep.subr.mxu0 0.0
    %3782 = vmatpush1.msra.mxu0 0.0
    %3783 = vmatprep.subr.mxu0 0.0
    %3784 = vmatpush1.msra.mxu0 0.0
    %3785 = vmatprep.subr.mxu0 0.0
    %3786 = vmatpush1.msra.mxu0 0.0
    %3787 = vmatprep.subr.mxu0 0.0
    %3788 = vmatpush1.msra.mxu0 0.0
    %3789 = vmatprep.subr.mxu0 0.0
    %3790 = vmatpush1.msra.mxu0 0.0
    %3791 = vmatprep.subr.mxu0 0.0
    %3792 = vmatpush1.msra.mxu0 0.0
    %3793 = vmatprep.subr.mxu0 0.0
    %3794 = vmatpush1.msra.mxu0 0.0
    %3795 = vmatprep.subr.mxu0 0.0
    %3796 = vmatpush1.msra.mxu0 0.0
    %3797 = vmatprep.subr.mxu0 0.0
    %3798 = vmatpush1.msra.mxu0 0.0
    %3799 = vmatprep.subr.mxu0 0.0
    %3800 = vmatpush1.msra.mxu0 0.0
    %3801 = vmatprep.subr.mxu0 0.0
    %3802 = vmatpush1.msra.mxu0 0.0
    %3803 = vmatprep.subr.mxu0 0.0
    %3804 = vmatpush1.msra.mxu0 0.0
    %3805 = vmatprep.subr.mxu0 0.0
    %3806 = vmatpush1.msra.mxu0 0.0
    %3807 = vmatprep.subr.mxu0 0.0
    %3808 = vmatpush1.msra.mxu0 0.0
    %3809 = vmatprep.subr.mxu0 0.0
    %3810 = vmatpush1.msra.mxu0 0.0
    %3811 = vmatprep.mubr.f32.mxu0 0.0
    %3812 = vmatmul.mubr.f32.gmra.mrb[0].mxu0 %v3742
    %v3813 = vpop.f32.mrb[0].mxu0
    %v3814 = vadd.f32 0.0, %v3813
    %v3815 = vpop.f32.mrb[0].mxu0
    %3816 = vmatprep.mubr.f32.mxu0 0.0
    %3817 = vmatmul.mubr.f32.gmra.mrb[0].mxu0 %v3745
    %v3818 = vpop.f32.mrb[0].mxu0
    %v3819 = vadd.f32 0.0, %v3818
    %v3820 = vpop.f32.mrb[0].mxu0
    %3821 = vdwg.mxu0
    %v3822 = vmul.f32 %v3494, %v3814
    %v3823 = vmul.f32 %v3499, %v3819
    %s3824 = scalar_lea.vmem [#allocation17], 2
    %v3825 = vld [vmem:[%s3824] sm:$0x1]
    %v3827 = vlaneseq
    %v3828 = vshrl.u32 %v3827, 7
    %v3829 = vsub.s32 0, %v3828
    %v3830 = vrot.slane %v3825, %v3829
    %v3832 = vadd.f32 %v3822, %v3830
    %v3833 = vadd.f32 %v3823, %v3830
    %v3834 = vmax.f32 %v3832, 0.0
    %v3835 = vmax.f32 %v3833, 0.0
    %v3836 = vld [vmem:[#allocation18] sm:$0x1]
    %v3838 = vlaneseq
    %v3839 = vshrl.u32 %v3838, 7
    %v3840 = vsub.s32 0, %v3839
    %v3841 = vrot.slane %v3836, %v3840
    %v3843 = vmul.f32 %v3834, %v3841
    %v3844 = vmul.f32 %v3835, %v3841
    %v3845 = vld [vmem:[#allocation20] sm:$0x1]
    %v3847 = vlaneseq
    %v3848 = vshrl.u32 %v3847, 7
    %v3849 = vsub.s32 0, %v3848
    %v3850 = vrot.slane %v3845, %v3849
    %v3852 = vadd.f32 %v3843, %v3850
    %v3853 = vadd.f32 %v3844, %v3850
    %v3854 = vpack.c.bf16 %v3853, %v3852
    %v3855 = vld [vmem:[%s13] sm:$0xf]
    %v3856 = vld [vmem:[%s13 + $0x4] sm:$0xf]
    %v3857 = vld [vmem:[%s13 + $0x8] sm:$0xf]
    %v3858 = vld [vmem:[%s13 + $0xc] sm:$0xf]
    %v3859 = vld [vmem:[%s14] sm:$0x1]
    %v3861 = vlaneseq
    %v3862 = vshrl.u32 %v3861, 7
    %v3863 = vsub.s32 0, %v3862
    %v3864 = vrot.slane %v3859, %v3863
    %v3870 = vunpack.c.l.b16 %v3855
    %v3871 = vunpack.c.l.b16 %v3856
    %v3872 = vunpack.c.l.b16 %v3857
    %v3873 = vunpack.c.l.b16 %v3858
    %v3874 = vpack.c.b16 %v3871, %v3870
    %v3875 = vpack.c.b16 %v3873, %v3872
    %v3879 = vsel %vm370, %v3854, 0
    %3881 = vmatprep.subr.bf16.mxu0 0
    %3882 = vmatpush1.bf16.msra.mxu0 %v3874
    %3883 = vmatprep.subr.bf16.mxu0 0
    %3884 = vmatpush1.bf16.msra.mxu0 %v3875
    %3885 = vmatprep.subr.bf16.mxu0 0
    %3886 = vmatpush1.bf16.msra.mxu0 0
    %3887 = vmatprep.subr.bf16.mxu0 0
    %3888 = vmatpush1.bf16.msra.mxu0 0
    %3889 = vmatprep.subr.bf16.mxu0 0
    %3890 = vmatpush1.bf16.msra.mxu0 0
    %3891 = vmatprep.subr.bf16.mxu0 0
    %3892 = vmatpush1.bf16.msra.mxu0 0
    %3893 = vmatprep.subr.bf16.mxu0 0
    %3894 = vmatpush1.bf16.msra.mxu0 0
    %3895 = vmatprep.subr.bf16.mxu0 0
    %3896 = vmatpush1.bf16.msra.mxu0 0
    %3897 = vmatprep.subr.bf16.mxu0 0
    %3898 = vmatpush1.bf16.msra.mxu0 0
    %3899 = vmatprep.subr.bf16.mxu0 0
    %3900 = vmatpush1.bf16.msra.mxu0 0
    %3901 = vmatprep.subr.bf16.mxu0 0
    %3902 = vmatpush1.bf16.msra.mxu0 0
    %3903 = vmatprep.subr.bf16.mxu0 0
    %3904 = vmatpush1.bf16.msra.mxu0 0
    %3905 = vmatprep.subr.bf16.mxu0 0
    %3906 = vmatpush1.bf16.msra.mxu0 0
    %3907 = vmatprep.subr.bf16.mxu0 0
    %3908 = vmatpush1.bf16.msra.mxu0 0
    %3909 = vmatprep.subr.bf16.mxu0 0
    %3910 = vmatpush1.bf16.msra.mxu0 0
    %3911 = vmatprep.subr.bf16.mxu0 0
    %3912 = vmatpush1.bf16.msra.mxu0 0
    %3913 = vmatprep.mubr.bf16.mxu0 0
    %3914 = vmatmul.mubr.bf16.gmra.mrb[0].mxu0 %v3879
    %v3915 = vpop.f32.mrb[0].mxu0
    %v3916 = vadd.f32 %v3864, %v3915
    %v3917 = vpop.f32.mrb[0].mxu0
    %v3918 = vpop.f32.mrb[0].mxu0
    %v3919 = vadd.f32 %v3864, %v3918
    %v3920 = vpop.f32.mrb[0].mxu0
    %3921 = vdwg.mxu0
    %v3922 = vmax.f32 %v3916, 0.0
    %v3923 = vmax.f32 %v3919, 0.0
    %v3924 = vld [vmem:[%s15] sm:$0x1]
    %v3926 = vlaneseq
    %v3927 = vshrl.u32 %v3926, 7
    %v3928 = vsub.s32 0, %v3927
    %v3929 = vrot.slane %v3924, %v3928
    %v3931 = vmul.f32 %v3922, %v3929
    %v3932 = vmul.f32 %v3923, %v3929
    %v3933 = vld [vmem:[%s16] sm:$0x1]
    %v3935 = vlaneseq
    %v3936 = vshrl.u32 %v3935, 7
    %v3937 = vsub.s32 0, %v3936
    %v3938 = vrot.slane %v3933, %v3937
    %v3940 = vadd.f32 %v3931, %v3938
    %v3941 = vadd.f32 %v3932, %v3938
    %v3942 = vld [vmem:[%s17] sm:$0xff]
    %v3943 = vld [vmem:[%s17 + $0x8] sm:$0xff]
    %v3944 = vld [vmem:[%s17 + $0x10] sm:$0xff]
    %v3945 = vld [vmem:[%s17 + $0x18] sm:$0xff]
    %v3946 = vld [vmem:[%s18] sm:$0x1]
    %v3948 = vlaneseq
    %v3949 = vshrl.u32 %v3948, 7
    %v3950 = vsub.s32 0, %v3949
    %v3951 = vrot.slane %v3946, %v3950
    %v3954 = vsel %vm370, %v3940, 0
    %v3957 = vsel %vm370, %v3941, 0
    %3959 = vmatprep.subr.mxu0 0.0
    %3960 = vmatpush1.msra.mxu0 %v3942
    %3961 = vmatprep.subr.mxu0 0.0
    %3962 = vmatpush1.msra.mxu0 %v3943
    %3963 = vmatprep.subr.mxu0 0.0
    %3964 = vmatpush1.msra.mxu0 %v3944
    %3965 = vmatprep.subr.mxu0 0.0
    %3966 = vmatpush1.msra.mxu0 %v3945
    %3967 = vmatprep.subr.mxu0 0.0
    %3968 = vmatpush1.msra.mxu0 0.0
    %3969 = vmatprep.subr.mxu0 0.0
    %3970 = vmatpush1.msra.mxu0 0.0
    %3971 = vmatprep.subr.mxu0 0.0
    %3972 = vmatpush1.msra.mxu0 0.0
    %3973 = vmatprep.subr.mxu0 0.0
    %3974 = vmatpush1.msra.mxu0 0.0
    %3975 = vmatprep.subr.mxu0 0.0
    %3976 = vmatpush1.msra.mxu0 0.0
    %3977 = vmatprep.subr.mxu0 0.0
    %3978 = vmatpush1.msra.mxu0 0.0
    %3979 = vmatprep.subr.mxu0 0.0
    %3980 = vmatpush1.msra.mxu0 0.0
    %3981 = vmatprep.subr.mxu0 0.0
    %3982 = vmatpush1.msra.mxu0 0.0
    %3983 = vmatprep.subr.mxu0 0.0
    %3984 = vmatpush1.msra.mxu0 0.0
    %3985 = vmatprep.subr.mxu0 0.0
    %3986 = vmatpush1.msra.mxu0 0.0
    %3987 = vmatprep.subr.mxu0 0.0
    %3988 = vmatpush1.msra.mxu0 0.0
    %3989 = vmatprep.subr.mxu0 0.0
    %3990 = vmatpush1.msra.mxu0 0.0
    %3991 = vmatprep.subr.mxu0 0.0
    %3992 = vmatpush1.msra.mxu0 0.0
    %3993 = vmatprep.subr.mxu0 0.0
    %3994 = vmatpush1.msra.mxu0 0.0
    %3995 = vmatprep.subr.mxu0 0.0
    %3996 = vmatpush1.msra.mxu0 0.0
    %3997 = vmatprep.subr.mxu0 0.0
    %3998 = vmatpush1.msra.mxu0 0.0
    %3999 = vmatprep.subr.mxu0 0.0
    %4000 = vmatpush1.msra.mxu0 0.0
    %4001 = vmatprep.subr.mxu0 0.0
    %4002 = vmatpush1.msra.mxu0 0.0
    %4003 = vmatprep.subr.mxu0 0.0
    %4004 = vmatpush1.msra.mxu0 0.0
    %4005 = vmatprep.subr.mxu0 0.0
    %4006 = vmatpush1.msra.mxu0 0.0
    %4007 = vmatprep.subr.mxu0 0.0
    %4008 = vmatpush1.msra.mxu0 0.0
    %4009 = vmatprep.subr.mxu0 0.0
    %4010 = vmatpush1.msra.mxu0 0.0
    %4011 = vmatprep.subr.mxu0 0.0
    %4012 = vmatpush1.msra.mxu0 0.0
    %4013 = vmatprep.subr.mxu0 0.0
    %4014 = vmatpush1.msra.mxu0 0.0
    %4015 = vmatprep.subr.mxu0 0.0
    %4016 = vmatpush1.msra.mxu0 0.0
    %4017 = vmatprep.subr.mxu0 0.0
    %4018 = vmatpush1.msra.mxu0 0.0
    %4019 = vmatprep.subr.mxu0 0.0
    %4020 = vmatpush1.msra.mxu0 0.0
    %4021 = vmatprep.subr.mxu0 0.0
    %4022 = vmatpush1.msra.mxu0 0.0
    %4023 = vmatprep.mubr.f32.mxu0 0.0
    %4024 = vmatmul.mubr.f32.gmra.mrb[0].mxu0 %v3954
    %v4025 = vpop.f32.mrb[0].mxu0
    %v4026 = vadd.f32 %v3951, %v4025
    %v4027 = vpop.f32.mrb[0].mxu0
    %4028 = vmatprep.mubr.f32.mxu0 0.0
    %4029 = vmatmul.mubr.f32.gmra.mrb[0].mxu0 %v3957
    %v4030 = vpop.f32.mrb[0].mxu0
    %v4031 = vadd.f32 %v3951, %v4030
    %v4032 = vpop.f32.mrb[0].mxu0
    %4033 = vdwg.mxu0
    %4034 = vst [vmem:[#allocation21] sm:$0xff] %v4026
    %4035 = vst [vmem:[#allocation21 + $0x8] sm:$0xff] %v4031
    // Predicated region
    $region118: #{tpu_custom_call.1} parent=1 // pred_check
      _
    $region119: #{tpu_custom_call.1} parent=1 // pred_check_branch
      %4037 = sbr.rel (0) target = $region121
    $region120: #{tpu_custom_call.1} parent=1 // pred_region
      %s4039 = ssub.s32 256, 256
      %4040 = vsyncadd [#allocation6], %s4039
      %s4041 = sshll.u32 [#allocation21], 4
      %s4042 = int_to_ptr.vmem [resolvable:$true] %s4041
      %4047 = dma.vmem_to_hbm [thread:$0]  %s4042, 256, %s19, [#allocation6], 128, 128, 8
    $region121: #{tpu_custom_call.1} parent=1 // pred_fallthru
      _
    // Predicated region
    $region122: #{tpu_custom_call.1} parent=1 // pred_check
      _
    $region123: #{tpu_custom_call.1} parent=1 // pred_check_branch
      %4049 = sbr.rel (0) target = $region125
    $region124: #{tpu_custom_call.1} parent=1 // pred_region
      _
    $region125: #{tpu_custom_call.1} parent=1 // pred_fallthru
      _
    // Predicated region
    $region126: #{tpu_custom_call.1} parent=1 // pred_check
      _
    $region127: #{tpu_custom_call.1} parent=1 // pred_check_branch
      %4051 = sbr.rel (0) target = $region129
    $region128: #{tpu_custom_call.1} parent=1 // pred_region
      %4052 = dma.done [#allocation6], 256
    $region129: #{tpu_custom_call.1} parent=1 // pred_fallthru
      _
    // Predicated region
    $region130: #{tpu_custom_call.1} parent=1 // pred_check
      _
    $region131: #{tpu_custom_call.1} parent=1 // pred_check_branch
      %4054 = sbr.rel (0) target = $region133
    $region132: #{tpu_custom_call.1} parent=1 // pred_region
      _
    $region133: #{tpu_custom_call.1} parent=1 // pred_fallthru
      _
    %4055 = vsyncpa [#allocation5], 1
    %4056 = vsyncpa [#allocation10], 1
    %4057 = vsyncpa [#allocation13], 1
    %4058 = vsyncpa [#allocation16], 1
    %4059 = vsyncpa [#allocation19], 1
    %4060 = vsyncpa [#allocation6], 1
    %4061 = vsyncpa [#allocation7], 1

</llo_original>
